<compile_context>
chip_gen: v5e
topology: v5e:2x2
jax: 0.10.0
libtpu: 0.0.40
codegen_flags: <defaults>
</compile_context>

<pallas_src>
import numpy as np
import jax
import jax.numpy as jnp
from jax.experimental import pallas as pl
from jax.experimental.pallas import tpu as pltpu

# ----------------------------- configuration --------------------------------
N_BATCH = 2
W_DIM = 32
TEACHER_IMSIZE = 16
STUDENT_IMSIZE = 16          # == teacher -> "first half" covers every block
IS_FIRST_HALF = True
IMG_CHANNELS = 3
CHANNEL_BASE = 512
CHANNEL_MAX = 32
CONV_CLAMP = 256.0
SQRT2 = float(np.sqrt(2.0))  # lrelu def_gain in bias_act

IMG_RES_LOG2 = int(np.log2(TEACHER_IMSIZE))
BLOCK_RESOLUTIONS = [2 ** i for i in range(2, IMG_RES_LOG2 + 1)]
CHANNELS = {res: min(CHANNEL_BASE // res, CHANNEL_MAX) for res in BLOCK_RESOLUTIONS}
assert len(set(CHANNELS.values())) == 1, "fused kernel assumes uniform channel width"
C = CHANNELS[BLOCK_RESOLUTIONS[0]]                       # 32 everywhere at this config
# num_ws: num_conv of every block + num_torgb of the last block
NUM_WS = sum(1 if r == 4 else 2 for r in BLOCK_RESOLUTIONS) + 1
N_STYLE = sum(2 if r == 4 else 3 for r in BLOCK_RESOLUTIONS)   # style-affine layers (8)
N_DEMOD = sum(1 if r == 4 else 2 for r in BLOCK_RESOLUTIONS)   # demodulated conv layers (5)

# resample_filter = upfirdn2d.setup_filter([1,3,3,1]) (normalized outer product),
# with upsampling gain up**2 = 4 folded in.
_f1 = np.array([1.0, 3.0, 3.0, 1.0], np.float64)
_F = np.outer(_f1, _f1)
_F = _F / _F.sum()
F_UP = (_F * 4.0).astype(np.float32)          # effective 4x4 upsampling filter

# phase -> ((row offset, filter row index), ...) for the polyphase [1,3,3,1] upsample
_BLUR_TAPS = {0: ((-1, 0), (0, 2)), 1: ((0, 1), (1, 3))}


# ------------------------- canonical operand ordering -------------------------
def _operand_names():
    names = ["styles", "demods", "biases", "const4"]
    for res in BLOCK_RESOLUTIONS:
        names.append(f"mask{res}")
    for res in BLOCK_RESOLUTIONS[1:]:
        names.append(f"pt{res}")
    for res in BLOCK_RESOLUTIONS:
        if res > 4:
            names.append(f"w{res}_c0")
        names.append(f"w{res}_c1")
        names.append(f"noise{res}")
        names.append(f"rgbw{res}")
        names.append(f"rgbb{res}")
    return names


_OP_NAMES = _operand_names()


# --------------------------- in-kernel helpers -------------------------------
def _tap(x, ty, tx, r, mask_ref):
    """x sampled at spatial offset (ty, tx) on an r x r map flattened along lanes.
    Out-of-image positions are zeroed with the precomputed boundary-mask row."""
    if ty == 0 and tx == 0:
        return x
    d = ty * r + tx
    c = x.shape[0]
    z = jnp.zeros((c, abs(d)), x.dtype)
    if d > 0:
        sh = jnp.concatenate([x[:, d:], z], axis=1)
    else:
        sh = jnp.concatenate([z, x[:, :d]], axis=1)
    t = (ty + 1) * 3 + (tx + 1)
    return sh * mask_ref[t:t + 1, :]
    # TODO(synk): the shifted copy could use pltpu.roll on resolutions where H*W % 128 == 0.


def _im2col3x3(xs, r, mask_ref):
    """xs: (cin, hw) -> (9*cin, hw); tap-major along sublanes, pad=1 3x3 neighborhood."""
    cols = [_tap(xs, ty, tx, r, mask_ref) for ty in (-1, 0, 1) for tx in (-1, 0, 1)]
    return jnp.concatenate(cols, axis=0)


def _lrelu_clamp(y):
    y = jnp.where(y < 0.0, 0.2 * y, y) * SQRT2
    return jnp.clip(y, -CONV_CLAMP, CONV_CLAMP)


def _mod_conv3x3(x, s, d, w_val, bias, noise, mask_ref, r):
    """Modulated 3x3 conv (demod) + noise + bias + lrelu*sqrt(2) + clamp.  x: (cin, hw)."""
    xcol = _im2col3x3(x * s, r, mask_ref).astype(jnp.bfloat16)        # (9cin, hw)
    y = jnp.dot(w_val, xcol, preferred_element_type=jnp.float32)       # (cout, hw)
    return _lrelu_clamp(y * d + noise + bias)


def _torgb(x, s, w_val, bias):
    """ToRGB: modulated 1x1 conv (no demod) + bias + clamp."""
    y = jnp.dot(w_val, (x * s).astype(jnp.bfloat16),
                preferred_element_type=jnp.float32) + bias
    return jnp.clip(y, -CONV_CLAMP, CONV_CLAMP)


def _up_conv_and_img(x_lo, img_lo, s0, d0, w0_val, bias0, noise0, pt_ref, mask_lo_ref, r_lo):
    """Modulated 3x3 up-conv (stride-2 transposed conv composed with the [1,3,3,1] blur,
    polyphase) plus the skip-image 2x blur-upsample.  The 4 conv phases come from ONE
    stacked (4C, 9C) matmul; the 3 img rows are appended per phase so a single set of
    0/1 scatter matmuls (M = C+3) interleaves both to full resolution."""
    hw_lo = r_lo * r_lo
    xcol = _im2col3x3(x_lo * s0, r_lo, mask_lo_ref).astype(jnp.bfloat16)
    p = jnp.dot(w0_val, xcol, preferred_element_type=jnp.float32)       # (4C, hw_lo)

    img_ph = []
    for py in (0, 1):
        for px in (0, 1):
            acc = None
            for (ty, fa) in _BLUR_TAPS[py]:
                for (tx, fb) in _BLUR_TAPS[px]:
                    t = _tap(img_lo, ty, tx, r_lo, mask_lo_ref) * float(F_UP[fa, fb])
                    acc = t if acc is None else acc + t
            img_ph.append(acc)                                           # (3, hw_lo) each

    y = None
    for ph in range(4):
        blk = jnp.concatenate([p[ph * C:(ph + 1) * C, :], img_ph[ph]],
                              axis=0).astype(jnp.bfloat16)               # (C+3, hw_lo)
        contrib = jnp.dot(blk, pt_ref[ph * hw_lo:(ph + 1) * hw_lo, :],
                          preferred_element_type=jnp.float32)
        y = contrib if y is None else y + contrib                        # (C+3, 4*hw_lo)

    x_hi = _lrelu_clamp(y[:C, :] * d0 + noise0 + bias0)                  # (C, hw_hi)
    img_up = y[C:C + IMG_CHANNELS, :]                                    # (3, hw_hi)
    return x_hi, img_up


# ------------------------------ fused kernel ----------------------------------
def _fused_kernel(*refs):
    ref = dict(zip(_OP_NAMES, refs))
    x_out_ref = refs[len(_OP_NAMES)]
    img_out_ref = refs[len(_OP_NAMES) + 1]

    styles = ref["styles"][0]             # (N_STYLE*C, 1) per-sample
    demods = ref["demods"][0]             # (N_DEMOD*C, 1) per-sample
    biases = ref["biases"][...]           # (N_DEMOD*C, 1) shared

    sc = lambda i: styles[i * C:(i + 1) * C, :]
    dc = lambda i: demods[i * C:(i + 1) * C, :]
    bc = lambda i: biases[i * C:(i + 1) * C, :]

    s_i = 0
    d_i = 0
    x = None
    img = None
    for res in BLOCK_RESOLUTIONS:
        if res == 4:
            x = ref["const4"][...]                                        # (C, 16)
            noise_c1 = ref[f"noise{res}"][0:1, :]
        else:
            x, img = _up_conv_and_img(
                x, img, sc(s_i), dc(d_i), ref[f"w{res}_c0"][...], bc(d_i),
                ref[f"noise{res}"][0:1, :], ref[f"pt{res}"],
                ref[f"mask{res // 2}"], res // 2)
            s_i += 1
            d_i += 1
            noise_c1 = ref[f"noise{res}"][1:2, :]
        x = _mod_conv3x3(x, sc(s_i), dc(d_i), ref[f"w{res}_c1"][...], bc(d_i),
                         noise_c1, ref[f"mask{res}"], res)
        s_i += 1
        d_i += 1
        rgb = _torgb(x, sc(s_i), ref[f"rgbw{res}"][...], ref[f"rgbb{res}"][...])
        s_i += 1
        img = rgb if img is None else img + rgb

    x_out_ref[0] = x
    img_out_ref[0] = img


# --------------------------- one-time weight packing --------------------------
def _build_masks(r):
    """(9, r*r) boundary masks, tap order ty-major then tx (matching _im2col3x3)."""
    hw = r * r
    p = np.arange(hw)
    yi, xi = p // r, p % r
    rows = []
    for ty in (-1, 0, 1):
        for tx in (-1, 0, 1):
            m = ((yi + ty) >= 0) & ((yi + ty) < r) & ((xi + tx) >= 0) & ((xi + tx) < r)
            rows.append(m.astype(np.float32))
    return np.stack(rows, axis=0)


def _phase_scatter_T(r_lo):
    """(4*hw_lo, hw_hi) 0/1 matrix interleaving 4 polyphase outputs into full res."""
    r_hi = 2 * r_lo
    pt = np.zeros((4 * r_lo * r_lo, r_hi * r_hi), np.float32)
    for py in range(2):
        for px in range(2):
            ph = 2 * py + px
            for yy in range(r_lo):
                for xx in range(r_lo):
                    q = ph * r_lo * r_lo + yy * r_lo + xx
                    rr = (2 * yy + py) * r_hi + (2 * xx + px)
                    pt[q, rr] = 1.0
    return pt


def _pack_conv_weight(w):
    """(cout, cin, 3, 3) -> deep-K (cout, 9*cin) bf16, tap-major columns."""
    cout, cin = w.shape[:2]
    return jnp.asarray(np.transpose(w, (0, 2, 3, 1)).reshape(cout, 9 * cin)
                       ).astype(jnp.bfloat16)


def _pack_upconv_weight(w):
    """Compose the stride-2 transposed-conv 3x3 weight (spatially flipped) with the 4x4
    upsampling filter into an equivalent 6x6 correlation kernel, split into 4 polyphase
    3x3 kernels and stack them into one (4*cout, 9*cin) bf16 matrix."""
    w = np.asarray(w, np.float32)
    cout, cin = w.shape[:2]
    f = np.asarray(F_UP, np.float32)
    k6 = np.zeros((cout, cin, 6, 6), np.float32)
    for a in range(3):
        for b in range(3):
            k6[:, :, a:a + 4, b:b + 4] += w[:, :, 2 - a, 2 - b][:, :, None, None] * f
    phases = []
    for py in range(2):
        for px in range(2):
            kp = k6[:, :, 1 - py::2, 1 - px::2]                      # (cout, cin, 3, 3)
            phases.append(np.transpose(kp, (0, 2, 3, 1)).reshape(cout, 9 * cin))
    return jnp.asarray(np.concatenate(phases, axis=0)).astype(jnp.bfloat16)


def prepare_params(params):
    """One-time (outside jit) packing of module parameters into kernel operands plus the
    folded style-affine / demod matrices used by the per-call wrapper matmuls."""
    style_mat = np.zeros((NUM_WS * W_DIM, N_STYLE * C), np.float32)
    style_bias = np.zeros((N_STYLE * C,), np.float32)
    wsq_mat = np.zeros((N_STYLE * C, N_DEMOD * C), np.float32)
    biases = np.zeros((N_DEMOD * C, 1), np.float32)
    ops = {}

    ops["const4"] = jnp.asarray(np.asarray(params[4]["const"], np.float32).reshape(C, 16))
    for res in BLOCK_RESOLUTIONS:
        ops[f"mask{res}"] = jnp.asarray(_build_masks(res))
    for res in BLOCK_RESOLUTIONS[1:]:
        ops[f"pt{res}"] = jnp.asarray(_phase_scatter_T(res // 2)).astype(jnp.bfloat16)

    s_i = 0
    d_i = 0
    w_idx = 0
    for res in BLOCK_RESOLUTIONS:
        p = params[res]
        num_conv = 1 if res == 4 else 2
        conv_names = ["conv1"] if res == 4 else ["conv0", "conv1"]
        noise_rows = []
        for li, lname in enumerate(conv_names):
            lp = p[lname]
            wm = w_idx + li                                           # ws index of this layer
            aw = np.asarray(lp["aff_w"], np.float32) / np.sqrt(W_DIM)
            style_mat[wm * W_DIM:(wm + 1) * W_DIM, s_i * C:(s_i + 1) * C] = aw.T
            style_bias[s_i * C:(s_i + 1) * C] = np.asarray(lp["aff_b"], np.float32)
            w_raw = np.asarray(lp["weight"], np.float32)
            wsq = np.sum(w_raw ** 2, axis=(2, 3))                     # (cout, cin), raw weight
            wsq_mat[s_i * C:(s_i + 1) * C, d_i * C:(d_i + 1) * C] = wsq.T
            biases[d_i * C:(d_i + 1) * C, 0] = np.asarray(lp["bias"], np.float32)
            noise_rows.append(np.asarray(lp["noise_const"], np.float32).reshape(-1)
                              * float(lp["noise_strength"]))
            if lname == "conv0":
                ops[f"w{res}_c0"] = _pack_upconv_weight(w_raw)
            else:
                ops[f"w{res}_c1"] = _pack_conv_weight(w_raw)
            s_i += 1
            d_i += 1
        ops[f"noise{res}"] = jnp.asarray(np.stack(noise_rows, axis=0))  # (num_conv, hw)

        lp = p["torgb"]
        wm = w_idx + num_conv
        wg = 1.0 / np.sqrt(C)                                          # ToRGB weight_gain
        aw = np.asarray(lp["aff_w"], np.float32) / np.sqrt(W_DIM) * wg
        style_mat[wm * W_DIM:(wm + 1) * W_DIM, s_i * C:(s_i + 1) * C] = aw.T
        style_bias[s_i * C:(s_i + 1) * C] = np.asarray(lp["aff_b"], np.float32) * wg
        ops[f"rgbw{res}"] = jnp.asarray(
            np.asarray(lp["weight"], np.float32)[:, :, 0, 0]).astype(jnp.bfloat16)
        ops[f"rgbb{res}"] = jnp.asarray(
            np.asarray(lp["bias"], np.float32).reshape(IMG_CHANNELS, 1))
        s_i += 1
        w_idx += num_conv

    ops["biases"] = jnp.asarray(biases)
    return {"style_mat": jnp.asarray(style_mat),
            "style_bias": jnp.asarray(style_bias),
            "wsq_mat": jnp.asarray(wsq_mat),
            "ops": ops}


# --------------------------------- forward -----------------------------------
def sg2_student_half_forward(prep, ws, x=None, img=None):
    """Mirrors Sg2StudentHalf.forward (first-half configuration; starts at the const
    input).  Returns (x, img) in NCHW like the PyTorch reference."""
    # TODO(synk): second-half path (NonUpSynthesisBlock, externally supplied x/img) and
    # noise_mode='random' are not implemented; this covers the first-half const path.
    del x, img
    assert ws.shape[1] == NUM_WS and ws.shape[2] == W_DIM
    n = ws.shape[0]
    ws = ws.astype(jnp.float32)
    hi = jax.lax.Precision.HIGHEST

    # Per-sample styles & demod coefficients: the only per-call XLA work (two tiny matmuls).
    styles = jnp.dot(ws.reshape(n, NUM_WS * W_DIM), prep["style_mat"],
                     precision=hi) + prep["style_bias"]                 # (n, N_STYLE*C)
    demods = jax.lax.rsqrt(jnp.dot(styles * styles, prep["wsq_mat"],
                                   precision=hi) + 1e-8)                # (n, N_DEMOD*C)

    ops = dict(prep["ops"])
    ops["styles"] = styles[:, :, None]                                   # (n, N_STYLE*C, 1)
    ops["demods"] = demods[:, :, None]                                   # (n, N_DEMOD*C, 1)

    r_last = BLOCK_RESOLUTIONS[-1]
    hw_last = r_last * r_last

    in_specs = []
    for nm in _OP_NAMES:
        a = ops[nm]
        if nm in ("styles", "demods"):
            in_specs.append(pl.BlockSpec((1,) + a.shape[1:], lambda i: (i, 0, 0)))
        else:
            zeros = (0,) * a.ndim
            in_specs.append(pl.BlockSpec(a.shape, lambda i, _z=zeros: _z))

    out_shape = (jax.ShapeDtypeStruct((n, C, hw_last), jnp.float32),
                 jax.ShapeDtypeStruct((n, IMG_CHANNELS, hw_last), jnp.float32))
    out_specs = (pl.BlockSpec((1, C, hw_last), lambda i: (i, 0, 0)),
                 pl.BlockSpec((1, IMG_CHANNELS, hw_last), lambda i: (i, 0, 0)))

    xk, imgk = pl.pallas_call(
        _fused_kernel,
        out_shape=out_shape,
        grid=(n,),
        in_specs=in_specs,
        out_specs=out_specs,
        compiler_params=pltpu.CompilerParams(dimension_semantics=("parallel",)),
        cost_estimate=pl.CostEstimate(flops=36_000_000, transcendentals=0,
                                      bytes_accessed=1_000_000),
    )(*[ops[nm] for nm in _OP_NAMES])

    x_nchw = xk.reshape(n, C, r_last, r_last)            # (N, C, H*W) -> NCHW for free
    img_nchw = imgk.reshape(n, IMG_CHANNELS, r_last, r_last)
    return x_nchw, img_nchw


# ------------------------- pure-XLA reference (for checking) ------------------
def _ref_forward(params, ws):
    hi = jax.lax.Precision.HIGHEST
    ws = ws.astype(jnp.float32)
    n = ws.shape[0]
    f4 = jnp.asarray(F_UP)

    def affine(lp, w, extra_gain=1.0):
        wmat = (lp['aff_w'] * (1.0 / np.sqrt(W_DIM))).T
        return (jnp.dot(w, wmat, precision=hi) + lp['aff_b']) * extra_gain

    def depthwise(x, k, pad, lhs_dilation=(1, 1)):
        c = x.shape[1]
        fk = jnp.tile(k[None, None], (c, 1, 1, 1))
        return jax.lax.conv_general_dilated(
            x, fk, (1, 1), pad, lhs_dilation=lhs_dilation,
            dimension_numbers=('NCHW', 'OIHW', 'NCHW'),
            feature_group_count=c, precision=hi)

    def synth_layer(lp, x, wlat, up):
        s = affine(lp, wlat)
        xm = x * s[:, :, None, None]
        w = lp['weight']
        if up == 1:
            y = jax.lax.conv_general_dilated(
                xm, w, (1, 1), ((1, 1), (1, 1)),
                dimension_numbers=('NCHW', 'OIHW', 'NCHW'), precision=hi)
        else:
            y = jax.lax.conv_general_dilated(
                xm, jnp.flip(w, (2, 3)), (1, 1), ((2, 2), (2, 2)), lhs_dilation=(2, 2),
                dimension_numbers=('NCHW', 'OIHW', 'NCHW'), precision=hi)
            y = depthwise(y, f4, ((1, 1), (1, 1)))
        d = jax.lax.rsqrt(
            jnp.sum((w[None] * s[:, None, :, None, None]) ** 2, axis=(2, 3, 4)) + 1e-8)
        noise = (lp['noise_const'] * lp['noise_strength'])[None, None]
        y = y * d[:, :, None, None] + noise + lp['bias'][None, :, None, None]
        y = jnp.where(y < 0.0, 0.2 * y, y) * SQRT2
        return jnp.clip(y, -CONV_CLAMP, CONV_CLAMP)

    def torgb_layer(lp, x, wlat):
        cin = x.shape[1]
        s = affine(lp, wlat, extra_gain=1.0 / np.sqrt(cin))
        xm = x * s[:, :, None, None]
        y = jax.lax.conv_general_dilated(
            xm, lp['weight'], (1, 1), ((0, 0), (0, 0)),
            dimension_numbers=('NCHW', 'OIHW', 'NCHW'), precision=hi)
        y = y + lp['bias'][None, :, None, None]
        return jnp.clip(y, -CONV_CLAMP, CONV_CLAMP)

    x = None
    img = None
    w_idx = 0
    for res in BLOCK_RESOLUTIONS:
        p = params[res]
        num_conv = 1 if res == 4 else 2
        cur = ws[:, w_idx: w_idx + num_conv + 1]
        w_idx += num_conv
        li = 0
        if res == 4:
            x = jnp.broadcast_to(p['const'][None], (n,) + p['const'].shape)
        else:
            x = synth_layer(p['conv0'], x, cur[:, li], up=2)
            li += 1
        x = synth_layer(p['conv1'], x, cur[:, li], up=1)
        li += 1
        if img is not None:
            img = depthwise(img, f4, ((2, 2), (2, 2)), lhs_dilation=(2, 2))
        y = torgb_layer(p['torgb'], x, cur[:, li])
        img = y if img is None else img + y
    return x, img


# --------------------------- parameter initialization ------------------------
def _init_layer(key, in_ch, out_ch, res):
    k = jax.random.split(key, 4)
    return {
        'aff_w': jax.random.normal(k[0], (in_ch, W_DIM), jnp.float32),
        'aff_b': jnp.ones((in_ch,), jnp.float32),                    # bias_init=1
        'weight': jax.random.normal(k[1], (out_ch, in_ch, 3, 3), jnp.float32),
        'bias': 0.1 * jax.random.normal(k[2], (out_ch,), jnp.float32),
        'noise_const': jax.random.normal(k[3], (res, res), jnp.float32),
        # nonzero so the noise path is actually exercised (module init is 0 -> no-op)
        'noise_strength': jnp.asarray(0.1, jnp.float32),
    }


def init_params(key):
    params = {}
    for res in BLOCK_RESOLUTIONS:
        cin = CHANNELS[res // 2] if res > 4 else 0
        cout = CHANNELS[res]
        ks = jax.random.split(jax.random.fold_in(key, res), 6)
        p = {}
        if res == 4:
            p['const'] = jax.random.normal(ks[0], (cout, res, res), jnp.float32)
        else:
            p['conv0'] = _init_layer(ks[1], cin, cout, res)
        p['conv1'] = _init_layer(ks[2], cout, cout, res)
        p['torgb'] = {
            'aff_w': jax.random.normal(ks[3], (cout, W_DIM), jnp.float32),
            'aff_b': jnp.ones((cout,), jnp.float32),
            'weight': jax.random.normal(ks[4], (IMG_CHANNELS, cout, 1, 1), jnp.float32),
            'bias': 0.1 * jax.random.normal(ks[5], (IMG_CHANNELS,), jnp.float32),
        }
        params[res] = p
    return params


# ------------------------------------ main -----------------------------------
if __name__ == "__main__":
    key = jax.random.PRNGKey(0)
    params = init_params(key)
    ws = jax.random.normal(jax.random.fold_in(key, 123),
                           (N_BATCH, NUM_WS, W_DIM), jnp.float32)

    prep = prepare_params(params)                  # one-time packing, outside jit
    fwd = jax.jit(sg2_student_half_forward)
    x_out, img_out = fwd(prep, ws)
    jax.block_until_ready((x_out, img_out))

    assert x_out.shape == (N_BATCH, CHANNELS[STUDENT_IMSIZE], STUDENT_IMSIZE, STUDENT_IMSIZE)
    assert img_out.shape == (N_BATCH, IMG_CHANNELS, STUDENT_IMSIZE, STUDENT_IMSIZE)
    assert bool(jnp.all(jnp.isfinite(x_out))) and bool(jnp.all(jnp.isfinite(img_out)))

    # correctness vs. a straightforward XLA (lax.conv, f32) implementation of the module
    x_ref, img_ref = jax.jit(_ref_forward)(params, ws)
    jax.block_until_ready((x_ref, img_ref))

    def _close(a, b, tol=5e-2):
        err = float(jnp.max(jnp.abs(a - b)))
        scale = float(jnp.max(jnp.abs(b)))
        return err <= tol * max(scale, 1.0)

    assert _close(x_out, x_ref), "feature output mismatch vs reference"
    assert _close(img_out, img_ref), "image output mismatch vs reference"
    print("KERNEL_OK")
</pallas_src>

<mosaic_0001>
module attributes {stable_mosaic.version = 11 : i64} {
  func.func @_fused_kernel(%arg0: i32, %arg1: memref<1x256x1xf32, #tpu.memory_space<vmem>>, %arg2: memref<1x160x1xf32, #tpu.memory_space<vmem>>, %arg3: memref<160x1xf32, #tpu.memory_space<vmem>>, %arg4: memref<32x16xf32, #tpu.memory_space<vmem>>, %arg5: memref<9x16xf32, #tpu.memory_space<vmem>>, %arg6: memref<9x64xf32, #tpu.memory_space<vmem>>, %arg7: memref<9x256xf32, #tpu.memory_space<vmem>>, %arg8: memref<64x64xbf16, #tpu.memory_space<vmem>>, %arg9: memref<256x256xbf16, #tpu.memory_space<vmem>>, %arg10: memref<32x288xbf16, #tpu.memory_space<vmem>>, %arg11: memref<1x16xf32, #tpu.memory_space<vmem>>, %arg12: memref<3x32xbf16, #tpu.memory_space<vmem>>, %arg13: memref<3x1xf32, #tpu.memory_space<vmem>>, %arg14: memref<128x288xbf16, #tpu.memory_space<vmem>>, %arg15: memref<32x288xbf16, #tpu.memory_space<vmem>>, %arg16: memref<2x64xf32, #tpu.memory_space<vmem>>, %arg17: memref<3x32xbf16, #tpu.memory_space<vmem>>, %arg18: memref<3x1xf32, #tpu.memory_space<vmem>>, %arg19: memref<128x288xbf16, #tpu.memory_space<vmem>>, %arg20: memref<32x288xbf16, #tpu.memory_space<vmem>>, %arg21: memref<2x256xf32, #tpu.memory_space<vmem>>, %arg22: memref<3x32xbf16, #tpu.memory_space<vmem>>, %arg23: memref<3x1xf32, #tpu.memory_space<vmem>>, %arg24: memref<1x32x256xf32, #tpu.memory_space<vmem>>, %arg25: memref<1x3x256xf32, #tpu.memory_space<vmem>>) attributes {dimension_semantics = [#tpu.dimension_semantics<parallel>], iteration_bounds = array<i64: 2>, scalar_prefetch = 0 : i64, scratch_operands = 0 : i64, tpu.core_type = #tpu.core_type<tc>, window_params = [{transform_indices = @transform_0, window_bounds = array<i64: 1, 256, 1>}, {transform_indices = @transform_1, window_bounds = array<i64: 1, 160, 1>}, {pipeline_mode = #tpu.pipeline_mode<synchronous>, transform_indices = @transform_2, window_bounds = array<i64: 160, 1>}, {pipeline_mode = #tpu.pipeline_mode<synchronous>, transform_indices = @transform_3, window_bounds = array<i64: 32, 16>}, {pipeline_mode = #tpu.pipeline_mode<synchronous>, transform_indices = @transform_4, window_bounds = array<i64: 9, 16>}, {pipeline_mode = #tpu.pipeline_mode<synchronous>, transform_indices = @transform_5, window_bounds = array<i64: 9, 64>}, {pipeline_mode = #tpu.pipeline_mode<synchronous>, transform_indices = @transform_6, window_bounds = array<i64: 9, 256>}, {pipeline_mode = #tpu.pipeline_mode<synchronous>, transform_indices = @transform_7, window_bounds = array<i64: 64, 64>}, {pipeline_mode = #tpu.pipeline_mode<synchronous>, transform_indices = @transform_8, window_bounds = array<i64: 256, 256>}, {pipeline_mode = #tpu.pipeline_mode<synchronous>, transform_indices = @transform_9, window_bounds = array<i64: 32, 288>}, {pipeline_mode = #tpu.pipeline_mode<synchronous>, transform_indices = @transform_10, window_bounds = array<i64: 1, 16>}, {pipeline_mode = #tpu.pipeline_mode<synchronous>, transform_indices = @transform_11, window_bounds = array<i64: 3, 32>}, {pipeline_mode = #tpu.pipeline_mode<synchronous>, transform_indices = @transform_12, window_bounds = array<i64: 3, 1>}, {pipeline_mode = #tpu.pipeline_mode<synchronous>, transform_indices = @transform_13, window_bounds = array<i64: 128, 288>}, {pipeline_mode = #tpu.pipeline_mode<synchronous>, transform_indices = @transform_14, window_bounds = array<i64: 32, 288>}, {pipeline_mode = #tpu.pipeline_mode<synchronous>, transform_indices = @transform_15, window_bounds = array<i64: 2, 64>}, {pipeline_mode = #tpu.pipeline_mode<synchronous>, transform_indices = @transform_16, window_bounds = array<i64: 3, 32>}, {pipeline_mode = #tpu.pipeline_mode<synchronous>, transform_indices = @transform_17, window_bounds = array<i64: 3, 1>}, {pipeline_mode = #tpu.pipeline_mode<synchronous>, transform_indices = @transform_18, window_bounds = array<i64: 128, 288>}, {pipeline_mode = #tpu.pipeline_mode<synchronous>, transform_indices = @transform_19, window_bounds = array<i64: 32, 288>}, {pipeline_mode = #tpu.pipeline_mode<synchronous>, transform_indices = @transform_20, window_bounds = array<i64: 2, 256>}, {pipeline_mode = #tpu.pipeline_mode<synchronous>, transform_indices = @transform_21, window_bounds = array<i64: 3, 32>}, {pipeline_mode = #tpu.pipeline_mode<synchronous>, transform_indices = @transform_22, window_bounds = array<i64: 3, 1>}, {transform_indices = @transform_23, window_bounds = array<i64: 1, 32, 256>}, {transform_indices = @transform_24, window_bounds = array<i64: 1, 3, 256>}]} {
    %c0 = arith.constant 0 : index
    %c0_0 = arith.constant 0 : index
    %c0_1 = arith.constant 0 : index
    %0 = vector.load %arg1[%c0, %c0_0, %c0_1] : memref<1x256x1xf32, #tpu.memory_space<vmem>>, vector<1x256x1xf32>
    %1 = vector.shape_cast %0 : vector<1x256x1xf32> to vector<256x1xf32>
    %c0_2 = arith.constant 0 : index
    %c0_3 = arith.constant 0 : index
    %c0_4 = arith.constant 0 : index
    %2 = vector.load %arg2[%c0_2, %c0_3, %c0_4] : memref<1x160x1xf32, #tpu.memory_space<vmem>>, vector<1x160x1xf32>
    %3 = vector.shape_cast %2 : vector<1x160x1xf32> to vector<160x1xf32>
    %c0_5 = arith.constant 0 : index
    %c0_6 = arith.constant 0 : index
    %4 = vector.load %arg3[%c0_5, %c0_6] : memref<160x1xf32, #tpu.memory_space<vmem>>, vector<160x1xf32>
    %c0_7 = arith.constant 0 : index
    %c0_8 = arith.constant 0 : index
    %5 = vector.load %arg4[%c0_7, %c0_8] : memref<32x16xf32, #tpu.memory_space<vmem>>, vector<32x16xf32>
    %c0_9 = arith.constant 0 : index
    %c0_10 = arith.constant 0 : index
    %6 = vector.load %arg11[%c0_9, %c0_10] : memref<1x16xf32, #tpu.memory_space<vmem>>, vector<1x16xf32>
    %7 = vector.extract_strided_slice %1 {offsets = [0, 0], sizes = [32, 1], strides = [1, 1]} : vector<256x1xf32> to vector<32x1xf32>
    %8 = vector.extract_strided_slice %3 {offsets = [0, 0], sizes = [32, 1], strides = [1, 1]} : vector<160x1xf32> to vector<32x1xf32>
    %c0_11 = arith.constant 0 : index
    %c0_12 = arith.constant 0 : index
    %9 = vector.load %arg10[%c0_11, %c0_12] : memref<32x288xbf16, #tpu.memory_space<vmem>>, vector<32x288xbf16>
    %10 = vector.extract_strided_slice %4 {offsets = [0, 0], sizes = [32, 1], strides = [1, 1]} : vector<160x1xf32> to vector<32x1xf32>
    %11 = vector.broadcast %7 : vector<32x1xf32> to vector<32x16xf32>
    %12 = arith.mulf %5, %11 : vector<32x16xf32>
    %cst = arith.constant 0.000000e+00 : f32
    %13 = vector.broadcast %cst : f32 to vector<32x5xf32>
    %14 = vector.extract_strided_slice %12 {offsets = [0, 0], sizes = [32, 11], strides = [1, 1]} : vector<32x16xf32> to vector<32x11xf32>
    %15 = tpu.concatenate %13, %14 in 1 : vector<32x5xf32>, vector<32x11xf32> -> vector<32x16xf32>
    %c0_13 = arith.constant 0 : index
    %c0_14 = arith.constant 0 : index
    %16 = vector.load %arg5[%c0_13, %c0_14] : memref<9x16xf32, #tpu.memory_space<vmem>>, vector<1x16xf32>
    %17 = vector.broadcast %16 : vector<1x16xf32> to vector<32x16xf32>
    %18 = arith.mulf %15, %17 : vector<32x16xf32>
    %cst_15 = arith.constant 0.000000e+00 : f32
    %19 = vector.broadcast %cst_15 : f32 to vector<32x4xf32>
    %20 = vector.extract_strided_slice %12 {offsets = [0, 0], sizes = [32, 12], strides = [1, 1]} : vector<32x16xf32> to vector<32x12xf32>
    %21 = tpu.concatenate %19, %20 in 1 : vector<32x4xf32>, vector<32x12xf32> -> vector<32x16xf32>
    %c1 = arith.constant 1 : index
    %c0_16 = arith.constant 0 : index
    %22 = vector.load %arg5[%c1, %c0_16] : memref<9x16xf32, #tpu.memory_space<vmem>>, vector<1x16xf32>
    %23 = vector.broadcast %22 : vector<1x16xf32> to vector<32x16xf32>
    %24 = arith.mulf %21, %23 : vector<32x16xf32>
    %cst_17 = arith.constant 0.000000e+00 : f32
    %25 = vector.broadcast %cst_17 : f32 to vector<32x3xf32>
    %26 = vector.extract_strided_slice %12 {offsets = [0, 0], sizes = [32, 13], strides = [1, 1]} : vector<32x16xf32> to vector<32x13xf32>
    %27 = tpu.concatenate %25, %26 in 1 : vector<32x3xf32>, vector<32x13xf32> -> vector<32x16xf32>
    %c2 = arith.constant 2 : index
    %c0_18 = arith.constant 0 : index
    %28 = vector.load %arg5[%c2, %c0_18] : memref<9x16xf32, #tpu.memory_space<vmem>>, vector<1x16xf32>
    %29 = vector.broadcast %28 : vector<1x16xf32> to vector<32x16xf32>
    %30 = arith.mulf %27, %29 : vector<32x16xf32>
    %cst_19 = arith.constant 0.000000e+00 : f32
    %31 = vector.broadcast %cst_19 : f32 to vector<32x1xf32>
    %32 = vector.extract_strided_slice %12 {offsets = [0, 0], sizes = [32, 15], strides = [1, 1]} : vector<32x16xf32> to vector<32x15xf32>
    %33 = tpu.concatenate %31, %32 in 1 : vector<32x1xf32>, vector<32x15xf32> -> vector<32x16xf32>
    %c3 = arith.constant 3 : index
    %c0_20 = arith.constant 0 : index
    %34 = vector.load %arg5[%c3, %c0_20] : memref<9x16xf32, #tpu.memory_space<vmem>>, vector<1x16xf32>
    %35 = vector.broadcast %34 : vector<1x16xf32> to vector<32x16xf32>
    %36 = arith.mulf %33, %35 : vector<32x16xf32>
    %cst_21 = arith.constant 0.000000e+00 : f32
    %37 = vector.broadcast %cst_21 : f32 to vector<32x1xf32>
    %38 = vector.extract_strided_slice %12 {offsets = [0, 1], sizes = [32, 15], strides = [1, 1]} : vector<32x16xf32> to vector<32x15xf32>
    %39 = tpu.concatenate %38, %37 in 1 : vector<32x15xf32>, vector<32x1xf32> -> vector<32x16xf32>
    %c5 = arith.constant 5 : index
    %c0_22 = arith.constant 0 : index
    %40 = vector.load %arg5[%c5, %c0_22] : memref<9x16xf32, #tpu.memory_space<vmem>>, vector<1x16xf32>
    %41 = vector.broadcast %40 : vector<1x16xf32> to vector<32x16xf32>
    %42 = arith.mulf %39, %41 : vector<32x16xf32>
    %cst_23 = arith.constant 0.000000e+00 : f32
    %43 = vector.broadcast %cst_23 : f32 to vector<32x3xf32>
    %44 = vector.extract_strided_slice %12 {offsets = [0, 3], sizes = [32, 13], strides = [1, 1]} : vector<32x16xf32> to vector<32x13xf32>
    %45 = tpu.concatenate %44, %43 in 1 : vector<32x13xf32>, vector<32x3xf32> -> vector<32x16xf32>
    %c6 = arith.constant 6 : index
    %c0_24 = arith.constant 0 : index
    %46 = vector.load %arg5[%c6, %c0_24] : memref<9x16xf32, #tpu.memory_space<vmem>>, vector<1x16xf32>
    %47 = vector.broadcast %46 : vector<1x16xf32> to vector<32x16xf32>
    %48 = arith.mulf %45, %47 : vector<32x16xf32>
    %cst_25 = arith.constant 0.000000e+00 : f32
    %49 = vector.broadcast %cst_25 : f32 to vector<32x4xf32>
    %50 = vector.extract_strided_slice %12 {offsets = [0, 4], sizes = [32, 12], strides = [1, 1]} : vector<32x16xf32> to vector<32x12xf32>
    %51 = tpu.concatenate %50, %49 in 1 : vector<32x12xf32>, vector<32x4xf32> -> vector<32x16xf32>
    %c7 = arith.constant 7 : index
    %c0_26 = arith.constant 0 : index
    %52 = vector.load %arg5[%c7, %c0_26] : memref<9x16xf32, #tpu.memory_space<vmem>>, vector<1x16xf32>
    %53 = vector.broadcast %52 : vector<1x16xf32> to vector<32x16xf32>
    %54 = arith.mulf %51, %53 : vector<32x16xf32>
    %cst_27 = arith.constant 0.000000e+00 : f32
    %55 = vector.broadcast %cst_27 : f32 to vector<32x5xf32>
    %56 = vector.extract_strided_slice %12 {offsets = [0, 5], sizes = [32, 11], strides = [1, 1]} : vector<32x16xf32> to vector<32x11xf32>
    %57 = tpu.concatenate %56, %55 in 1 : vector<32x11xf32>, vector<32x5xf32> -> vector<32x16xf32>
    %c8 = arith.constant 8 : index
    %c0_28 = arith.constant 0 : index
    %58 = vector.load %arg5[%c8, %c0_28] : memref<9x16xf32, #tpu.memory_space<vmem>>, vector<1x16xf32>
    %59 = vector.broadcast %58 : vector<1x16xf32> to vector<32x16xf32>
    %60 = arith.mulf %57, %59 : vector<32x16xf32>
    %61 = tpu.concatenate %18, %24, %30, %36, %12, %42, %48, %54, %60 in 0 : vector<32x16xf32>, vector<32x16xf32>, vector<32x16xf32>, vector<32x16xf32>, vector<32x16xf32>, vector<32x16xf32>, vector<32x16xf32>, vector<32x16xf32>, vector<32x16xf32> -> vector<288x16xf32>
    %62 = arith.truncf %61 : vector<288x16xf32> to vector<288x16xbf16>
    %cst_29 = arith.constant dense<0.000000e+00> : vector<32x16xf32>
    %63 = tpu.matmul %9, %62, %cst_29 {dimension_numbers = #tpu.dot_dimension_numbers<[1], [0], [0], [1], [0, 0, 1, 1], [], []>} : vector<32x288xbf16>, vector<288x16xbf16>, vector<32x16xf32> -> vector<32x16xf32>
    %64 = vector.broadcast %8 : vector<32x1xf32> to vector<32x16xf32>
    %65 = arith.mulf %63, %64 : vector<32x16xf32>
    %66 = vector.broadcast %6 : vector<1x16xf32> to vector<32x16xf32>
    %67 = arith.addf %65, %66 : vector<32x16xf32>
    %68 = vector.broadcast %10 : vector<32x1xf32> to vector<32x16xf32>
    %69 = arith.addf %67, %68 : vector<32x16xf32>
    %cst_30 = arith.constant 0.000000e+00 : f32
    %70 = vector.broadcast %cst_30 : f32 to vector<32x16xf32>
    %71 = arith.cmpf olt, %69, %70 : vector<32x16xf32>
    %cst_31 = arith.constant 2.000000e-01 : f32
    %72 = vector.broadcast %cst_31 : f32 to vector<32x16xf32>
    %73 = arith.mulf %72, %69 : vector<32x16xf32>
    %74 = arith.select %71, %73, %69 : vector<32x16xi1>, vector<32x16xf32>
    %cst_32 = arith.constant 1.41421354 : f32
    %75 = vector.broadcast %cst_32 : f32 to vector<32x16xf32>
    %76 = arith.mulf %74, %75 : vector<32x16xf32>
    %cst_33 = arith.constant -2.560000e+02 : f32
    %cst_34 = arith.constant 2.560000e+02 : f32
    %77 = vector.broadcast %cst_33 : f32 to vector<32x16xf32>
    %78 = arith.maximumf %77, %76 : vector<32x16xf32>
    %79 = vector.broadcast %cst_34 : f32 to vector<32x16xf32>
    %80 = arith.minimumf %79, %78 : vector<32x16xf32>
    %81 = vector.extract_strided_slice %1 {offsets = [32, 0], sizes = [32, 1], strides = [1, 1]} : vector<256x1xf32> to vector<32x1xf32>
    %c0_35 = arith.constant 0 : index
    %c0_36 = arith.constant 0 : index
    %82 = vector.load %arg12[%c0_35, %c0_36] : memref<3x32xbf16, #tpu.memory_space<vmem>>, vector<3x32xbf16>
    %c0_37 = arith.constant 0 : index
    %c0_38 = arith.constant 0 : index
    %83 = vector.load %arg13[%c0_37, %c0_38] : memref<3x1xf32, #tpu.memory_space<vmem>>, vector<3x1xf32>
    %84 = vector.broadcast %81 : vector<32x1xf32> to vector<32x16xf32>
    %85 = arith.mulf %80, %84 : vector<32x16xf32>
    %86 = arith.truncf %85 : vector<32x16xf32> to vector<32x16xbf16>
    %cst_39 = arith.constant dense<0.000000e+00> : vector<3x16xf32>
    %87 = tpu.matmul %82, %86, %cst_39 {dimension_numbers = #tpu.dot_dimension_numbers<[1], [0], [0], [1], [0, 0, 1, 1], [], []>} : vector<3x32xbf16>, vector<32x16xbf16>, vector<3x16xf32> -> vector<3x16xf32>
    %88 = vector.broadcast %83 : vector<3x1xf32> to vector<3x16xf32>
    %89 = arith.addf %87, %88 : vector<3x16xf32>
    %cst_40 = arith.constant -2.560000e+02 : f32
    %cst_41 = arith.constant 2.560000e+02 : f32
    %90 = vector.broadcast %cst_40 : f32 to vector<3x16xf32>
    %91 = arith.maximumf %90, %89 : vector<3x16xf32>
    %92 = vector.broadcast %cst_41 : f32 to vector<3x16xf32>
    %93 = arith.minimumf %92, %91 : vector<3x16xf32>
    %94 = vector.extract_strided_slice %1 {offsets = [64, 0], sizes = [32, 1], strides = [1, 1]} : vector<256x1xf32> to vector<32x1xf32>
    %95 = vector.extract_strided_slice %3 {offsets = [32, 0], sizes = [32, 1], strides = [1, 1]} : vector<160x1xf32> to vector<32x1xf32>
    %c0_42 = arith.constant 0 : index
    %c0_43 = arith.constant 0 : index
    %96 = vector.load %arg14[%c0_42, %c0_43] : memref<128x288xbf16, #tpu.memory_space<vmem>>, vector<128x288xbf16>
    %97 = vector.extract_strided_slice %4 {offsets = [32, 0], sizes = [32, 1], strides = [1, 1]} : vector<160x1xf32> to vector<32x1xf32>
    %c0_44 = arith.constant 0 : index
    %c0_45 = arith.constant 0 : index
    %98 = vector.load %arg16[%c0_44, %c0_45] : memref<2x64xf32, #tpu.memory_space<vmem>>, vector<1x64xf32>
    %99 = vector.broadcast %94 : vector<32x1xf32> to vector<32x16xf32>
    %100 = arith.mulf %80, %99 : vector<32x16xf32>
    %cst_46 = arith.constant 0.000000e+00 : f32
    %101 = vector.broadcast %cst_46 : f32 to vector<32x5xf32>
    %102 = vector.extract_strided_slice %100 {offsets = [0, 0], sizes = [32, 11], strides = [1, 1]} : vector<32x16xf32> to vector<32x11xf32>
    %103 = tpu.concatenate %101, %102 in 1 : vector<32x5xf32>, vector<32x11xf32> -> vector<32x16xf32>
    %c0_47 = arith.constant 0 : index
    %c0_48 = arith.constant 0 : index
    %104 = vector.load %arg5[%c0_47, %c0_48] : memref<9x16xf32, #tpu.memory_space<vmem>>, vector<1x16xf32>
    %105 = vector.broadcast %104 : vector<1x16xf32> to vector<32x16xf32>
    %106 = arith.mulf %103, %105 : vector<32x16xf32>
    %cst_49 = arith.constant 0.000000e+00 : f32
    %107 = vector.broadcast %cst_49 : f32 to vector<32x4xf32>
    %108 = vector.extract_strided_slice %100 {offsets = [0, 0], sizes = [32, 12], strides = [1, 1]} : vector<32x16xf32> to vector<32x12xf32>
    %109 = tpu.concatenate %107, %108 in 1 : vector<32x4xf32>, vector<32x12xf32> -> vector<32x16xf32>
    %c1_50 = arith.constant 1 : index
    %c0_51 = arith.constant 0 : index
    %110 = vector.load %arg5[%c1_50, %c0_51] : memref<9x16xf32, #tpu.memory_space<vmem>>, vector<1x16xf32>
    %111 = vector.broadcast %110 : vector<1x16xf32> to vector<32x16xf32>
    %112 = arith.mulf %109, %111 : vector<32x16xf32>
    %cst_52 = arith.constant 0.000000e+00 : f32
    %113 = vector.broadcast %cst_52 : f32 to vector<32x3xf32>
    %114 = vector.extract_strided_slice %100 {offsets = [0, 0], sizes = [32, 13], strides = [1, 1]} : vector<32x16xf32> to vector<32x13xf32>
    %115 = tpu.concatenate %113, %114 in 1 : vector<32x3xf32>, vector<32x13xf32> -> vector<32x16xf32>
    %c2_53 = arith.constant 2 : index
    %c0_54 = arith.constant 0 : index
    %116 = vector.load %arg5[%c2_53, %c0_54] : memref<9x16xf32, #tpu.memory_space<vmem>>, vector<1x16xf32>
    %117 = vector.broadcast %116 : vector<1x16xf32> to vector<32x16xf32>
    %118 = arith.mulf %115, %117 : vector<32x16xf32>
    %cst_55 = arith.constant 0.000000e+00 : f32
    %119 = vector.broadcast %cst_55 : f32 to vector<32x1xf32>
    %120 = vector.extract_strided_slice %100 {offsets = [0, 0], sizes = [32, 15], strides = [1, 1]} : vector<32x16xf32> to vector<32x15xf32>
    %121 = tpu.concatenate %119, %120 in 1 : vector<32x1xf32>, vector<32x15xf32> -> vector<32x16xf32>
    %c3_56 = arith.constant 3 : index
    %c0_57 = arith.constant 0 : index
    %122 = vector.load %arg5[%c3_56, %c0_57] : memref<9x16xf32, #tpu.memory_space<vmem>>, vector<1x16xf32>
    %123 = vector.broadcast %122 : vector<1x16xf32> to vector<32x16xf32>
    %124 = arith.mulf %121, %123 : vector<32x16xf32>
    %cst_58 = arith.constant 0.000000e+00 : f32
    %125 = vector.broadcast %cst_58 : f32 to vector<32x1xf32>
    %126 = vector.extract_strided_slice %100 {offsets = [0, 1], sizes = [32, 15], strides = [1, 1]} : vector<32x16xf32> to vector<32x15xf32>
    %127 = tpu.concatenate %126, %125 in 1 : vector<32x15xf32>, vector<32x1xf32> -> vector<32x16xf32>
    %c5_59 = arith.constant 5 : index
    %c0_60 = arith.constant 0 : index
    %128 = vector.load %arg5[%c5_59, %c0_60] : memref<9x16xf32, #tpu.memory_space<vmem>>, vector<1x16xf32>
    %129 = vector.broadcast %128 : vector<1x16xf32> to vector<32x16xf32>
    %130 = arith.mulf %127, %129 : vector<32x16xf32>
    %cst_61 = arith.constant 0.000000e+00 : f32
    %131 = vector.broadcast %cst_61 : f32 to vector<32x3xf32>
    %132 = vector.extract_strided_slice %100 {offsets = [0, 3], sizes = [32, 13], strides = [1, 1]} : vector<32x16xf32> to vector<32x13xf32>
    %133 = tpu.concatenate %132, %131 in 1 : vector<32x13xf32>, vector<32x3xf32> -> vector<32x16xf32>
    %c6_62 = arith.constant 6 : index
    %c0_63 = arith.constant 0 : index
    %134 = vector.load %arg5[%c6_62, %c0_63] : memref<9x16xf32, #tpu.memory_space<vmem>>, vector<1x16xf32>
    %135 = vector.broadcast %134 : vector<1x16xf32> to vector<32x16xf32>
    %136 = arith.mulf %133, %135 : vector<32x16xf32>
    %cst_64 = arith.constant 0.000000e+00 : f32
    %137 = vector.broadcast %cst_64 : f32 to vector<32x4xf32>
    %138 = vector.extract_strided_slice %100 {offsets = [0, 4], sizes = [32, 12], strides = [1, 1]} : vector<32x16xf32> to vector<32x12xf32>
    %139 = tpu.concatenate %138, %137 in 1 : vector<32x12xf32>, vector<32x4xf32> -> vector<32x16xf32>
    %c7_65 = arith.constant 7 : index
    %c0_66 = arith.constant 0 : index
    %140 = vector.load %arg5[%c7_65, %c0_66] : memref<9x16xf32, #tpu.memory_space<vmem>>, vector<1x16xf32>
    %141 = vector.broadcast %140 : vector<1x16xf32> to vector<32x16xf32>
    %142 = arith.mulf %139, %141 : vector<32x16xf32>
    %cst_67 = arith.constant 0.000000e+00 : f32
    %143 = vector.broadcast %cst_67 : f32 to vector<32x5xf32>
    %144 = vector.extract_strided_slice %100 {offsets = [0, 5], sizes = [32, 11], strides = [1, 1]} : vector<32x16xf32> to vector<32x11xf32>
    %145 = tpu.concatenate %144, %143 in 1 : vector<32x11xf32>, vector<32x5xf32> -> vector<32x16xf32>
    %c8_68 = arith.constant 8 : index
    %c0_69 = arith.constant 0 : index
    %146 = vector.load %arg5[%c8_68, %c0_69] : memref<9x16xf32, #tpu.memory_space<vmem>>, vector<1x16xf32>
    %147 = vector.broadcast %146 : vector<1x16xf32> to vector<32x16xf32>
    %148 = arith.mulf %145, %147 : vector<32x16xf32>
    %149 = tpu.concatenate %106, %112, %118, %124, %100, %130, %136, %142, %148 in 0 : vector<32x16xf32>, vector<32x16xf32>, vector<32x16xf32>, vector<32x16xf32>, vector<32x16xf32>, vector<32x16xf32>, vector<32x16xf32>, vector<32x16xf32>, vector<32x16xf32> -> vector<288x16xf32>
    %150 = arith.truncf %149 : vector<288x16xf32> to vector<288x16xbf16>
    %cst_70 = arith.constant dense<0.000000e+00> : vector<128x16xf32>
    %151 = tpu.matmul %96, %150, %cst_70 {dimension_numbers = #tpu.dot_dimension_numbers<[1], [0], [0], [1], [0, 0, 1, 1], [], []>} : vector<128x288xbf16>, vector<288x16xbf16>, vector<128x16xf32> -> vector<128x16xf32>
    %cst_71 = arith.constant 0.000000e+00 : f32
    %152 = vector.broadcast %cst_71 : f32 to vector<3x5xf32>
    %153 = vector.extract_strided_slice %93 {offsets = [0, 0], sizes = [3, 11], strides = [1, 1]} : vector<3x16xf32> to vector<3x11xf32>
    %154 = tpu.concatenate %152, %153 in 1 : vector<3x5xf32>, vector<3x11xf32> -> vector<3x16xf32>
    %c0_72 = arith.constant 0 : index
    %c0_73 = arith.constant 0 : index
    %155 = vector.load %arg5[%c0_72, %c0_73] : memref<9x16xf32, #tpu.memory_space<vmem>>, vector<1x16xf32>
    %156 = vector.broadcast %155 : vector<1x16xf32> to vector<3x16xf32>
    %157 = arith.mulf %154, %156 : vector<3x16xf32>
    %cst_74 = arith.constant 6.250000e-02 : f32
    %158 = vector.broadcast %cst_74 : f32 to vector<3x16xf32>
    %159 = arith.mulf %157, %158 : vector<3x16xf32>
    %cst_75 = arith.constant 0.000000e+00 : f32
    %160 = vector.broadcast %cst_75 : f32 to vector<3x4xf32>
    %161 = vector.extract_strided_slice %93 {offsets = [0, 0], sizes = [3, 12], strides = [1, 1]} : vector<3x16xf32> to vector<3x12xf32>
    %162 = tpu.concatenate %160, %161 in 1 : vector<3x4xf32>, vector<3x12xf32> -> vector<3x16xf32>
    %c1_76 = arith.constant 1 : index
    %c0_77 = arith.constant 0 : index
    %163 = vector.load %arg5[%c1_76, %c0_77] : memref<9x16xf32, #tpu.memory_space<vmem>>, vector<1x16xf32>
    %164 = vector.broadcast %163 : vector<1x16xf32> to vector<3x16xf32>
    %165 = arith.mulf %162, %164 : vector<3x16xf32>
    %cst_78 = arith.constant 1.875000e-01 : f32
    %166 = vector.broadcast %cst_78 : f32 to vector<3x16xf32>
    %167 = arith.mulf %165, %166 : vector<3x16xf32>
    %168 = arith.addf %159, %167 : vector<3x16xf32>
    %cst_79 = arith.constant 0.000000e+00 : f32
    %169 = vector.broadcast %cst_79 : f32 to vector<3x1xf32>
    %170 = vector.extract_strided_slice %93 {offsets = [0, 0], sizes = [3, 15], strides = [1, 1]} : vector<3x16xf32> to vector<3x15xf32>
    %171 = tpu.concatenate %169, %170 in 1 : vector<3x1xf32>, vector<3x15xf32> -> vector<3x16xf32>
    %c3_80 = arith.constant 3 : index
    %c0_81 = arith.constant 0 : index
    %172 = vector.load %arg5[%c3_80, %c0_81] : memref<9x16xf32, #tpu.memory_space<vmem>>, vector<1x16xf32>
    %173 = vector.broadcast %172 : vector<1x16xf32> to vector<3x16xf32>
    %174 = arith.mulf %171, %173 : vector<3x16xf32>
    %cst_82 = arith.constant 1.875000e-01 : f32
    %175 = vector.broadcast %cst_82 : f32 to vector<3x16xf32>
    %176 = arith.mulf %174, %175 : vector<3x16xf32>
    %177 = arith.addf %168, %176 : vector<3x16xf32>
    %cst_83 = arith.constant 5.625000e-01 : f32
    %178 = vector.broadcast %cst_83 : f32 to vector<3x16xf32>
    %179 = arith.mulf %93, %178 : vector<3x16xf32>
    %180 = arith.addf %177, %179 : vector<3x16xf32>
    %cst_84 = arith.constant 0.000000e+00 : f32
    %181 = vector.broadcast %cst_84 : f32 to vector<3x4xf32>
    %182 = vector.extract_strided_slice %93 {offsets = [0, 0], sizes = [3, 12], strides = [1, 1]} : vector<3x16xf32> to vector<3x12xf32>
    %183 = tpu.concatenate %181, %182 in 1 : vector<3x4xf32>, vector<3x12xf32> -> vector<3x16xf32>
    %c1_85 = arith.constant 1 : index
    %c0_86 = arith.constant 0 : index
    %184 = vector.load %arg5[%c1_85, %c0_86] : memref<9x16xf32, #tpu.memory_space<vmem>>, vector<1x16xf32>
    %185 = vector.broadcast %184 : vector<1x16xf32> to vector<3x16xf32>
    %186 = arith.mulf %183, %185 : vector<3x16xf32>
    %cst_87 = arith.constant 1.875000e-01 : f32
    %187 = vector.broadcast %cst_87 : f32 to vector<3x16xf32>
    %188 = arith.mulf %186, %187 : vector<3x16xf32>
    %cst_88 = arith.constant 0.000000e+00 : f32
    %189 = vector.broadcast %cst_88 : f32 to vector<3x3xf32>
    %190 = vector.extract_strided_slice %93 {offsets = [0, 0], sizes = [3, 13], strides = [1, 1]} : vector<3x16xf32> to vector<3x13xf32>
    %191 = tpu.concatenate %189, %190 in 1 : vector<3x3xf32>, vector<3x13xf32> -> vector<3x16xf32>
    %c2_89 = arith.constant 2 : index
    %c0_90 = arith.constant 0 : index
    %192 = vector.load %arg5[%c2_89, %c0_90] : memref<9x16xf32, #tpu.memory_space<vmem>>, vector<1x16xf32>
    %193 = vector.broadcast %192 : vector<1x16xf32> to vector<3x16xf32>
    %194 = arith.mulf %191, %193 : vector<3x16xf32>
    %cst_91 = arith.constant 6.250000e-02 : f32
    %195 = vector.broadcast %cst_91 : f32 to vector<3x16xf32>
    %196 = arith.mulf %194, %195 : vector<3x16xf32>
    %197 = arith.addf %188, %196 : vector<3x16xf32>
    %cst_92 = arith.constant 5.625000e-01 : f32
    %198 = vector.broadcast %cst_92 : f32 to vector<3x16xf32>
    %199 = arith.mulf %93, %198 : vector<3x16xf32>
    %200 = arith.addf %197, %199 : vector<3x16xf32>
    %cst_93 = arith.constant 0.000000e+00 : f32
    %201 = vector.broadcast %cst_93 : f32 to vector<3x1xf32>
    %202 = vector.extract_strided_slice %93 {offsets = [0, 1], sizes = [3, 15], strides = [1, 1]} : vector<3x16xf32> to vector<3x15xf32>
    %203 = tpu.concatenate %202, %201 in 1 : vector<3x15xf32>, vector<3x1xf32> -> vector<3x16xf32>
    %c5_94 = arith.constant 5 : index
    %c0_95 = arith.constant 0 : index
    %204 = vector.load %arg5[%c5_94, %c0_95] : memref<9x16xf32, #tpu.memory_space<vmem>>, vector<1x16xf32>
    %205 = vector.broadcast %204 : vector<1x16xf32> to vector<3x16xf32>
    %206 = arith.mulf %203, %205 : vector<3x16xf32>
    %cst_96 = arith.constant 1.875000e-01 : f32
    %207 = vector.broadcast %cst_96 : f32 to vector<3x16xf32>
    %208 = arith.mulf %206, %207 : vector<3x16xf32>
    %209 = arith.addf %200, %208 : vector<3x16xf32>
    %cst_97 = arith.constant 0.000000e+00 : f32
    %210 = vector.broadcast %cst_97 : f32 to vector<3x1xf32>
    %211 = vector.extract_strided_slice %93 {offsets = [0, 0], sizes = [3, 15], strides = [1, 1]} : vector<3x16xf32> to vector<3x15xf32>
    %212 = tpu.concatenate %210, %211 in 1 : vector<3x1xf32>, vector<3x15xf32> -> vector<3x16xf32>
    %c3_98 = arith.constant 3 : index
    %c0_99 = arith.constant 0 : index
    %213 = vector.load %arg5[%c3_98, %c0_99] : memref<9x16xf32, #tpu.memory_space<vmem>>, vector<1x16xf32>
    %214 = vector.broadcast %213 : vector<1x16xf32> to vector<3x16xf32>
    %215 = arith.mulf %212, %214 : vector<3x16xf32>
    %cst_100 = arith.constant 1.875000e-01 : f32
    %216 = vector.broadcast %cst_100 : f32 to vector<3x16xf32>
    %217 = arith.mulf %215, %216 : vector<3x16xf32>
    %cst_101 = arith.constant 5.625000e-01 : f32
    %218 = vector.broadcast %cst_101 : f32 to vector<3x16xf32>
    %219 = arith.mulf %93, %218 : vector<3x16xf32>
    %220 = arith.addf %217, %219 : vector<3x16xf32>
    %cst_102 = arith.constant 0.000000e+00 : f32
    %221 = vector.broadcast %cst_102 : f32 to vector<3x3xf32>
    %222 = vector.extract_strided_slice %93 {offsets = [0, 3], sizes = [3, 13], strides = [1, 1]} : vector<3x16xf32> to vector<3x13xf32>
    %223 = tpu.concatenate %222, %221 in 1 : vector<3x13xf32>, vector<3x3xf32> -> vector<3x16xf32>
    %c6_103 = arith.constant 6 : index
    %c0_104 = arith.constant 0 : index
    %224 = vector.load %arg5[%c6_103, %c0_104] : memref<9x16xf32, #tpu.memory_space<vmem>>, vector<1x16xf32>
    %225 = vector.broadcast %224 : vector<1x16xf32> to vector<3x16xf32>
    %226 = arith.mulf %223, %225 : vector<3x16xf32>
    %cst_105 = arith.constant 6.250000e-02 : f32
    %227 = vector.broadcast %cst_105 : f32 to vector<3x16xf32>
    %228 = arith.mulf %226, %227 : vector<3x16xf32>
    %229 = arith.addf %220, %228 : vector<3x16xf32>
    %cst_106 = arith.constant 0.000000e+00 : f32
    %230 = vector.broadcast %cst_106 : f32 to vector<3x4xf32>
    %231 = vector.extract_strided_slice %93 {offsets = [0, 4], sizes = [3, 12], strides = [1, 1]} : vector<3x16xf32> to vector<3x12xf32>
    %232 = tpu.concatenate %231, %230 in 1 : vector<3x12xf32>, vector<3x4xf32> -> vector<3x16xf32>
    %c7_107 = arith.constant 7 : index
    %c0_108 = arith.constant 0 : index
    %233 = vector.load %arg5[%c7_107, %c0_108] : memref<9x16xf32, #tpu.memory_space<vmem>>, vector<1x16xf32>
    %234 = vector.broadcast %233 : vector<1x16xf32> to vector<3x16xf32>
    %235 = arith.mulf %232, %234 : vector<3x16xf32>
    %cst_109 = arith.constant 1.875000e-01 : f32
    %236 = vector.broadcast %cst_109 : f32 to vector<3x16xf32>
    %237 = arith.mulf %235, %236 : vector<3x16xf32>
    %238 = arith.addf %229, %237 : vector<3x16xf32>
    %cst_110 = arith.constant 5.625000e-01 : f32
    %239 = vector.broadcast %cst_110 : f32 to vector<3x16xf32>
    %240 = arith.mulf %93, %239 : vector<3x16xf32>
    %cst_111 = arith.constant 0.000000e+00 : f32
    %241 = vector.broadcast %cst_111 : f32 to vector<3x1xf32>
    %242 = vector.extract_strided_slice %93 {offsets = [0, 1], sizes = [3, 15], strides = [1, 1]} : vector<3x16xf32> to vector<3x15xf32>
    %243 = tpu.concatenate %242, %241 in 1 : vector<3x15xf32>, vector<3x1xf32> -> vector<3x16xf32>
    %c5_112 = arith.constant 5 : index
    %c0_113 = arith.constant 0 : index
    %244 = vector.load %arg5[%c5_112, %c0_113] : memref<9x16xf32, #tpu.memory_space<vmem>>, vector<1x16xf32>
    %245 = vector.broadcast %244 : vector<1x16xf32> to vector<3x16xf32>
    %246 = arith.mulf %243, %245 : vector<3x16xf32>
    %cst_114 = arith.constant 1.875000e-01 : f32
    %247 = vector.broadcast %cst_114 : f32 to vector<3x16xf32>
    %248 = arith.mulf %246, %247 : vector<3x16xf32>
    %249 = arith.addf %240, %248 : vector<3x16xf32>
    %cst_115 = arith.constant 0.000000e+00 : f32
    %250 = vector.broadcast %cst_115 : f32 to vector<3x4xf32>
    %251 = vector.extract_strided_slice %93 {offsets = [0, 4], sizes = [3, 12], strides = [1, 1]} : vector<3x16xf32> to vector<3x12xf32>
    %252 = tpu.concatenate %251, %250 in 1 : vector<3x12xf32>, vector<3x4xf32> -> vector<3x16xf32>
    %c7_116 = arith.constant 7 : index
    %c0_117 = arith.constant 0 : index
    %253 = vector.load %arg5[%c7_116, %c0_117] : memref<9x16xf32, #tpu.memory_space<vmem>>, vector<1x16xf32>
    %254 = vector.broadcast %253 : vector<1x16xf32> to vector<3x16xf32>
    %255 = arith.mulf %252, %254 : vector<3x16xf32>
    %cst_118 = arith.constant 1.875000e-01 : f32
    %256 = vector.broadcast %cst_118 : f32 to vector<3x16xf32>
    %257 = arith.mulf %255, %256 : vector<3x16xf32>
    %258 = arith.addf %249, %257 : vector<3x16xf32>
    %cst_119 = arith.constant 0.000000e+00 : f32
    %259 = vector.broadcast %cst_119 : f32 to vector<3x5xf32>
    %260 = vector.extract_strided_slice %93 {offsets = [0, 5], sizes = [3, 11], strides = [1, 1]} : vector<3x16xf32> to vector<3x11xf32>
    %261 = tpu.concatenate %260, %259 in 1 : vector<3x11xf32>, vector<3x5xf32> -> vector<3x16xf32>
    %c8_120 = arith.constant 8 : index
    %c0_121 = arith.constant 0 : index
    %262 = vector.load %arg5[%c8_120, %c0_121] : memref<9x16xf32, #tpu.memory_space<vmem>>, vector<1x16xf32>
    %263 = vector.broadcast %262 : vector<1x16xf32> to vector<3x16xf32>
    %264 = arith.mulf %261, %263 : vector<3x16xf32>
    %cst_122 = arith.constant 6.250000e-02 : f32
    %265 = vector.broadcast %cst_122 : f32 to vector<3x16xf32>
    %266 = arith.mulf %264, %265 : vector<3x16xf32>
    %267 = arith.addf %258, %266 : vector<3x16xf32>
    %268 = vector.extract_strided_slice %151 {offsets = [0, 0], sizes = [32, 16], strides = [1, 1]} : vector<128x16xf32> to vector<32x16xf32>
    %269 = tpu.concatenate %268, %180 in 0 : vector<32x16xf32>, vector<3x16xf32> -> vector<35x16xf32>
    %270 = arith.truncf %269 : vector<35x16xf32> to vector<35x16xbf16>
    %c0_123 = arith.constant 0 : index
    %c0_124 = arith.constant 0 : index
    %271 = vector.load %arg8[%c0_123, %c0_124] : memref<64x64xbf16, #tpu.memory_space<vmem>>, vector<16x64xbf16>
    %cst_125 = arith.constant dense<0.000000e+00> : vector<35x64xf32>
    %272 = tpu.matmul %270, %271, %cst_125 {dimension_numbers = #tpu.dot_dimension_numbers<[1], [0], [0], [1], [0, 0, 1, 1], [], []>} : vector<35x16xbf16>, vector<16x64xbf16>, vector<35x64xf32> -> vector<35x64xf32>
    %273 = vector.extract_strided_slice %151 {offsets = [32, 0], sizes = [32, 16], strides = [1, 1]} : vector<128x16xf32> to vector<32x16xf32>
    %274 = tpu.concatenate %273, %209 in 0 : vector<32x16xf32>, vector<3x16xf32> -> vector<35x16xf32>
    %275 = arith.truncf %274 : vector<35x16xf32> to vector<35x16xbf16>
    %c16 = arith.constant 16 : index
    %c0_126 = arith.constant 0 : index
    %276 = vector.load %arg8[%c16, %c0_126] : memref<64x64xbf16, #tpu.memory_space<vmem>>, vector<16x64xbf16>
    %cst_127 = arith.constant dense<0.000000e+00> : vector<35x64xf32>
    %277 = tpu.matmul %275, %276, %cst_127 {dimension_numbers = #tpu.dot_dimension_numbers<[1], [0], [0], [1], [0, 0, 1, 1], [], []>} : vector<35x16xbf16>, vector<16x64xbf16>, vector<35x64xf32> -> vector<35x64xf32>
    %278 = arith.addf %272, %277 : vector<35x64xf32>
    %279 = vector.extract_strided_slice %151 {offsets = [64, 0], sizes = [32, 16], strides = [1, 1]} : vector<128x16xf32> to vector<32x16xf32>
    %280 = tpu.concatenate %279, %238 in 0 : vector<32x16xf32>, vector<3x16xf32> -> vector<35x16xf32>
    %281 = arith.truncf %280 : vector<35x16xf32> to vector<35x16xbf16>
    %c32 = arith.constant 32 : index
    %c0_128 = arith.constant 0 : index
    %282 = vector.load %arg8[%c32, %c0_128] : memref<64x64xbf16, #tpu.memory_space<vmem>>, vector<16x64xbf16>
    %cst_129 = arith.constant dense<0.000000e+00> : vector<35x64xf32>
    %283 = tpu.matmul %281, %282, %cst_129 {dimension_numbers = #tpu.dot_dimension_numbers<[1], [0], [0], [1], [0, 0, 1, 1], [], []>} : vector<35x16xbf16>, vector<16x64xbf16>, vector<35x64xf32> -> vector<35x64xf32>
    %284 = arith.addf %278, %283 : vector<35x64xf32>
    %285 = vector.extract_strided_slice %151 {offsets = [96, 0], sizes = [32, 16], strides = [1, 1]} : vector<128x16xf32> to vector<32x16xf32>
    %286 = tpu.concatenate %285, %267 in 0 : vector<32x16xf32>, vector<3x16xf32> -> vector<35x16xf32>
    %287 = arith.truncf %286 : vector<35x16xf32> to vector<35x16xbf16>
    %c48 = arith.constant 48 : index
    %c0_130 = arith.constant 0 : index
    %288 = vector.load %arg8[%c48, %c0_130] : memref<64x64xbf16, #tpu.memory_space<vmem>>, vector<16x64xbf16>
    %cst_131 = arith.constant dense<0.000000e+00> : vector<35x64xf32>
    %289 = tpu.matmul %287, %288, %cst_131 {dimension_numbers = #tpu.dot_dimension_numbers<[1], [0], [0], [1], [0, 0, 1, 1], [], []>} : vector<35x16xbf16>, vector<16x64xbf16>, vector<35x64xf32> -> vector<35x64xf32>
    %290 = arith.addf %284, %289 : vector<35x64xf32>
    %291 = vector.extract_strided_slice %290 {offsets = [0, 0], sizes = [32, 64], strides = [1, 1]} : vector<35x64xf32> to vector<32x64xf32>
    %292 = vector.broadcast %95 : vector<32x1xf32> to vector<32x64xf32>
    %293 = arith.mulf %291, %292 : vector<32x64xf32>
    %294 = vector.broadcast %98 : vector<1x64xf32> to vector<32x64xf32>
    %295 = arith.addf %293, %294 : vector<32x64xf32>
    %296 = vector.broadcast %97 : vector<32x1xf32> to vector<32x64xf32>
    %297 = arith.addf %295, %296 : vector<32x64xf32>
    %cst_132 = arith.constant 0.000000e+00 : f32
    %298 = vector.broadcast %cst_132 : f32 to vector<32x64xf32>
    %299 = arith.cmpf olt, %297, %298 : vector<32x64xf32>
    %cst_133 = arith.constant 2.000000e-01 : f32
    %300 = vector.broadcast %cst_133 : f32 to vector<32x64xf32>
    %301 = arith.mulf %300, %297 : vector<32x64xf32>
    %302 = arith.select %299, %301, %297 : vector<32x64xi1>, vector<32x64xf32>
    %cst_134 = arith.constant 1.41421354 : f32
    %303 = vector.broadcast %cst_134 : f32 to vector<32x64xf32>
    %304 = arith.mulf %302, %303 : vector<32x64xf32>
    %cst_135 = arith.constant -2.560000e+02 : f32
    %cst_136 = arith.constant 2.560000e+02 : f32
    %305 = vector.broadcast %cst_135 : f32 to vector<32x64xf32>
    %306 = arith.maximumf %305, %304 : vector<32x64xf32>
    %307 = vector.broadcast %cst_136 : f32 to vector<32x64xf32>
    %308 = arith.minimumf %307, %306 : vector<32x64xf32>
    %309 = vector.extract_strided_slice %290 {offsets = [32, 0], sizes = [3, 64], strides = [1, 1]} : vector<35x64xf32> to vector<3x64xf32>
    %c1_137 = arith.constant 1 : index
    %c0_138 = arith.constant 0 : index
    %310 = vector.load %arg16[%c1_137, %c0_138] : memref<2x64xf32, #tpu.memory_space<vmem>>, vector<1x64xf32>
    %311 = vector.extract_strided_slice %1 {offsets = [96, 0], sizes = [32, 1], strides = [1, 1]} : vector<256x1xf32> to vector<32x1xf32>
    %312 = vector.extract_strided_slice %3 {offsets = [64, 0], sizes = [32, 1], strides = [1, 1]} : vector<160x1xf32> to vector<32x1xf32>
    %c0_139 = arith.constant 0 : index
    %c0_140 = arith.constant 0 : index
    %313 = vector.load %arg15[%c0_139, %c0_140] : memref<32x288xbf16, #tpu.memory_space<vmem>>, vector<32x288xbf16>
    %314 = vector.extract_strided_slice %4 {offsets = [64, 0], sizes = [32, 1], strides = [1, 1]} : vector<160x1xf32> to vector<32x1xf32>
    %315 = vector.broadcast %311 : vector<32x1xf32> to vector<32x64xf32>
    %316 = arith.mulf %308, %315 : vector<32x64xf32>
    %cst_141 = arith.constant 0.000000e+00 : f32
    %317 = vector.broadcast %cst_141 : f32 to vector<32x9xf32>
    %318 = vector.extract_strided_slice %316 {offsets = [0, 0], sizes = [32, 55], strides = [1, 1]} : vector<32x64xf32> to vector<32x55xf32>
    %319 = tpu.concatenate %317, %318 in 1 : vector<32x9xf32>, vector<32x55xf32> -> vector<32x64xf32>
    %c0_142 = arith.constant 0 : index
    %c0_143 = arith.constant 0 : index
    %320 = vector.load %arg6[%c0_142, %c0_143] : memref<9x64xf32, #tpu.memory_space<vmem>>, vector<1x64xf32>
    %321 = vector.broadcast %320 : vector<1x64xf32> to vector<32x64xf32>
    %322 = arith.mulf %319, %321 : vector<32x64xf32>
    %cst_144 = arith.constant 0.000000e+00 : f32
    %323 = vector.broadcast %cst_144 : f32 to vector<32x8xf32>
    %324 = vector.extract_strided_slice %316 {offsets = [0, 0], sizes = [32, 56], strides = [1, 1]} : vector<32x64xf32> to vector<32x56xf32>
    %325 = tpu.concatenate %323, %324 in 1 : vector<32x8xf32>, vector<32x56xf32> -> vector<32x64xf32>
    %c1_145 = arith.constant 1 : index
    %c0_146 = arith.constant 0 : index
    %326 = vector.load %arg6[%c1_145, %c0_146] : memref<9x64xf32, #tpu.memory_space<vmem>>, vector<1x64xf32>
    %327 = vector.broadcast %326 : vector<1x64xf32> to vector<32x64xf32>
    %328 = arith.mulf %325, %327 : vector<32x64xf32>
    %cst_147 = arith.constant 0.000000e+00 : f32
    %329 = vector.broadcast %cst_147 : f32 to vector<32x7xf32>
    %330 = vector.extract_strided_slice %316 {offsets = [0, 0], sizes = [32, 57], strides = [1, 1]} : vector<32x64xf32> to vector<32x57xf32>
    %331 = tpu.concatenate %329, %330 in 1 : vector<32x7xf32>, vector<32x57xf32> -> vector<32x64xf32>
    %c2_148 = arith.constant 2 : index
    %c0_149 = arith.constant 0 : index
    %332 = vector.load %arg6[%c2_148, %c0_149] : memref<9x64xf32, #tpu.memory_space<vmem>>, vector<1x64xf32>
    %333 = vector.broadcast %332 : vector<1x64xf32> to vector<32x64xf32>
    %334 = arith.mulf %331, %333 : vector<32x64xf32>
    %cst_150 = arith.constant 0.000000e+00 : f32
    %335 = vector.broadcast %cst_150 : f32 to vector<32x1xf32>
    %336 = vector.extract_strided_slice %316 {offsets = [0, 0], sizes = [32, 63], strides = [1, 1]} : vector<32x64xf32> to vector<32x63xf32>
    %337 = tpu.concatenate %335, %336 in 1 : vector<32x1xf32>, vector<32x63xf32> -> vector<32x64xf32>
    %c3_151 = arith.constant 3 : index
    %c0_152 = arith.constant 0 : index
    %338 = vector.load %arg6[%c3_151, %c0_152] : memref<9x64xf32, #tpu.memory_space<vmem>>, vector<1x64xf32>
    %339 = vector.broadcast %338 : vector<1x64xf32> to vector<32x64xf32>
    %340 = arith.mulf %337, %339 : vector<32x64xf32>
    %cst_153 = arith.constant 0.000000e+00 : f32
    %341 = vector.broadcast %cst_153 : f32 to vector<32x1xf32>
    %342 = vector.extract_strided_slice %316 {offsets = [0, 1], sizes = [32, 63], strides = [1, 1]} : vector<32x64xf32> to vector<32x63xf32>
    %343 = tpu.concatenate %342, %341 in 1 : vector<32x63xf32>, vector<32x1xf32> -> vector<32x64xf32>
    %c5_154 = arith.constant 5 : index
    %c0_155 = arith.constant 0 : index
    %344 = vector.load %arg6[%c5_154, %c0_155] : memref<9x64xf32, #tpu.memory_space<vmem>>, vector<1x64xf32>
    %345 = vector.broadcast %344 : vector<1x64xf32> to vector<32x64xf32>
    %346 = arith.mulf %343, %345 : vector<32x64xf32>
    %cst_156 = arith.constant 0.000000e+00 : f32
    %347 = vector.broadcast %cst_156 : f32 to vector<32x7xf32>
    %348 = vector.extract_strided_slice %316 {offsets = [0, 7], sizes = [32, 57], strides = [1, 1]} : vector<32x64xf32> to vector<32x57xf32>
    %349 = tpu.concatenate %348, %347 in 1 : vector<32x57xf32>, vector<32x7xf32> -> vector<32x64xf32>
    %c6_157 = arith.constant 6 : index
    %c0_158 = arith.constant 0 : index
    %350 = vector.load %arg6[%c6_157, %c0_158] : memref<9x64xf32, #tpu.memory_space<vmem>>, vector<1x64xf32>
    %351 = vector.broadcast %350 : vector<1x64xf32> to vector<32x64xf32>
    %352 = arith.mulf %349, %351 : vector<32x64xf32>
    %cst_159 = arith.constant 0.000000e+00 : f32
    %353 = vector.broadcast %cst_159 : f32 to vector<32x8xf32>
    %354 = vector.extract_strided_slice %316 {offsets = [0, 8], sizes = [32, 56], strides = [1, 1]} : vector<32x64xf32> to vector<32x56xf32>
    %355 = tpu.concatenate %354, %353 in 1 : vector<32x56xf32>, vector<32x8xf32> -> vector<32x64xf32>
    %c7_160 = arith.constant 7 : index
    %c0_161 = arith.constant 0 : index
    %356 = vector.load %arg6[%c7_160, %c0_161] : memref<9x64xf32, #tpu.memory_space<vmem>>, vector<1x64xf32>
    %357 = vector.broadcast %356 : vector<1x64xf32> to vector<32x64xf32>
    %358 = arith.mulf %355, %357 : vector<32x64xf32>
    %cst_162 = arith.constant 0.000000e+00 : f32
    %359 = vector.broadcast %cst_162 : f32 to vector<32x9xf32>
    %360 = vector.extract_strided_slice %316 {offsets = [0, 9], sizes = [32, 55], strides = [1, 1]} : vector<32x64xf32> to vector<32x55xf32>
    %361 = tpu.concatenate %360, %359 in 1 : vector<32x55xf32>, vector<32x9xf32> -> vector<32x64xf32>
    %c8_163 = arith.constant 8 : index
    %c0_164 = arith.constant 0 : index
    %362 = vector.load %arg6[%c8_163, %c0_164] : memref<9x64xf32, #tpu.memory_space<vmem>>, vector<1x64xf32>
    %363 = vector.broadcast %362 : vector<1x64xf32> to vector<32x64xf32>
    %364 = arith.mulf %361, %363 : vector<32x64xf32>
    %365 = tpu.concatenate %322, %328, %334, %340, %316, %346, %352, %358, %364 in 0 : vector<32x64xf32>, vector<32x64xf32>, vector<32x64xf32>, vector<32x64xf32>, vector<32x64xf32>, vector<32x64xf32>, vector<32x64xf32>, vector<32x64xf32>, vector<32x64xf32> -> vector<288x64xf32>
    %366 = arith.truncf %365 : vector<288x64xf32> to vector<288x64xbf16>
    %cst_165 = arith.constant dense<0.000000e+00> : vector<32x64xf32>
    %367 = tpu.matmul %313, %366, %cst_165 {dimension_numbers = #tpu.dot_dimension_numbers<[1], [0], [0], [1], [0, 0, 1, 1], [], []>} : vector<32x288xbf16>, vector<288x64xbf16>, vector<32x64xf32> -> vector<32x64xf32>
    %368 = vector.broadcast %312 : vector<32x1xf32> to vector<32x64xf32>
    %369 = arith.mulf %367, %368 : vector<32x64xf32>
    %370 = vector.broadcast %310 : vector<1x64xf32> to vector<32x64xf32>
    %371 = arith.addf %369, %370 : vector<32x64xf32>
    %372 = vector.broadcast %314 : vector<32x1xf32> to vector<32x64xf32>
    %373 = arith.addf %371, %372 : vector<32x64xf32>
    %cst_166 = arith.constant 0.000000e+00 : f32
    %374 = vector.broadcast %cst_166 : f32 to vector<32x64xf32>
    %375 = arith.cmpf olt, %373, %374 : vector<32x64xf32>
    %cst_167 = arith.constant 2.000000e-01 : f32
    %376 = vector.broadcast %cst_167 : f32 to vector<32x64xf32>
    %377 = arith.mulf %376, %373 : vector<32x64xf32>
    %378 = arith.select %375, %377, %373 : vector<32x64xi1>, vector<32x64xf32>
    %cst_168 = arith.constant 1.41421354 : f32
    %379 = vector.broadcast %cst_168 : f32 to vector<32x64xf32>
    %380 = arith.mulf %378, %379 : vector<32x64xf32>
    %cst_169 = arith.constant -2.560000e+02 : f32
    %cst_170 = arith.constant 2.560000e+02 : f32
    %381 = vector.broadcast %cst_169 : f32 to vector<32x64xf32>
    %382 = arith.maximumf %381, %380 : vector<32x64xf32>
    %383 = vector.broadcast %cst_170 : f32 to vector<32x64xf32>
    %384 = arith.minimumf %383, %382 : vector<32x64xf32>
    %385 = vector.extract_strided_slice %1 {offsets = [128, 0], sizes = [32, 1], strides = [1, 1]} : vector<256x1xf32> to vector<32x1xf32>
    %c0_171 = arith.constant 0 : index
    %c0_172 = arith.constant 0 : index
    %386 = vector.load %arg17[%c0_171, %c0_172] : memref<3x32xbf16, #tpu.memory_space<vmem>>, vector<3x32xbf16>
    %c0_173 = arith.constant 0 : index
    %c0_174 = arith.constant 0 : index
    %387 = vector.load %arg18[%c0_173, %c0_174] : memref<3x1xf32, #tpu.memory_space<vmem>>, vector<3x1xf32>
    %388 = vector.broadcast %385 : vector<32x1xf32> to vector<32x64xf32>
    %389 = arith.mulf %384, %388 : vector<32x64xf32>
    %390 = arith.truncf %389 : vector<32x64xf32> to vector<32x64xbf16>
    %cst_175 = arith.constant dense<0.000000e+00> : vector<3x64xf32>
    %391 = tpu.matmul %386, %390, %cst_175 {dimension_numbers = #tpu.dot_dimension_numbers<[1], [0], [0], [1], [0, 0, 1, 1], [], []>} : vector<3x32xbf16>, vector<32x64xbf16>, vector<3x64xf32> -> vector<3x64xf32>
    %392 = vector.broadcast %387 : vector<3x1xf32> to vector<3x64xf32>
    %393 = arith.addf %391, %392 : vector<3x64xf32>
    %cst_176 = arith.constant -2.560000e+02 : f32
    %cst_177 = arith.constant 2.560000e+02 : f32
    %394 = vector.broadcast %cst_176 : f32 to vector<3x64xf32>
    %395 = arith.maximumf %394, %393 : vector<3x64xf32>
    %396 = vector.broadcast %cst_177 : f32 to vector<3x64xf32>
    %397 = arith.minimumf %396, %395 : vector<3x64xf32>
    %398 = arith.addf %309, %397 : vector<3x64xf32>
    %399 = vector.extract_strided_slice %1 {offsets = [160, 0], sizes = [32, 1], strides = [1, 1]} : vector<256x1xf32> to vector<32x1xf32>
    %400 = vector.extract_strided_slice %3 {offsets = [96, 0], sizes = [32, 1], strides = [1, 1]} : vector<160x1xf32> to vector<32x1xf32>
    %c0_178 = arith.constant 0 : index
    %c0_179 = arith.constant 0 : index
    %401 = vector.load %arg19[%c0_178, %c0_179] : memref<128x288xbf16, #tpu.memory_space<vmem>>, vector<128x288xbf16>
    %402 = vector.extract_strided_slice %4 {offsets = [96, 0], sizes = [32, 1], strides = [1, 1]} : vector<160x1xf32> to vector<32x1xf32>
    %c0_180 = arith.constant 0 : index
    %c0_181 = arith.constant 0 : index
    %403 = vector.load %arg21[%c0_180, %c0_181] : memref<2x256xf32, #tpu.memory_space<vmem>>, vector<1x256xf32>
    %404 = vector.broadcast %399 : vector<32x1xf32> to vector<32x64xf32>
    %405 = arith.mulf %384, %404 : vector<32x64xf32>
    %cst_182 = arith.constant 0.000000e+00 : f32
    %406 = vector.broadcast %cst_182 : f32 to vector<32x9xf32>
    %407 = vector.extract_strided_slice %405 {offsets = [0, 0], sizes = [32, 55], strides = [1, 1]} : vector<32x64xf32> to vector<32x55xf32>
    %408 = tpu.concatenate %406, %407 in 1 : vector<32x9xf32>, vector<32x55xf32> -> vector<32x64xf32>
    %c0_183 = arith.constant 0 : index
    %c0_184 = arith.constant 0 : index
    %409 = vector.load %arg6[%c0_183, %c0_184] : memref<9x64xf32, #tpu.memory_space<vmem>>, vector<1x64xf32>
    %410 = vector.broadcast %409 : vector<1x64xf32> to vector<32x64xf32>
    %411 = arith.mulf %408, %410 : vector<32x64xf32>
    %cst_185 = arith.constant 0.000000e+00 : f32
    %412 = vector.broadcast %cst_185 : f32 to vector<32x8xf32>
    %413 = vector.extract_strided_slice %405 {offsets = [0, 0], sizes = [32, 56], strides = [1, 1]} : vector<32x64xf32> to vector<32x56xf32>
    %414 = tpu.concatenate %412, %413 in 1 : vector<32x8xf32>, vector<32x56xf32> -> vector<32x64xf32>
    %c1_186 = arith.constant 1 : index
    %c0_187 = arith.constant 0 : index
    %415 = vector.load %arg6[%c1_186, %c0_187] : memref<9x64xf32, #tpu.memory_space<vmem>>, vector<1x64xf32>
    %416 = vector.broadcast %415 : vector<1x64xf32> to vector<32x64xf32>
    %417 = arith.mulf %414, %416 : vector<32x64xf32>
    %cst_188 = arith.constant 0.000000e+00 : f32
    %418 = vector.broadcast %cst_188 : f32 to vector<32x7xf32>
    %419 = vector.extract_strided_slice %405 {offsets = [0, 0], sizes = [32, 57], strides = [1, 1]} : vector<32x64xf32> to vector<32x57xf32>
    %420 = tpu.concatenate %418, %419 in 1 : vector<32x7xf32>, vector<32x57xf32> -> vector<32x64xf32>
    %c2_189 = arith.constant 2 : index
    %c0_190 = arith.constant 0 : index
    %421 = vector.load %arg6[%c2_189, %c0_190] : memref<9x64xf32, #tpu.memory_space<vmem>>, vector<1x64xf32>
    %422 = vector.broadcast %421 : vector<1x64xf32> to vector<32x64xf32>
    %423 = arith.mulf %420, %422 : vector<32x64xf32>
    %cst_191 = arith.constant 0.000000e+00 : f32
    %424 = vector.broadcast %cst_191 : f32 to vector<32x1xf32>
    %425 = vector.extract_strided_slice %405 {offsets = [0, 0], sizes = [32, 63], strides = [1, 1]} : vector<32x64xf32> to vector<32x63xf32>
    %426 = tpu.concatenate %424, %425 in 1 : vector<32x1xf32>, vector<32x63xf32> -> vector<32x64xf32>
    %c3_192 = arith.constant 3 : index
    %c0_193 = arith.constant 0 : index
    %427 = vector.load %arg6[%c3_192, %c0_193] : memref<9x64xf32, #tpu.memory_space<vmem>>, vector<1x64xf32>
    %428 = vector.broadcast %427 : vector<1x64xf32> to vector<32x64xf32>
    %429 = arith.mulf %426, %428 : vector<32x64xf32>
    %cst_194 = arith.constant 0.000000e+00 : f32
    %430 = vector.broadcast %cst_194 : f32 to vector<32x1xf32>
    %431 = vector.extract_strided_slice %405 {offsets = [0, 1], sizes = [32, 63], strides = [1, 1]} : vector<32x64xf32> to vector<32x63xf32>
    %432 = tpu.concatenate %431, %430 in 1 : vector<32x63xf32>, vector<32x1xf32> -> vector<32x64xf32>
    %c5_195 = arith.constant 5 : index
    %c0_196 = arith.constant 0 : index
    %433 = vector.load %arg6[%c5_195, %c0_196] : memref<9x64xf32, #tpu.memory_space<vmem>>, vector<1x64xf32>
    %434 = vector.broadcast %433 : vector<1x64xf32> to vector<32x64xf32>
    %435 = arith.mulf %432, %434 : vector<32x64xf32>
    %cst_197 = arith.constant 0.000000e+00 : f32
    %436 = vector.broadcast %cst_197 : f32 to vector<32x7xf32>
    %437 = vector.extract_strided_slice %405 {offsets = [0, 7], sizes = [32, 57], strides = [1, 1]} : vector<32x64xf32> to vector<32x57xf32>
    %438 = tpu.concatenate %437, %436 in 1 : vector<32x57xf32>, vector<32x7xf32> -> vector<32x64xf32>
    %c6_198 = arith.constant 6 : index
    %c0_199 = arith.constant 0 : index
    %439 = vector.load %arg6[%c6_198, %c0_199] : memref<9x64xf32, #tpu.memory_space<vmem>>, vector<1x64xf32>
    %440 = vector.broadcast %439 : vector<1x64xf32> to vector<32x64xf32>
    %441 = arith.mulf %438, %440 : vector<32x64xf32>
    %cst_200 = arith.constant 0.000000e+00 : f32
    %442 = vector.broadcast %cst_200 : f32 to vector<32x8xf32>
    %443 = vector.extract_strided_slice %405 {offsets = [0, 8], sizes = [32, 56], strides = [1, 1]} : vector<32x64xf32> to vector<32x56xf32>
    %444 = tpu.concatenate %443, %442 in 1 : vector<32x56xf32>, vector<32x8xf32> -> vector<32x64xf32>
    %c7_201 = arith.constant 7 : index
    %c0_202 = arith.constant 0 : index
    %445 = vector.load %arg6[%c7_201, %c0_202] : memref<9x64xf32, #tpu.memory_space<vmem>>, vector<1x64xf32>
    %446 = vector.broadcast %445 : vector<1x64xf32> to vector<32x64xf32>
    %447 = arith.mulf %444, %446 : vector<32x64xf32>
    %cst_203 = arith.constant 0.000000e+00 : f32
    %448 = vector.broadcast %cst_203 : f32 to vector<32x9xf32>
    %449 = vector.extract_strided_slice %405 {offsets = [0, 9], sizes = [32, 55], strides = [1, 1]} : vector<32x64xf32> to vector<32x55xf32>
    %450 = tpu.concatenate %449, %448 in 1 : vector<32x55xf32>, vector<32x9xf32> -> vector<32x64xf32>
    %c8_204 = arith.constant 8 : index
    %c0_205 = arith.constant 0 : index
    %451 = vector.load %arg6[%c8_204, %c0_205] : memref<9x64xf32, #tpu.memory_space<vmem>>, vector<1x64xf32>
    %452 = vector.broadcast %451 : vector<1x64xf32> to vector<32x64xf32>
    %453 = arith.mulf %450, %452 : vector<32x64xf32>
    %454 = tpu.concatenate %411, %417, %423, %429, %405, %435, %441, %447, %453 in 0 : vector<32x64xf32>, vector<32x64xf32>, vector<32x64xf32>, vector<32x64xf32>, vector<32x64xf32>, vector<32x64xf32>, vector<32x64xf32>, vector<32x64xf32>, vector<32x64xf32> -> vector<288x64xf32>
    %455 = arith.truncf %454 : vector<288x64xf32> to vector<288x64xbf16>
    %cst_206 = arith.constant dense<0.000000e+00> : vector<128x64xf32>
    %456 = tpu.matmul %401, %455, %cst_206 {dimension_numbers = #tpu.dot_dimension_numbers<[1], [0], [0], [1], [0, 0, 1, 1], [], []>} : vector<128x288xbf16>, vector<288x64xbf16>, vector<128x64xf32> -> vector<128x64xf32>
    %cst_207 = arith.constant 0.000000e+00 : f32
    %457 = vector.broadcast %cst_207 : f32 to vector<3x9xf32>
    %458 = vector.extract_strided_slice %398 {offsets = [0, 0], sizes = [3, 55], strides = [1, 1]} : vector<3x64xf32> to vector<3x55xf32>
    %459 = tpu.concatenate %457, %458 in 1 : vector<3x9xf32>, vector<3x55xf32> -> vector<3x64xf32>
    %c0_208 = arith.constant 0 : index
    %c0_209 = arith.constant 0 : index
    %460 = vector.load %arg6[%c0_208, %c0_209] : memref<9x64xf32, #tpu.memory_space<vmem>>, vector<1x64xf32>
    %461 = vector.broadcast %460 : vector<1x64xf32> to vector<3x64xf32>
    %462 = arith.mulf %459, %461 : vector<3x64xf32>
    %cst_210 = arith.constant 6.250000e-02 : f32
    %463 = vector.broadcast %cst_210 : f32 to vector<3x64xf32>
    %464 = arith.mulf %462, %463 : vector<3x64xf32>
    %cst_211 = arith.constant 0.000000e+00 : f32
    %465 = vector.broadcast %cst_211 : f32 to vector<3x8xf32>
    %466 = vector.extract_strided_slice %398 {offsets = [0, 0], sizes = [3, 56], strides = [1, 1]} : vector<3x64xf32> to vector<3x56xf32>
    %467 = tpu.concatenate %465, %466 in 1 : vector<3x8xf32>, vector<3x56xf32> -> vector<3x64xf32>
    %c1_212 = arith.constant 1 : index
    %c0_213 = arith.constant 0 : index
    %468 = vector.load %arg6[%c1_212, %c0_213] : memref<9x64xf32, #tpu.memory_space<vmem>>, vector<1x64xf32>
    %469 = vector.broadcast %468 : vector<1x64xf32> to vector<3x64xf32>
    %470 = arith.mulf %467, %469 : vector<3x64xf32>
    %cst_214 = arith.constant 1.875000e-01 : f32
    %471 = vector.broadcast %cst_214 : f32 to vector<3x64xf32>
    %472 = arith.mulf %470, %471 : vector<3x64xf32>
    %473 = arith.addf %464, %472 : vector<3x64xf32>
    %cst_215 = arith.constant 0.000000e+00 : f32
    %474 = vector.broadcast %cst_215 : f32 to vector<3x1xf32>
    %475 = vector.extract_strided_slice %398 {offsets = [0, 0], sizes = [3, 63], strides = [1, 1]} : vector<3x64xf32> to vector<3x63xf32>
    %476 = tpu.concatenate %474, %475 in 1 : vector<3x1xf32>, vector<3x63xf32> -> vector<3x64xf32>
    %c3_216 = arith.constant 3 : index
    %c0_217 = arith.constant 0 : index
    %477 = vector.load %arg6[%c3_216, %c0_217] : memref<9x64xf32, #tpu.memory_space<vmem>>, vector<1x64xf32>
    %478 = vector.broadcast %477 : vector<1x64xf32> to vector<3x64xf32>
    %479 = arith.mulf %476, %478 : vector<3x64xf32>
    %cst_218 = arith.constant 1.875000e-01 : f32
    %480 = vector.broadcast %cst_218 : f32 to vector<3x64xf32>
    %481 = arith.mulf %479, %480 : vector<3x64xf32>
    %482 = arith.addf %473, %481 : vector<3x64xf32>
    %cst_219 = arith.constant 5.625000e-01 : f32
    %483 = vector.broadcast %cst_219 : f32 to vector<3x64xf32>
    %484 = arith.mulf %398, %483 : vector<3x64xf32>
    %485 = arith.addf %482, %484 : vector<3x64xf32>
    %cst_220 = arith.constant 0.000000e+00 : f32
    %486 = vector.broadcast %cst_220 : f32 to vector<3x8xf32>
    %487 = vector.extract_strided_slice %398 {offsets = [0, 0], sizes = [3, 56], strides = [1, 1]} : vector<3x64xf32> to vector<3x56xf32>
    %488 = tpu.concatenate %486, %487 in 1 : vector<3x8xf32>, vector<3x56xf32> -> vector<3x64xf32>
    %c1_221 = arith.constant 1 : index
    %c0_222 = arith.constant 0 : index
    %489 = vector.load %arg6[%c1_221, %c0_222] : memref<9x64xf32, #tpu.memory_space<vmem>>, vector<1x64xf32>
    %490 = vector.broadcast %489 : vector<1x64xf32> to vector<3x64xf32>
    %491 = arith.mulf %488, %490 : vector<3x64xf32>
    %cst_223 = arith.constant 1.875000e-01 : f32
    %492 = vector.broadcast %cst_223 : f32 to vector<3x64xf32>
    %493 = arith.mulf %491, %492 : vector<3x64xf32>
    %cst_224 = arith.constant 0.000000e+00 : f32
    %494 = vector.broadcast %cst_224 : f32 to vector<3x7xf32>
    %495 = vector.extract_strided_slice %398 {offsets = [0, 0], sizes = [3, 57], strides = [1, 1]} : vector<3x64xf32> to vector<3x57xf32>
    %496 = tpu.concatenate %494, %495 in 1 : vector<3x7xf32>, vector<3x57xf32> -> vector<3x64xf32>
    %c2_225 = arith.constant 2 : index
    %c0_226 = arith.constant 0 : index
    %497 = vector.load %arg6[%c2_225, %c0_226] : memref<9x64xf32, #tpu.memory_space<vmem>>, vector<1x64xf32>
    %498 = vector.broadcast %497 : vector<1x64xf32> to vector<3x64xf32>
    %499 = arith.mulf %496, %498 : vector<3x64xf32>
    %cst_227 = arith.constant 6.250000e-02 : f32
    %500 = vector.broadcast %cst_227 : f32 to vector<3x64xf32>
    %501 = arith.mulf %499, %500 : vector<3x64xf32>
    %502 = arith.addf %493, %501 : vector<3x64xf32>
    %cst_228 = arith.constant 5.625000e-01 : f32
    %503 = vector.broadcast %cst_228 : f32 to vector<3x64xf32>
    %504 = arith.mulf %398, %503 : vector<3x64xf32>
    %505 = arith.addf %502, %504 : vector<3x64xf32>
    %cst_229 = arith.constant 0.000000e+00 : f32
    %506 = vector.broadcast %cst_229 : f32 to vector<3x1xf32>
    %507 = vector.extract_strided_slice %398 {offsets = [0, 1], sizes = [3, 63], strides = [1, 1]} : vector<3x64xf32> to vector<3x63xf32>
    %508 = tpu.concatenate %507, %506 in 1 : vector<3x63xf32>, vector<3x1xf32> -> vector<3x64xf32>
    %c5_230 = arith.constant 5 : index
    %c0_231 = arith.constant 0 : index
    %509 = vector.load %arg6[%c5_230, %c0_231] : memref<9x64xf32, #tpu.memory_space<vmem>>, vector<1x64xf32>
    %510 = vector.broadcast %509 : vector<1x64xf32> to vector<3x64xf32>
    %511 = arith.mulf %508, %510 : vector<3x64xf32>
    %cst_232 = arith.constant 1.875000e-01 : f32
    %512 = vector.broadcast %cst_232 : f32 to vector<3x64xf32>
    %513 = arith.mulf %511, %512 : vector<3x64xf32>
    %514 = arith.addf %505, %513 : vector<3x64xf32>
    %cst_233 = arith.constant 0.000000e+00 : f32
    %515 = vector.broadcast %cst_233 : f32 to vector<3x1xf32>
    %516 = vector.extract_strided_slice %398 {offsets = [0, 0], sizes = [3, 63], strides = [1, 1]} : vector<3x64xf32> to vector<3x63xf32>
    %517 = tpu.concatenate %515, %516 in 1 : vector<3x1xf32>, vector<3x63xf32> -> vector<3x64xf32>
    %c3_234 = arith.constant 3 : index
    %c0_235 = arith.constant 0 : index
    %518 = vector.load %arg6[%c3_234, %c0_235] : memref<9x64xf32, #tpu.memory_space<vmem>>, vector<1x64xf32>
    %519 = vector.broadcast %518 : vector<1x64xf32> to vector<3x64xf32>
    %520 = arith.mulf %517, %519 : vector<3x64xf32>
    %cst_236 = arith.constant 1.875000e-01 : f32
    %521 = vector.broadcast %cst_236 : f32 to vector<3x64xf32>
    %522 = arith.mulf %520, %521 : vector<3x64xf32>
    %cst_237 = arith.constant 5.625000e-01 : f32
    %523 = vector.broadcast %cst_237 : f32 to vector<3x64xf32>
    %524 = arith.mulf %398, %523 : vector<3x64xf32>
    %525 = arith.addf %522, %524 : vector<3x64xf32>
    %cst_238 = arith.constant 0.000000e+00 : f32
    %526 = vector.broadcast %cst_238 : f32 to vector<3x7xf32>
    %527 = vector.extract_strided_slice %398 {offsets = [0, 7], sizes = [3, 57], strides = [1, 1]} : vector<3x64xf32> to vector<3x57xf32>
    %528 = tpu.concatenate %527, %526 in 1 : vector<3x57xf32>, vector<3x7xf32> -> vector<3x64xf32>
    %c6_239 = arith.constant 6 : index
    %c0_240 = arith.constant 0 : index
    %529 = vector.load %arg6[%c6_239, %c0_240] : memref<9x64xf32, #tpu.memory_space<vmem>>, vector<1x64xf32>
    %530 = vector.broadcast %529 : vector<1x64xf32> to vector<3x64xf32>
    %531 = arith.mulf %528, %530 : vector<3x64xf32>
    %cst_241 = arith.constant 6.250000e-02 : f32
    %532 = vector.broadcast %cst_241 : f32 to vector<3x64xf32>
    %533 = arith.mulf %531, %532 : vector<3x64xf32>
    %534 = arith.addf %525, %533 : vector<3x64xf32>
    %cst_242 = arith.constant 0.000000e+00 : f32
    %535 = vector.broadcast %cst_242 : f32 to vector<3x8xf32>
    %536 = vector.extract_strided_slice %398 {offsets = [0, 8], sizes = [3, 56], strides = [1, 1]} : vector<3x64xf32> to vector<3x56xf32>
    %537 = tpu.concatenate %536, %535 in 1 : vector<3x56xf32>, vector<3x8xf32> -> vector<3x64xf32>
    %c7_243 = arith.constant 7 : index
    %c0_244 = arith.constant 0 : index
    %538 = vector.load %arg6[%c7_243, %c0_244] : memref<9x64xf32, #tpu.memory_space<vmem>>, vector<1x64xf32>
    %539 = vector.broadcast %538 : vector<1x64xf32> to vector<3x64xf32>
    %540 = arith.mulf %537, %539 : vector<3x64xf32>
    %cst_245 = arith.constant 1.875000e-01 : f32
    %541 = vector.broadcast %cst_245 : f32 to vector<3x64xf32>
    %542 = arith.mulf %540, %541 : vector<3x64xf32>
    %543 = arith.addf %534, %542 : vector<3x64xf32>
    %cst_246 = arith.constant 5.625000e-01 : f32
    %544 = vector.broadcast %cst_246 : f32 to vector<3x64xf32>
    %545 = arith.mulf %398, %544 : vector<3x64xf32>
    %cst_247 = arith.constant 0.000000e+00 : f32
    %546 = vector.broadcast %cst_247 : f32 to vector<3x1xf32>
    %547 = vector.extract_strided_slice %398 {offsets = [0, 1], sizes = [3, 63], strides = [1, 1]} : vector<3x64xf32> to vector<3x63xf32>
    %548 = tpu.concatenate %547, %546 in 1 : vector<3x63xf32>, vector<3x1xf32> -> vector<3x64xf32>
    %c5_248 = arith.constant 5 : index
    %c0_249 = arith.constant 0 : index
    %549 = vector.load %arg6[%c5_248, %c0_249] : memref<9x64xf32, #tpu.memory_space<vmem>>, vector<1x64xf32>
    %550 = vector.broadcast %549 : vector<1x64xf32> to vector<3x64xf32>
    %551 = arith.mulf %548, %550 : vector<3x64xf32>
    %cst_250 = arith.constant 1.875000e-01 : f32
    %552 = vector.broadcast %cst_250 : f32 to vector<3x64xf32>
    %553 = arith.mulf %551, %552 : vector<3x64xf32>
    %554 = arith.addf %545, %553 : vector<3x64xf32>
    %cst_251 = arith.constant 0.000000e+00 : f32
    %555 = vector.broadcast %cst_251 : f32 to vector<3x8xf32>
    %556 = vector.extract_strided_slice %398 {offsets = [0, 8], sizes = [3, 56], strides = [1, 1]} : vector<3x64xf32> to vector<3x56xf32>
    %557 = tpu.concatenate %556, %555 in 1 : vector<3x56xf32>, vector<3x8xf32> -> vector<3x64xf32>
    %c7_252 = arith.constant 7 : index
    %c0_253 = arith.constant 0 : index
    %558 = vector.load %arg6[%c7_252, %c0_253] : memref<9x64xf32, #tpu.memory_space<vmem>>, vector<1x64xf32>
    %559 = vector.broadcast %558 : vector<1x64xf32> to vector<3x64xf32>
    %560 = arith.mulf %557, %559 : vector<3x64xf32>
    %cst_254 = arith.constant 1.875000e-01 : f32
    %561 = vector.broadcast %cst_254 : f32 to vector<3x64xf32>
    %562 = arith.mulf %560, %561 : vector<3x64xf32>
    %563 = arith.addf %554, %562 : vector<3x64xf32>
    %cst_255 = arith.constant 0.000000e+00 : f32
    %564 = vector.broadcast %cst_255 : f32 to vector<3x9xf32>
    %565 = vector.extract_strided_slice %398 {offsets = [0, 9], sizes = [3, 55], strides = [1, 1]} : vector<3x64xf32> to vector<3x55xf32>
    %566 = tpu.concatenate %565, %564 in 1 : vector<3x55xf32>, vector<3x9xf32> -> vector<3x64xf32>
    %c8_256 = arith.constant 8 : index
    %c0_257 = arith.constant 0 : index
    %567 = vector.load %arg6[%c8_256, %c0_257] : memref<9x64xf32, #tpu.memory_space<vmem>>, vector<1x64xf32>
    %568 = vector.broadcast %567 : vector<1x64xf32> to vector<3x64xf32>
    %569 = arith.mulf %566, %568 : vector<3x64xf32>
    %cst_258 = arith.constant 6.250000e-02 : f32
    %570 = vector.broadcast %cst_258 : f32 to vector<3x64xf32>
    %571 = arith.mulf %569, %570 : vector<3x64xf32>
    %572 = arith.addf %563, %571 : vector<3x64xf32>
    %573 = vector.extract_strided_slice %456 {offsets = [0, 0], sizes = [32, 64], strides = [1, 1]} : vector<128x64xf32> to vector<32x64xf32>
    %574 = tpu.concatenate %573, %485 in 0 : vector<32x64xf32>, vector<3x64xf32> -> vector<35x64xf32>
    %575 = arith.truncf %574 : vector<35x64xf32> to vector<35x64xbf16>
    %c0_259 = arith.constant 0 : index
    %c0_260 = arith.constant 0 : index
    %576 = vector.load %arg9[%c0_259, %c0_260] : memref<256x256xbf16, #tpu.memory_space<vmem>>, vector<64x256xbf16>
    %cst_261 = arith.constant dense<0.000000e+00> : vector<35x256xf32>
    %577 = tpu.matmul %575, %576, %cst_261 {dimension_numbers = #tpu.dot_dimension_numbers<[1], [0], [0], [1], [0, 0, 1, 1], [], []>} : vector<35x64xbf16>, vector<64x256xbf16>, vector<35x256xf32> -> vector<35x256xf32>
    %578 = vector.extract_strided_slice %456 {offsets = [32, 0], sizes = [32, 64], strides = [1, 1]} : vector<128x64xf32> to vector<32x64xf32>
    %579 = tpu.concatenate %578, %514 in 0 : vector<32x64xf32>, vector<3x64xf32> -> vector<35x64xf32>
    %580 = arith.truncf %579 : vector<35x64xf32> to vector<35x64xbf16>
    %c64 = arith.constant 64 : index
    %c0_262 = arith.constant 0 : index
    %581 = vector.load %arg9[%c64, %c0_262] : memref<256x256xbf16, #tpu.memory_space<vmem>>, vector<64x256xbf16>
    %cst_263 = arith.constant dense<0.000000e+00> : vector<35x256xf32>
    %582 = tpu.matmul %580, %581, %cst_263 {dimension_numbers = #tpu.dot_dimension_numbers<[1], [0], [0], [1], [0, 0, 1, 1], [], []>} : vector<35x64xbf16>, vector<64x256xbf16>, vector<35x256xf32> -> vector<35x256xf32>
    %583 = arith.addf %577, %582 : vector<35x256xf32>
    %584 = vector.extract_strided_slice %456 {offsets = [64, 0], sizes = [32, 64], strides = [1, 1]} : vector<128x64xf32> to vector<32x64xf32>
    %585 = tpu.concatenate %584, %543 in 0 : vector<32x64xf32>, vector<3x64xf32> -> vector<35x64xf32>
    %586 = arith.truncf %585 : vector<35x64xf32> to vector<35x64xbf16>
    %c128 = arith.constant 128 : index
    %c0_264 = arith.constant 0 : index
    %587 = vector.load %arg9[%c128, %c0_264] : memref<256x256xbf16, #tpu.memory_space<vmem>>, vector<64x256xbf16>
    %cst_265 = arith.constant dense<0.000000e+00> : vector<35x256xf32>
    %588 = tpu.matmul %586, %587, %cst_265 {dimension_numbers = #tpu.dot_dimension_numbers<[1], [0], [0], [1], [0, 0, 1, 1], [], []>} : vector<35x64xbf16>, vector<64x256xbf16>, vector<35x256xf32> -> vector<35x256xf32>
    %589 = arith.addf %583, %588 : vector<35x256xf32>
    %590 = vector.extract_strided_slice %456 {offsets = [96, 0], sizes = [32, 64], strides = [1, 1]} : vector<128x64xf32> to vector<32x64xf32>
    %591 = tpu.concatenate %590, %572 in 0 : vector<32x64xf32>, vector<3x64xf32> -> vector<35x64xf32>
    %592 = arith.truncf %591 : vector<35x64xf32> to vector<35x64xbf16>
    %c192 = arith.constant 192 : index
    %c0_266 = arith.constant 0 : index
    %593 = vector.load %arg9[%c192, %c0_266] : memref<256x256xbf16, #tpu.memory_space<vmem>>, vector<64x256xbf16>
    %cst_267 = arith.constant dense<0.000000e+00> : vector<35x256xf32>
    %594 = tpu.matmul %592, %593, %cst_267 {dimension_numbers = #tpu.dot_dimension_numbers<[1], [0], [0], [1], [0, 0, 1, 1], [], []>} : vector<35x64xbf16>, vector<64x256xbf16>, vector<35x256xf32> -> vector<35x256xf32>
    %595 = arith.addf %589, %594 : vector<35x256xf32>
    %596 = vector.extract_strided_slice %595 {offsets = [0, 0], sizes = [32, 256], strides = [1, 1]} : vector<35x256xf32> to vector<32x256xf32>
    %597 = vector.broadcast %400 : vector<32x1xf32> to vector<32x256xf32>
    %598 = arith.mulf %596, %597 : vector<32x256xf32>
    %599 = vector.broadcast %403 : vector<1x256xf32> to vector<32x256xf32>
    %600 = arith.addf %598, %599 : vector<32x256xf32>
    %601 = vector.broadcast %402 : vector<32x1xf32> to vector<32x256xf32>
    %602 = arith.addf %600, %601 : vector<32x256xf32>
    %cst_268 = arith.constant 0.000000e+00 : f32
    %603 = vector.broadcast %cst_268 : f32 to vector<32x256xf32>
    %604 = arith.cmpf olt, %602, %603 : vector<32x256xf32>
    %cst_269 = arith.constant 2.000000e-01 : f32
    %605 = vector.broadcast %cst_269 : f32 to vector<32x256xf32>
    %606 = arith.mulf %605, %602 : vector<32x256xf32>
    %607 = arith.select %604, %606, %602 : vector<32x256xi1>, vector<32x256xf32>
    %cst_270 = arith.constant 1.41421354 : f32
    %608 = vector.broadcast %cst_270 : f32 to vector<32x256xf32>
    %609 = arith.mulf %607, %608 : vector<32x256xf32>
    %cst_271 = arith.constant -2.560000e+02 : f32
    %cst_272 = arith.constant 2.560000e+02 : f32
    %610 = vector.broadcast %cst_271 : f32 to vector<32x256xf32>
    %611 = arith.maximumf %610, %609 : vector<32x256xf32>
    %612 = vector.broadcast %cst_272 : f32 to vector<32x256xf32>
    %613 = arith.minimumf %612, %611 : vector<32x256xf32>
    %614 = vector.extract_strided_slice %595 {offsets = [32, 0], sizes = [3, 256], strides = [1, 1]} : vector<35x256xf32> to vector<3x256xf32>
    %c1_273 = arith.constant 1 : index
    %c0_274 = arith.constant 0 : index
    %615 = vector.load %arg21[%c1_273, %c0_274] : memref<2x256xf32, #tpu.memory_space<vmem>>, vector<1x256xf32>
    %616 = vector.extract_strided_slice %1 {offsets = [192, 0], sizes = [32, 1], strides = [1, 1]} : vector<256x1xf32> to vector<32x1xf32>
    %617 = vector.extract_strided_slice %3 {offsets = [128, 0], sizes = [32, 1], strides = [1, 1]} : vector<160x1xf32> to vector<32x1xf32>
    %c0_275 = arith.constant 0 : index
    %c0_276 = arith.constant 0 : index
    %618 = vector.load %arg20[%c0_275, %c0_276] : memref<32x288xbf16, #tpu.memory_space<vmem>>, vector<32x288xbf16>
    %619 = vector.extract_strided_slice %4 {offsets = [128, 0], sizes = [32, 1], strides = [1, 1]} : vector<160x1xf32> to vector<32x1xf32>
    %620 = vector.broadcast %616 : vector<32x1xf32> to vector<32x256xf32>
    %621 = arith.mulf %613, %620 : vector<32x256xf32>
    %cst_277 = arith.constant 0.000000e+00 : f32
    %622 = vector.broadcast %cst_277 : f32 to vector<32x17xf32>
    %623 = vector.extract_strided_slice %621 {offsets = [0, 0], sizes = [32, 239], strides = [1, 1]} : vector<32x256xf32> to vector<32x239xf32>
    %624 = tpu.concatenate %622, %623 in 1 : vector<32x17xf32>, vector<32x239xf32> -> vector<32x256xf32>
    %c0_278 = arith.constant 0 : index
    %c0_279 = arith.constant 0 : index
    %625 = vector.load %arg7[%c0_278, %c0_279] : memref<9x256xf32, #tpu.memory_space<vmem>>, vector<1x256xf32>
    %626 = vector.broadcast %625 : vector<1x256xf32> to vector<32x256xf32>
    %627 = arith.mulf %624, %626 : vector<32x256xf32>
    %cst_280 = arith.constant 0.000000e+00 : f32
    %628 = vector.broadcast %cst_280 : f32 to vector<32x16xf32>
    %629 = vector.extract_strided_slice %621 {offsets = [0, 0], sizes = [32, 240], strides = [1, 1]} : vector<32x256xf32> to vector<32x240xf32>
    %630 = tpu.concatenate %628, %629 in 1 : vector<32x16xf32>, vector<32x240xf32> -> vector<32x256xf32>
    %c1_281 = arith.constant 1 : index
    %c0_282 = arith.constant 0 : index
    %631 = vector.load %arg7[%c1_281, %c0_282] : memref<9x256xf32, #tpu.memory_space<vmem>>, vector<1x256xf32>
    %632 = vector.broadcast %631 : vector<1x256xf32> to vector<32x256xf32>
    %633 = arith.mulf %630, %632 : vector<32x256xf32>
    %cst_283 = arith.constant 0.000000e+00 : f32
    %634 = vector.broadcast %cst_283 : f32 to vector<32x15xf32>
    %635 = vector.extract_strided_slice %621 {offsets = [0, 0], sizes = [32, 241], strides = [1, 1]} : vector<32x256xf32> to vector<32x241xf32>
    %636 = tpu.concatenate %634, %635 in 1 : vector<32x15xf32>, vector<32x241xf32> -> vector<32x256xf32>
    %c2_284 = arith.constant 2 : index
    %c0_285 = arith.constant 0 : index
    %637 = vector.load %arg7[%c2_284, %c0_285] : memref<9x256xf32, #tpu.memory_space<vmem>>, vector<1x256xf32>
    %638 = vector.broadcast %637 : vector<1x256xf32> to vector<32x256xf32>
    %639 = arith.mulf %636, %638 : vector<32x256xf32>
    %cst_286 = arith.constant 0.000000e+00 : f32
    %640 = vector.broadcast %cst_286 : f32 to vector<32x1xf32>
    %641 = vector.extract_strided_slice %621 {offsets = [0, 0], sizes = [32, 255], strides = [1, 1]} : vector<32x256xf32> to vector<32x255xf32>
    %642 = tpu.concatenate %640, %641 in 1 : vector<32x1xf32>, vector<32x255xf32> -> vector<32x256xf32>
    %c3_287 = arith.constant 3 : index
    %c0_288 = arith.constant 0 : index
    %643 = vector.load %arg7[%c3_287, %c0_288] : memref<9x256xf32, #tpu.memory_space<vmem>>, vector<1x256xf32>
    %644 = vector.broadcast %643 : vector<1x256xf32> to vector<32x256xf32>
    %645 = arith.mulf %642, %644 : vector<32x256xf32>
    %cst_289 = arith.constant 0.000000e+00 : f32
    %646 = vector.broadcast %cst_289 : f32 to vector<32x1xf32>
    %647 = vector.extract_strided_slice %621 {offsets = [0, 1], sizes = [32, 255], strides = [1, 1]} : vector<32x256xf32> to vector<32x255xf32>
    %648 = tpu.concatenate %647, %646 in 1 : vector<32x255xf32>, vector<32x1xf32> -> vector<32x256xf32>
    %c5_290 = arith.constant 5 : index
    %c0_291 = arith.constant 0 : index
    %649 = vector.load %arg7[%c5_290, %c0_291] : memref<9x256xf32, #tpu.memory_space<vmem>>, vector<1x256xf32>
    %650 = vector.broadcast %649 : vector<1x256xf32> to vector<32x256xf32>
    %651 = arith.mulf %648, %650 : vector<32x256xf32>
    %cst_292 = arith.constant 0.000000e+00 : f32
    %652 = vector.broadcast %cst_292 : f32 to vector<32x15xf32>
    %653 = vector.extract_strided_slice %621 {offsets = [0, 15], sizes = [32, 241], strides = [1, 1]} : vector<32x256xf32> to vector<32x241xf32>
    %654 = tpu.concatenate %653, %652 in 1 : vector<32x241xf32>, vector<32x15xf32> -> vector<32x256xf32>
    %c6_293 = arith.constant 6 : index
    %c0_294 = arith.constant 0 : index
    %655 = vector.load %arg7[%c6_293, %c0_294] : memref<9x256xf32, #tpu.memory_space<vmem>>, vector<1x256xf32>
    %656 = vector.broadcast %655 : vector<1x256xf32> to vector<32x256xf32>
    %657 = arith.mulf %654, %656 : vector<32x256xf32>
    %cst_295 = arith.constant 0.000000e+00 : f32
    %658 = vector.broadcast %cst_295 : f32 to vector<32x16xf32>
    %659 = vector.extract_strided_slice %621 {offsets = [0, 16], sizes = [32, 240], strides = [1, 1]} : vector<32x256xf32> to vector<32x240xf32>
    %660 = tpu.concatenate %659, %658 in 1 : vector<32x240xf32>, vector<32x16xf32> -> vector<32x256xf32>
    %c7_296 = arith.constant 7 : index
    %c0_297 = arith.constant 0 : index
    %661 = vector.load %arg7[%c7_296, %c0_297] : memref<9x256xf32, #tpu.memory_space<vmem>>, vector<1x256xf32>
    %662 = vector.broadcast %661 : vector<1x256xf32> to vector<32x256xf32>
    %663 = arith.mulf %660, %662 : vector<32x256xf32>
    %cst_298 = arith.constant 0.000000e+00 : f32
    %664 = vector.broadcast %cst_298 : f32 to vector<32x17xf32>
    %665 = vector.extract_strided_slice %621 {offsets = [0, 17], sizes = [32, 239], strides = [1, 1]} : vector<32x256xf32> to vector<32x239xf32>
    %666 = tpu.concatenate %665, %664 in 1 : vector<32x239xf32>, vector<32x17xf32> -> vector<32x256xf32>
    %c8_299 = arith.constant 8 : index
    %c0_300 = arith.constant 0 : index
    %667 = vector.load %arg7[%c8_299, %c0_300] : memref<9x256xf32, #tpu.memory_space<vmem>>, vector<1x256xf32>
    %668 = vector.broadcast %667 : vector<1x256xf32> to vector<32x256xf32>
    %669 = arith.mulf %666, %668 : vector<32x256xf32>
    %670 = tpu.concatenate %627, %633, %639, %645, %621, %651, %657, %663, %669 in 0 : vector<32x256xf32>, vector<32x256xf32>, vector<32x256xf32>, vector<32x256xf32>, vector<32x256xf32>, vector<32x256xf32>, vector<32x256xf32>, vector<32x256xf32>, vector<32x256xf32> -> vector<288x256xf32>
    %671 = arith.truncf %670 : vector<288x256xf32> to vector<288x256xbf16>
    %cst_301 = arith.constant dense<0.000000e+00> : vector<32x256xf32>
    %672 = tpu.matmul %618, %671, %cst_301 {dimension_numbers = #tpu.dot_dimension_numbers<[1], [0], [0], [1], [0, 0, 1, 1], [], []>} : vector<32x288xbf16>, vector<288x256xbf16>, vector<32x256xf32> -> vector<32x256xf32>
    %673 = vector.broadcast %617 : vector<32x1xf32> to vector<32x256xf32>
    %674 = arith.mulf %672, %673 : vector<32x256xf32>
    %675 = vector.broadcast %615 : vector<1x256xf32> to vector<32x256xf32>
    %676 = arith.addf %674, %675 : vector<32x256xf32>
    %677 = vector.broadcast %619 : vector<32x1xf32> to vector<32x256xf32>
    %678 = arith.addf %676, %677 : vector<32x256xf32>
    %cst_302 = arith.constant 0.000000e+00 : f32
    %679 = vector.broadcast %cst_302 : f32 to vector<32x256xf32>
    %680 = arith.cmpf olt, %678, %679 : vector<32x256xf32>
    %cst_303 = arith.constant 2.000000e-01 : f32
    %681 = vector.broadcast %cst_303 : f32 to vector<32x256xf32>
    %682 = arith.mulf %681, %678 : vector<32x256xf32>
    %683 = arith.select %680, %682, %678 : vector<32x256xi1>, vector<32x256xf32>
    %cst_304 = arith.constant 1.41421354 : f32
    %684 = vector.broadcast %cst_304 : f32 to vector<32x256xf32>
    %685 = arith.mulf %683, %684 : vector<32x256xf32>
    %cst_305 = arith.constant -2.560000e+02 : f32
    %cst_306 = arith.constant 2.560000e+02 : f32
    %686 = vector.broadcast %cst_305 : f32 to vector<32x256xf32>
    %687 = arith.maximumf %686, %685 : vector<32x256xf32>
    %688 = vector.broadcast %cst_306 : f32 to vector<32x256xf32>
    %689 = arith.minimumf %688, %687 : vector<32x256xf32>
    %690 = vector.extract_strided_slice %1 {offsets = [224, 0], sizes = [32, 1], strides = [1, 1]} : vector<256x1xf32> to vector<32x1xf32>
    %c0_307 = arith.constant 0 : index
    %c0_308 = arith.constant 0 : index
    %691 = vector.load %arg22[%c0_307, %c0_308] : memref<3x32xbf16, #tpu.memory_space<vmem>>, vector<3x32xbf16>
    %c0_309 = arith.constant 0 : index
    %c0_310 = arith.constant 0 : index
    %692 = vector.load %arg23[%c0_309, %c0_310] : memref<3x1xf32, #tpu.memory_space<vmem>>, vector<3x1xf32>
    %693 = vector.broadcast %690 : vector<32x1xf32> to vector<32x256xf32>
    %694 = arith.mulf %689, %693 : vector<32x256xf32>
    %695 = arith.truncf %694 : vector<32x256xf32> to vector<32x256xbf16>
    %cst_311 = arith.constant dense<0.000000e+00> : vector<3x256xf32>
    %696 = tpu.matmul %691, %695, %cst_311 {dimension_numbers = #tpu.dot_dimension_numbers<[1], [0], [0], [1], [0, 0, 1, 1], [], []>} : vector<3x32xbf16>, vector<32x256xbf16>, vector<3x256xf32> -> vector<3x256xf32>
    %697 = vector.broadcast %692 : vector<3x1xf32> to vector<3x256xf32>
    %698 = arith.addf %696, %697 : vector<3x256xf32>
    %cst_312 = arith.constant -2.560000e+02 : f32
    %cst_313 = arith.constant 2.560000e+02 : f32
    %699 = vector.broadcast %cst_312 : f32 to vector<3x256xf32>
    %700 = arith.maximumf %699, %698 : vector<3x256xf32>
    %701 = vector.broadcast %cst_313 : f32 to vector<3x256xf32>
    %702 = arith.minimumf %701, %700 : vector<3x256xf32>
    %703 = arith.addf %614, %702 : vector<3x256xf32>
    %c0_314 = arith.constant 0 : index
    %c0_315 = arith.constant 0 : index
    %c0_316 = arith.constant 0 : index
    %704 = vector.load %arg24[%c0_314, %c0_315, %c0_316] : memref<1x32x256xf32, #tpu.memory_space<vmem>>, vector<1x32x256xf32>
    %705 = vector.shape_cast %704 : vector<1x32x256xf32> to vector<32x256xf32>
    %706 = vector.shape_cast %689 : vector<32x256xf32> to vector<1x32x256xf32>
    tpu.vector_store %arg24[%c0_314, %c0_315, %c0_316], %706 {strides = array<i32>} : memref<1x32x256xf32, #tpu.memory_space<vmem>>, vector<1x32x256xf32>,
    %c0_317 = arith.constant 0 : index
    %c0_318 = arith.constant 0 : index
    %c0_319 = arith.constant 0 : index
    %707 = vector.load %arg25[%c0_317, %c0_318, %c0_319] : memref<1x3x256xf32, #tpu.memory_space<vmem>>, vector<1x3x256xf32>
    %708 = vector.shape_cast %707 : vector<1x3x256xf32> to vector<3x256xf32>
    %709 = vector.shape_cast %703 : vector<3x256xf32> to vector<1x3x256xf32>
    tpu.vector_store %arg25[%c0_317, %c0_318, %c0_319], %709 {strides = array<i32>} : memref<1x3x256xf32, #tpu.memory_space<vmem>>, vector<1x3x256xf32>,
    return
  }
  func.func @transform_0(%arg0: i32) -> (i32, i32, i32) {
    %c0_i32 = arith.constant 0 : i32
    %c0_i32_0 = arith.constant 0 : i32
    %c0_i32_1 = arith.constant 0 : i32
    return %arg0, %c0_i32, %c0_i32_0 : i32, i32, i32
  }
  func.func @transform_1(%arg0: i32) -> (i32, i32, i32) {
    %c0_i32 = arith.constant 0 : i32
    %c0_i32_0 = arith.constant 0 : i32
    %c0_i32_1 = arith.constant 0 : i32
    return %arg0, %c0_i32, %c0_i32_0 : i32, i32, i32
  }
  func.func @transform_2(%arg0: i32) -> (i32, i32) {
    %c0_i32 = arith.constant 0 : i32
    %c0_i32_0 = arith.constant 0 : i32
    %c0_i32_1 = arith.constant 0 : i32
    return %c0_i32, %c0_i32_0 : i32, i32
  }
  func.func @transform_3(%arg0: i32) -> (i32, i32) {
    %c0_i32 = arith.constant 0 : i32
    %c0_i32_0 = arith.constant 0 : i32
    %c0_i32_1 = arith.constant 0 : i32
    return %c0_i32, %c0_i32_0 : i32, i32
  }
  func.func @transform_4(%arg0: i32) -> (i32, i32) {
    %c0_i32 = arith.constant 0 : i32
    %c0_i32_0 = arith.constant 0 : i32
    %c0_i32_1 = arith.constant 0 : i32
    return %c0_i32, %c0_i32_0 : i32, i32
  }
  func.func @transform_5(%arg0: i32) -> (i32, i32) {
    %c0_i32 = arith.constant 0 : i32
    %c0_i32_0 = arith.constant 0 : i32
    %c0_i32_1 = arith.constant 0 : i32
    return %c0_i32, %c0_i32_0 : i32, i32
  }
  func.func @transform_6(%arg0: i32) -> (i32, i32) {
    %c0_i32 = arith.constant 0 : i32
    %c0_i32_0 = arith.constant 0 : i32
    %c0_i32_1 = arith.constant 0 : i32
    return %c0_i32, %c0_i32_0 : i32, i32
  }
  func.func @transform_7(%arg0: i32) -> (i32, i32) {
    %c0_i32 = arith.constant 0 : i32
    %c0_i32_0 = arith.constant 0 : i32
    %c0_i32_1 = arith.constant 0 : i32
    return %c0_i32, %c0_i32_0 : i32, i32
  }
  func.func @transform_8(%arg0: i32) -> (i32, i32) {
    %c0_i32 = arith.constant 0 : i32
    %c0_i32_0 = arith.constant 0 : i32
    %c0_i32_1 = arith.constant 0 : i32
    return %c0_i32, %c0_i32_0 : i32, i32
  }
  func.func @transform_9(%arg0: i32) -> (i32, i32) {
    %c0_i32 = arith.constant 0 : i32
    %c0_i32_0 = arith.constant 0 : i32
    %c0_i32_1 = arith.constant 0 : i32
    return %c0_i32, %c0_i32_0 : i32, i32
  }
  func.func @transform_10(%arg0: i32) -> (i32, i32) {
    %c0_i32 = arith.constant 0 : i32
    %c0_i32_0 = arith.constant 0 : i32
    %c0_i32_1 = arith.constant 0 : i32
    return %c0_i32, %c0_i32_0 : i32, i32
  }
  func.func @transform_11(%arg0: i32) -> (i32, i32) {
    %c0_i32 = arith.constant 0 : i32
    %c0_i32_0 = arith.constant 0 : i32
    %c0_i32_1 = arith.constant 0 : i32
    return %c0_i32, %c0_i32_0 : i32, i32
  }
  func.func @transform_12(%arg0: i32) -> (i32, i32) {
    %c0_i32 = arith.constant 0 : i32
    %c0_i32_0 = arith.constant 0 : i32
    %c0_i32_1 = arith.constant 0 : i32
    return %c0_i32, %c0_i32_0 : i32, i32
  }
  func.func @transform_13(%arg0: i32) -> (i32, i32) {
    %c0_i32 = arith.constant 0 : i32
    %c0_i32_0 = arith.constant 0 : i32
    %c0_i32_1 = arith.constant 0 : i32
    return %c0_i32, %c0_i32_0 : i32, i32
  }
  func.func @transform_14(%arg0: i32) -> (i32, i32) {
    %c0_i32 = arith.constant 0 : i32
    %c0_i32_0 = arith.constant 0 : i32
    %c0_i32_1 = arith.constant 0 : i32
    return %c0_i32, %c0_i32_0 : i32, i32
  }
  func.func @transform_15(%arg0: i32) -> (i32, i32) {
    %c0_i32 = arith.constant 0 : i32
    %c0_i32_0 = arith.constant 0 : i32
    %c0_i32_1 = arith.constant 0 : i32
    return %c0_i32, %c0_i32_0 : i32, i32
  }
  func.func @transform_16(%arg0: i32) -> (i32, i32) {
    %c0_i32 = arith.constant 0 : i32
    %c0_i32_0 = arith.constant 0 : i32
    %c0_i32_1 = arith.constant 0 : i32
    return %c0_i32, %c0_i32_0 : i32, i32
  }
  func.func @transform_17(%arg0: i32) -> (i32, i32) {
    %c0_i32 = arith.constant 0 : i32
    %c0_i32_0 = arith.constant 0 : i32
    %c0_i32_1 = arith.constant 0 : i32
    return %c0_i32, %c0_i32_0 : i32, i32
  }
  func.func @transform_18(%arg0: i32) -> (i32, i32) {
    %c0_i32 = arith.constant 0 : i32
    %c0_i32_0 = arith.constant 0 : i32
    %c0_i32_1 = arith.constant 0 : i32
    return %c0_i32, %c0_i32_0 : i32, i32
  }
  func.func @transform_19(%arg0: i32) -> (i32, i32) {
    %c0_i32 = arith.constant 0 : i32
    %c0_i32_0 = arith.constant 0 : i32
    %c0_i32_1 = arith.constant 0 : i32
    return %c0_i32, %c0_i32_0 : i32, i32
  }
  func.func @transform_20(%arg0: i32) -> (i32, i32) {
    %c0_i32 = arith.constant 0 : i32
    %c0_i32_0 = arith.constant 0 : i32
    %c0_i32_1 = arith.constant 0 : i32
    return %c0_i32, %c0_i32_0 : i32, i32
  }
  func.func @transform_21(%arg0: i32) -> (i32, i32) {
    %c0_i32 = arith.constant 0 : i32
    %c0_i32_0 = arith.constant 0 : i32
    %c0_i32_1 = arith.constant 0 : i32
    return %c0_i32, %c0_i32_0 : i32, i32
  }
  func.func @transform_22(%arg0: i32) -> (i32, i32) {
    %c0_i32 = arith.constant 0 : i32
    %c0_i32_0 = arith.constant 0 : i32
    %c0_i32_1 = arith.constant 0 : i32
    return %c0_i32, %c0_i32_0 : i32, i32
  }
  func.func @transform_23(%arg0: i32) -> (i32, i32, i32) {
    %c0_i32 = arith.constant 0 : i32
    %c0_i32_0 = arith.constant 0 : i32
    %c0_i32_1 = arith.constant 0 : i32
    return %arg0, %c0_i32, %c0_i32_0 : i32, i32, i32
  }
  func.func @transform_24(%arg0: i32) -> (i32, i32, i32) {
    %c0_i32 = arith.constant 0 : i32
    %c0_i32_0 = arith.constant 0 : i32
    %c0_i32_1 = arith.constant 0 : i32
    return %arg0, %c0_i32, %c0_i32_0 : i32, i32, i32
  }
}

</mosaic_0001>

<llo_original>
// kernel: sg2_student_half_forward.1
$region0: #{sg2_student_half_forward.1}
  #allocation0 [shape = 'u32[]', space=smem, size = 0x4, offset = 0x4, fixed_abs, tag = 'smem constant byte address 0x4 - core index']
  #allocation1 [shape = 'u32[72,128]{1,0:T(1,128)}', space=vmem, size = 0x9000, scoped, tag = 'internal scratch']
  %s0 = inlined_call_operand.vmem [shape: f32[2,256,1], index: 0, kind: input, shape index: {}]
  %s1 = inlined_call_operand.vmem [shape: f32[2,160,1], index: 1, kind: input, shape index: {}]
  %s2 = inlined_call_operand.vmem [shape: f32[160,1], index: 2, kind: input, shape index: {}]
  %s3 = inlined_call_operand.vmem [shape: f32[32,16], index: 3, kind: input, shape index: {}]
  %s4 = inlined_call_operand.vmem [shape: f32[9,16], index: 4, kind: input, shape index: {}]
  %s5 = inlined_call_operand.vmem [shape: f32[9,64], index: 5, kind: input, shape index: {}]
  %s6 = inlined_call_operand.vmem [shape: f32[9,256], index: 6, kind: input, shape index: {}]
  %s7 = inlined_call_operand.vmem [shape: bf16[64,64], index: 7, kind: input, shape index: {}]
  %s8 = inlined_call_operand.vmem [shape: bf16[256,256], index: 8, kind: input, shape index: {}]
  %s9 = inlined_call_operand.vmem [shape: bf16[32,288], index: 9, kind: input, shape index: {}]
  %s10 = inlined_call_operand.vmem [shape: f32[1,16], index: 10, kind: input, shape index: {}]
  %s11 = inlined_call_operand.vmem [shape: bf16[3,32], index: 11, kind: input, shape index: {}]
  %s12 = inlined_call_operand.vmem [shape: f32[3,1], index: 12, kind: input, shape index: {}]
  %s13 = inlined_call_operand.vmem [shape: bf16[128,288], index: 13, kind: input, shape index: {}]
  %s14 = inlined_call_operand.vmem [shape: bf16[32,288], index: 14, kind: input, shape index: {}]
  %s15 = inlined_call_operand.vmem [shape: f32[2,64], index: 15, kind: input, shape index: {}]
  %s16 = inlined_call_operand.vmem [shape: bf16[3,32], index: 16, kind: input, shape index: {}]
  %s17 = inlined_call_operand.vmem [shape: f32[3,1], index: 17, kind: input, shape index: {}]
  %s18 = inlined_call_operand.vmem [shape: bf16[128,288], index: 18, kind: input, shape index: {}]
  %s19 = inlined_call_operand.vmem [shape: bf16[32,288], index: 19, kind: input, shape index: {}]
  %s20 = inlined_call_operand.vmem [shape: f32[2,256], index: 20, kind: input, shape index: {}]
  %s21 = inlined_call_operand.vmem [shape: bf16[3,32], index: 21, kind: input, shape index: {}]
  %s22 = inlined_call_operand.vmem [shape: f32[3,1], index: 22, kind: input, shape index: {}]
  %s23 = inlined_call_operand.vmem [shape: f32[2,32,256], index: 23, kind: output, shape index: {0}]
  %s24 = inlined_call_operand.vmem [shape: f32[2,3,256], index: 24, kind: output, shape index: {1}]
  %25 = xla_tuple %s23, %s24
  %s26 = sld [smem:[#allocation0]]
  $region133: #{sg2_student_half_forward.1} parent=0
    _
  %s28 = ssub.s32 1, %s26
  %s29 = scalar_select 0, %s28, %s26
  loop: start=0, step=1, limit=4
  $region2: #{sg2_student_half_forward.1} parent=0 // loop_pre_header
    _
  $region3: #{sg2_student_half_forward.1} parent=0 // loop_header
    %s31 = sphi 0, %s35
    %p32 = scmp.ge.s32.totalorder %s31, 4
    %s41 = sphi 0, %s43
    %s44 = sphi 0, %s41
    %s45 = sphi 0, %s44
    %s61 = sphi 0, %s45
    %s67 = sphi 0, %s69
    %s70 = sphi 0, %s67
    %s71 = sphi 0, %s70
    %s87 = sphi 0, %s71
    %s91 = sphi 0, %s91
    %s93 = sphi 0, %s91
    %s94 = sphi 0, %s93
    %s108 = sphi 0, %s94
    %s112 = sphi 0, %s112
    %s114 = sphi 0, %s112
    %s115 = sphi 0, %s114
    %s129 = sphi 0, %s115
    %s133 = sphi 0, %s133
    %s135 = sphi 0, %s133
    %s136 = sphi 0, %s135
    %s150 = sphi 0, %s136
    %s154 = sphi 0, %s154
    %s156 = sphi 0, %s154
    %s157 = sphi 0, %s156
    %s171 = sphi 0, %s157
    %s175 = sphi 0, %s175
    %s177 = sphi 0, %s175
    %s178 = sphi 0, %s177
    %s192 = sphi 0, %s178
    %s196 = sphi 0, %s196
    %s198 = sphi 0, %s196
    %s199 = sphi 0, %s198
    %s213 = sphi 0, %s199
    %s217 = sphi 0, %s217
    %s219 = sphi 0, %s217
    %s220 = sphi 0, %s219
    %s234 = sphi 0, %s220
    %s238 = sphi 0, %s238
    %s240 = sphi 0, %s238
    %s241 = sphi 0, %s240
    %s255 = sphi 0, %s241
    %s259 = sphi 0, %s259
    %s261 = sphi 0, %s259
    %s262 = sphi 0, %s261
    %s276 = sphi 0, %s262
    %s280 = sphi 0, %s280
    %s282 = sphi 0, %s280
    %s283 = sphi 0, %s282
    %s297 = sphi 0, %s283
    %s301 = sphi 0, %s301
    %s303 = sphi 0, %s301
    %s304 = sphi 0, %s303
    %s318 = sphi 0, %s304
    %s322 = sphi 0, %s322
    %s324 = sphi 0, %s322
    %s325 = sphi 0, %s324
    %s339 = sphi 0, %s325
    %s343 = sphi 0, %s343
    %s345 = sphi 0, %s343
    %s346 = sphi 0, %s345
    %s360 = sphi 0, %s346
    %s364 = sphi 0, %s364
    %s366 = sphi 0, %s364
    %s367 = sphi 0, %s366
    %s381 = sphi 0, %s367
    %s385 = sphi 0, %s385
    %s387 = sphi 0, %s385
    %s388 = sphi 0, %s387
    %s402 = sphi 0, %s388
    %s406 = sphi 0, %s406
    %s408 = sphi 0, %s406
    %s409 = sphi 0, %s408
    %s423 = sphi 0, %s409
    %s427 = sphi 0, %s427
    %s429 = sphi 0, %s427
    %s430 = sphi 0, %s429
    %s444 = sphi 0, %s430
    %s448 = sphi 0, %s448
    %s450 = sphi 0, %s448
    %s451 = sphi 0, %s450
    %s465 = sphi 0, %s451
    %s469 = sphi 0, %s469
    %s471 = sphi 0, %s469
    %s472 = sphi 0, %s471
    %s486 = sphi 0, %s472
    %s490 = sphi 0, %s490
    %s492 = sphi 0, %s490
    %s493 = sphi 0, %s492
    %s507 = sphi 0, %s493
    %s511 = sphi 0, %s511
    %s513 = sphi 0, %s511
    %s514 = sphi 0, %s513
    %s528 = sphi 0, %s514
    %s534 = sphi 0, %s536
    %s537 = sphi 0, %s534
    %s538 = sphi 0, %s537
    %s554 = sphi 0, %s538
    %s560 = sphi 0, %s562
    %s563 = sphi 0, %s560
    %s564 = sphi 0, %s563
    %s580 = sphi 0, %s564
  $region4: #{sg2_student_half_forward.1} parent=0 // loop_header_branch
    %34 = sbr.rel (%p32) target = $region8
  $region5: #{sg2_student_half_forward.1} parent=0 // loop_body
    %s36 = ssub.s32 %s31, 1
    %s37 = ssub.s32 %s31, 2
    %s38 = sadd.s32 %s31, 1
    %s39 = ssub.s32 %s31, %s38
    %p40 = scmp.eq.s32.totalorder %s39, 0
    %s42 = sadd.s32 %s41, 1
    %s43 = scalar_select %p40, %s41, %s42
    %p46 = pneg %p40
    %p47 = scmp.eq.s32.totalorder %s31, 1
    %p48 = por %p46, %p47
    %p49 = scmp.ne.s32.totalorder %s41, %s44
    %p50 = scmp.eq.s32.totalorder %s31, 0
    %p51 = por %p49, %p50
    %p52 = scmp.ne.s32.totalorder %s41, %s44
    %p53 = scmp.eq.s32.totalorder %s36, 1
    %p54 = por %p52, %p53
    %p55 = scmp.ne.s32.totalorder %s44, %s45
    %p56 = scmp.eq.s32.totalorder %s36, 0
    %p57 = por %p55, %p56
    %p58 = scmp.ne.s32.totalorder %s44, %s45
    %p59 = scmp.eq.s32.totalorder %s37, 1
    %p60 = por %p58, %p59
    %p62 = scmp.ne.s32.totalorder %s45, %s61
    %p63 = scmp.eq.s32.totalorder %s37, 0
    %p64 = por %p62, %p63
    %s65 = ssub.s32 %s31, %s38
    %p66 = scmp.eq.s32.totalorder %s65, 0
    %s68 = sadd.s32 %s67, 1
    %s69 = scalar_select %p66, %s67, %s68
    %p72 = pneg %p66
    %p73 = scmp.eq.s32.totalorder %s31, 1
    %p74 = por %p72, %p73
    %p75 = scmp.ne.s32.totalorder %s67, %s70
    %p76 = scmp.eq.s32.totalorder %s31, 0
    %p77 = por %p75, %p76
    %p78 = scmp.ne.s32.totalorder %s67, %s70
    %p79 = scmp.eq.s32.totalorder %s36, 1
    %p80 = por %p78, %p79
    %p81 = scmp.ne.s32.totalorder %s70, %s71
    %p82 = scmp.eq.s32.totalorder %s36, 0
    %p83 = por %p81, %p82
    %p84 = scmp.ne.s32.totalorder %s70, %s71
    %p85 = scmp.eq.s32.totalorder %s37, 1
    %p86 = por %p84, %p85
    %p88 = scmp.ne.s32.totalorder %s71, %s87
    %p89 = scmp.eq.s32.totalorder %s37, 0
    %p90 = por %p88, %p89
    %s92 = sadd.s32 %s91, 1
    %p95 = scmp.eq.s32.totalorder %s31, 1
    %p96 = scmp.ne.s32.totalorder %s91, %s93
    %p97 = scmp.eq.s32.totalorder %s31, 0
    %p98 = por %p96, %p97
    %p99 = scmp.ne.s32.totalorder %s91, %s93
    %p100 = scmp.eq.s32.totalorder %s36, 1
    %p101 = por %p99, %p100
    %p102 = scmp.ne.s32.totalorder %s93, %s94
    %p103 = scmp.eq.s32.totalorder %s36, 0
    %p104 = por %p102, %p103
    %p105 = scmp.ne.s32.totalorder %s93, %s94
    %p106 = scmp.eq.s32.totalorder %s37, 1
    %p107 = por %p105, %p106
    %p109 = scmp.ne.s32.totalorder %s94, %s108
    %p110 = scmp.eq.s32.totalorder %s37, 0
    %p111 = por %p109, %p110
    %s113 = sadd.s32 %s112, 1
    %p116 = scmp.eq.s32.totalorder %s31, 1
    %p117 = scmp.ne.s32.totalorder %s112, %s114
    %p118 = scmp.eq.s32.totalorder %s31, 0
    %p119 = por %p117, %p118
    %p120 = scmp.ne.s32.totalorder %s112, %s114
    %p121 = scmp.eq.s32.totalorder %s36, 1
    %p122 = por %p120, %p121
    %p123 = scmp.ne.s32.totalorder %s114, %s115
    %p124 = scmp.eq.s32.totalorder %s36, 0
    %p125 = por %p123, %p124
    %p126 = scmp.ne.s32.totalorder %s114, %s115
    %p127 = scmp.eq.s32.totalorder %s37, 1
    %p128 = por %p126, %p127
    %p130 = scmp.ne.s32.totalorder %s115, %s129
    %p131 = scmp.eq.s32.totalorder %s37, 0
    %p132 = por %p130, %p131
    %s134 = sadd.s32 %s133, 1
    %p137 = scmp.eq.s32.totalorder %s31, 1
    %p138 = scmp.ne.s32.totalorder %s133, %s135
    %p139 = scmp.eq.s32.totalorder %s31, 0
    %p140 = por %p138, %p139
    %p141 = scmp.ne.s32.totalorder %s133, %s135
    %p142 = scmp.eq.s32.totalorder %s36, 1
    %p143 = por %p141, %p142
    %p144 = scmp.ne.s32.totalorder %s135, %s136
    %p145 = scmp.eq.s32.totalorder %s36, 0
    %p146 = por %p144, %p145
    %p147 = scmp.ne.s32.totalorder %s135, %s136
    %p148 = scmp.eq.s32.totalorder %s37, 1
    %p149 = por %p147, %p148
    %p151 = scmp.ne.s32.totalorder %s136, %s150
    %p152 = scmp.eq.s32.totalorder %s37, 0
    %p153 = por %p151, %p152
    %s155 = sadd.s32 %s154, 1
    %p158 = scmp.eq.s32.totalorder %s31, 1
    %p159 = scmp.ne.s32.totalorder %s154, %s156
    %p160 = scmp.eq.s32.totalorder %s31, 0
    %p161 = por %p159, %p160
    %p162 = scmp.ne.s32.totalorder %s154, %s156
    %p163 = scmp.eq.s32.totalorder %s36, 1
    %p164 = por %p162, %p163
    %p165 = scmp.ne.s32.totalorder %s156, %s157
    %p166 = scmp.eq.s32.totalorder %s36, 0
    %p167 = por %p165, %p166
    %p168 = scmp.ne.s32.totalorder %s156, %s157
    %p169 = scmp.eq.s32.totalorder %s37, 1
    %p170 = por %p168, %p169
    %p172 = scmp.ne.s32.totalorder %s157, %s171
    %p173 = scmp.eq.s32.totalorder %s37, 0
    %p174 = por %p172, %p173
    %s176 = sadd.s32 %s175, 1
    %p179 = scmp.eq.s32.totalorder %s31, 1
    %p180 = scmp.ne.s32.totalorder %s175, %s177
    %p181 = scmp.eq.s32.totalorder %s31, 0
    %p182 = por %p180, %p181
    %p183 = scmp.ne.s32.totalorder %s175, %s177
    %p184 = scmp.eq.s32.totalorder %s36, 1
    %p185 = por %p183, %p184
    %p186 = scmp.ne.s32.totalorder %s177, %s178
    %p187 = scmp.eq.s32.totalorder %s36, 0
    %p188 = por %p186, %p187
    %p189 = scmp.ne.s32.totalorder %s177, %s178
    %p190 = scmp.eq.s32.totalorder %s37, 1
    %p191 = por %p189, %p190
    %p193 = scmp.ne.s32.totalorder %s178, %s192
    %p194 = scmp.eq.s32.totalorder %s37, 0
    %p195 = por %p193, %p194
    %s197 = sadd.s32 %s196, 1
    %p200 = scmp.eq.s32.totalorder %s31, 1
    %p201 = scmp.ne.s32.totalorder %s196, %s198
    %p202 = scmp.eq.s32.totalorder %s31, 0
    %p203 = por %p201, %p202
    %p204 = scmp.ne.s32.totalorder %s196, %s198
    %p205 = scmp.eq.s32.totalorder %s36, 1
    %p206 = por %p204, %p205
    %p207 = scmp.ne.s32.totalorder %s198, %s199
    %p208 = scmp.eq.s32.totalorder %s36, 0
    %p209 = por %p207, %p208
    %p210 = scmp.ne.s32.totalorder %s198, %s199
    %p211 = scmp.eq.s32.totalorder %s37, 1
    %p212 = por %p210, %p211
    %p214 = scmp.ne.s32.totalorder %s199, %s213
    %p215 = scmp.eq.s32.totalorder %s37, 0
    %p216 = por %p214, %p215
    %s218 = sadd.s32 %s217, 1
    %p221 = scmp.eq.s32.totalorder %s31, 1
    %p222 = scmp.ne.s32.totalorder %s217, %s219
    %p223 = scmp.eq.s32.totalorder %s31, 0
    %p224 = por %p222, %p223
    %p225 = scmp.ne.s32.totalorder %s217, %s219
    %p226 = scmp.eq.s32.totalorder %s36, 1
    %p227 = por %p225, %p226
    %p228 = scmp.ne.s32.totalorder %s219, %s220
    %p229 = scmp.eq.s32.totalorder %s36, 0
    %p230 = por %p228, %p229
    %p231 = scmp.ne.s32.totalorder %s219, %s220
    %p232 = scmp.eq.s32.totalorder %s37, 1
    %p233 = por %p231, %p232
    %p235 = scmp.ne.s32.totalorder %s220, %s234
    %p236 = scmp.eq.s32.totalorder %s37, 0
    %p237 = por %p235, %p236
    %s239 = sadd.s32 %s238, 1
    %p242 = scmp.eq.s32.totalorder %s31, 1
    %p243 = scmp.ne.s32.totalorder %s238, %s240
    %p244 = scmp.eq.s32.totalorder %s31, 0
    %p245 = por %p243, %p244
    %p246 = scmp.ne.s32.totalorder %s238, %s240
    %p247 = scmp.eq.s32.totalorder %s36, 1
    %p248 = por %p246, %p247
    %p249 = scmp.ne.s32.totalorder %s240, %s241
    %p250 = scmp.eq.s32.totalorder %s36, 0
    %p251 = por %p249, %p250
    %p252 = scmp.ne.s32.totalorder %s240, %s241
    %p253 = scmp.eq.s32.totalorder %s37, 1
    %p254 = por %p252, %p253
    %p256 = scmp.ne.s32.totalorder %s241, %s255
    %p257 = scmp.eq.s32.totalorder %s37, 0
    %p258 = por %p256, %p257
    %s260 = sadd.s32 %s259, 1
    %p263 = scmp.eq.s32.totalorder %s31, 1
    %p264 = scmp.ne.s32.totalorder %s259, %s261
    %p265 = scmp.eq.s32.totalorder %s31, 0
    %p266 = por %p264, %p265
    %p267 = scmp.ne.s32.totalorder %s259, %s261
    %p268 = scmp.eq.s32.totalorder %s36, 1
    %p269 = por %p267, %p268
    %p270 = scmp.ne.s32.totalorder %s261, %s262
    %p271 = scmp.eq.s32.totalorder %s36, 0
    %p272 = por %p270, %p271
    %p273 = scmp.ne.s32.totalorder %s261, %s262
    %p274 = scmp.eq.s32.totalorder %s37, 1
    %p275 = por %p273, %p274
    %p277 = scmp.ne.s32.totalorder %s262, %s276
    %p278 = scmp.eq.s32.totalorder %s37, 0
    %p279 = por %p277, %p278
    %s281 = sadd.s32 %s280, 1
    %p284 = scmp.eq.s32.totalorder %s31, 1
    %p285 = scmp.ne.s32.totalorder %s280, %s282
    %p286 = scmp.eq.s32.totalorder %s31, 0
    %p287 = por %p285, %p286
    %p288 = scmp.ne.s32.totalorder %s280, %s282
    %p289 = scmp.eq.s32.totalorder %s36, 1
    %p290 = por %p288, %p289
    %p291 = scmp.ne.s32.totalorder %s282, %s283
    %p292 = scmp.eq.s32.totalorder %s36, 0
    %p293 = por %p291, %p292
    %p294 = scmp.ne.s32.totalorder %s282, %s283
    %p295 = scmp.eq.s32.totalorder %s37, 1
    %p296 = por %p294, %p295
    %p298 = scmp.ne.s32.totalorder %s283, %s297
    %p299 = scmp.eq.s32.totalorder %s37, 0
    %p300 = por %p298, %p299
    %s302 = sadd.s32 %s301, 1
    %p305 = scmp.eq.s32.totalorder %s31, 1
    %p306 = scmp.ne.s32.totalorder %s301, %s303
    %p307 = scmp.eq.s32.totalorder %s31, 0
    %p308 = por %p306, %p307
    %p309 = scmp.ne.s32.totalorder %s301, %s303
    %p310 = scmp.eq.s32.totalorder %s36, 1
    %p311 = por %p309, %p310
    %p312 = scmp.ne.s32.totalorder %s303, %s304
    %p313 = scmp.eq.s32.totalorder %s36, 0
    %p314 = por %p312, %p313
    %p315 = scmp.ne.s32.totalorder %s303, %s304
    %p316 = scmp.eq.s32.totalorder %s37, 1
    %p317 = por %p315, %p316
    %p319 = scmp.ne.s32.totalorder %s304, %s318
    %p320 = scmp.eq.s32.totalorder %s37, 0
    %p321 = por %p319, %p320
    %s323 = sadd.s32 %s322, 1
    %p326 = scmp.eq.s32.totalorder %s31, 1
    %p327 = scmp.ne.s32.totalorder %s322, %s324
    %p328 = scmp.eq.s32.totalorder %s31, 0
    %p329 = por %p327, %p328
    %p330 = scmp.ne.s32.totalorder %s322, %s324
    %p331 = scmp.eq.s32.totalorder %s36, 1
    %p332 = por %p330, %p331
    %p333 = scmp.ne.s32.totalorder %s324, %s325
    %p334 = scmp.eq.s32.totalorder %s36, 0
    %p335 = por %p333, %p334
    %p336 = scmp.ne.s32.totalorder %s324, %s325
    %p337 = scmp.eq.s32.totalorder %s37, 1
    %p338 = por %p336, %p337
    %p340 = scmp.ne.s32.totalorder %s325, %s339
    %p341 = scmp.eq.s32.totalorder %s37, 0
    %p342 = por %p340, %p341
    %s344 = sadd.s32 %s343, 1
    %p347 = scmp.eq.s32.totalorder %s31, 1
    %p348 = scmp.ne.s32.totalorder %s343, %s345
    %p349 = scmp.eq.s32.totalorder %s31, 0
    %p350 = por %p348, %p349
    %p351 = scmp.ne.s32.totalorder %s343, %s345
    %p352 = scmp.eq.s32.totalorder %s36, 1
    %p353 = por %p351, %p352
    %p354 = scmp.ne.s32.totalorder %s345, %s346
    %p355 = scmp.eq.s32.totalorder %s36, 0
    %p356 = por %p354, %p355
    %p357 = scmp.ne.s32.totalorder %s345, %s346
    %p358 = scmp.eq.s32.totalorder %s37, 1
    %p359 = por %p357, %p358
    %p361 = scmp.ne.s32.totalorder %s346, %s360
    %p362 = scmp.eq.s32.totalorder %s37, 0
    %p363 = por %p361, %p362
    %s365 = sadd.s32 %s364, 1
    %p368 = scmp.eq.s32.totalorder %s31, 1
    %p369 = scmp.ne.s32.totalorder %s364, %s366
    %p370 = scmp.eq.s32.totalorder %s31, 0
    %p371 = por %p369, %p370
    %p372 = scmp.ne.s32.totalorder %s364, %s366
    %p373 = scmp.eq.s32.totalorder %s36, 1
    %p374 = por %p372, %p373
    %p375 = scmp.ne.s32.totalorder %s366, %s367
    %p376 = scmp.eq.s32.totalorder %s36, 0
    %p377 = por %p375, %p376
    %p378 = scmp.ne.s32.totalorder %s366, %s367
    %p379 = scmp.eq.s32.totalorder %s37, 1
    %p380 = por %p378, %p379
    %p382 = scmp.ne.s32.totalorder %s367, %s381
    %p383 = scmp.eq.s32.totalorder %s37, 0
    %p384 = por %p382, %p383
    %s386 = sadd.s32 %s385, 1
    %p389 = scmp.eq.s32.totalorder %s31, 1
    %p390 = scmp.ne.s32.totalorder %s385, %s387
    %p391 = scmp.eq.s32.totalorder %s31, 0
    %p392 = por %p390, %p391
    %p393 = scmp.ne.s32.totalorder %s385, %s387
    %p394 = scmp.eq.s32.totalorder %s36, 1
    %p395 = por %p393, %p394
    %p396 = scmp.ne.s32.totalorder %s387, %s388
    %p397 = scmp.eq.s32.totalorder %s36, 0
    %p398 = por %p396, %p397
    %p399 = scmp.ne.s32.totalorder %s387, %s388
    %p400 = scmp.eq.s32.totalorder %s37, 1
    %p401 = por %p399, %p400
    %p403 = scmp.ne.s32.totalorder %s388, %s402
    %p404 = scmp.eq.s32.totalorder %s37, 0
    %p405 = por %p403, %p404
    %s407 = sadd.s32 %s406, 1
    %p410 = scmp.eq.s32.totalorder %s31, 1
    %p411 = scmp.ne.s32.totalorder %s406, %s408
    %p412 = scmp.eq.s32.totalorder %s31, 0
    %p413 = por %p411, %p412
    %p414 = scmp.ne.s32.totalorder %s406, %s408
    %p415 = scmp.eq.s32.totalorder %s36, 1
    %p416 = por %p414, %p415
    %p417 = scmp.ne.s32.totalorder %s408, %s409
    %p418 = scmp.eq.s32.totalorder %s36, 0
    %p419 = por %p417, %p418
    %p420 = scmp.ne.s32.totalorder %s408, %s409
    %p421 = scmp.eq.s32.totalorder %s37, 1
    %p422 = por %p420, %p421
    %p424 = scmp.ne.s32.totalorder %s409, %s423
    %p425 = scmp.eq.s32.totalorder %s37, 0
    %p426 = por %p424, %p425
    %s428 = sadd.s32 %s427, 1
    %p431 = scmp.eq.s32.totalorder %s31, 1
    %p432 = scmp.ne.s32.totalorder %s427, %s429
    %p433 = scmp.eq.s32.totalorder %s31, 0
    %p434 = por %p432, %p433
    %p435 = scmp.ne.s32.totalorder %s427, %s429
    %p436 = scmp.eq.s32.totalorder %s36, 1
    %p437 = por %p435, %p436
    %p438 = scmp.ne.s32.totalorder %s429, %s430
    %p439 = scmp.eq.s32.totalorder %s36, 0
    %p440 = por %p438, %p439
    %p441 = scmp.ne.s32.totalorder %s429, %s430
    %p442 = scmp.eq.s32.totalorder %s37, 1
    %p443 = por %p441, %p442
    %p445 = scmp.ne.s32.totalorder %s430, %s444
    %p446 = scmp.eq.s32.totalorder %s37, 0
    %p447 = por %p445, %p446
    %s449 = sadd.s32 %s448, 1
    %p452 = scmp.eq.s32.totalorder %s31, 1
    %p453 = scmp.ne.s32.totalorder %s448, %s450
    %p454 = scmp.eq.s32.totalorder %s31, 0
    %p455 = por %p453, %p454
    %p456 = scmp.ne.s32.totalorder %s448, %s450
    %p457 = scmp.eq.s32.totalorder %s36, 1
    %p458 = por %p456, %p457
    %p459 = scmp.ne.s32.totalorder %s450, %s451
    %p460 = scmp.eq.s32.totalorder %s36, 0
    %p461 = por %p459, %p460
    %p462 = scmp.ne.s32.totalorder %s450, %s451
    %p463 = scmp.eq.s32.totalorder %s37, 1
    %p464 = por %p462, %p463
    %p466 = scmp.ne.s32.totalorder %s451, %s465
    %p467 = scmp.eq.s32.totalorder %s37, 0
    %p468 = por %p466, %p467
    %s470 = sadd.s32 %s469, 1
    %p473 = scmp.eq.s32.totalorder %s31, 1
    %p474 = scmp.ne.s32.totalorder %s469, %s471
    %p475 = scmp.eq.s32.totalorder %s31, 0
    %p476 = por %p474, %p475
    %p477 = scmp.ne.s32.totalorder %s469, %s471
    %p478 = scmp.eq.s32.totalorder %s36, 1
    %p479 = por %p477, %p478
    %p480 = scmp.ne.s32.totalorder %s471, %s472
    %p481 = scmp.eq.s32.totalorder %s36, 0
    %p482 = por %p480, %p481
    %p483 = scmp.ne.s32.totalorder %s471, %s472
    %p484 = scmp.eq.s32.totalorder %s37, 1
    %p485 = por %p483, %p484
    %p487 = scmp.ne.s32.totalorder %s472, %s486
    %p488 = scmp.eq.s32.totalorder %s37, 0
    %p489 = por %p487, %p488
    %s491 = sadd.s32 %s490, 1
    %p494 = scmp.eq.s32.totalorder %s31, 1
    %p495 = scmp.ne.s32.totalorder %s490, %s492
    %p496 = scmp.eq.s32.totalorder %s31, 0
    %p497 = por %p495, %p496
    %p498 = scmp.ne.s32.totalorder %s490, %s492
    %p499 = scmp.eq.s32.totalorder %s36, 1
    %p500 = por %p498, %p499
    %p501 = scmp.ne.s32.totalorder %s492, %s493
    %p502 = scmp.eq.s32.totalorder %s36, 0
    %p503 = por %p501, %p502
    %p504 = scmp.ne.s32.totalorder %s492, %s493
    %p505 = scmp.eq.s32.totalorder %s37, 1
    %p506 = por %p504, %p505
    %p508 = scmp.ne.s32.totalorder %s493, %s507
    %p509 = scmp.eq.s32.totalorder %s37, 0
    %p510 = por %p508, %p509
    %s512 = sadd.s32 %s511, 1
    %p515 = scmp.eq.s32.totalorder %s31, 1
    %p516 = scmp.ne.s32.totalorder %s511, %s513
    %p517 = scmp.eq.s32.totalorder %s31, 0
    %p518 = por %p516, %p517
    %p519 = scmp.ne.s32.totalorder %s511, %s513
    %p520 = scmp.eq.s32.totalorder %s36, 1
    %p521 = por %p519, %p520
    %p522 = scmp.ne.s32.totalorder %s513, %s514
    %p523 = scmp.eq.s32.totalorder %s36, 0
    %p524 = por %p522, %p523
    %p525 = scmp.ne.s32.totalorder %s513, %s514
    %p526 = scmp.eq.s32.totalorder %s37, 1
    %p527 = por %p525, %p526
    %p529 = scmp.ne.s32.totalorder %s514, %s528
    %p530 = scmp.eq.s32.totalorder %s37, 0
    %p531 = por %p529, %p530
    %s532 = ssub.s32 %s31, %s38
    %p533 = scmp.eq.s32.totalorder %s532, 0
    %s535 = sadd.s32 %s534, 1
    %s536 = scalar_select %p533, %s534, %s535
    %p539 = pneg %p533
    %p540 = scmp.eq.s32.totalorder %s31, 1
    %p541 = por %p539, %p540
    %p542 = scmp.ne.s32.totalorder %s534, %s537
    %p543 = scmp.eq.s32.totalorder %s31, 0
    %p544 = por %p542, %p543
    %p545 = scmp.ne.s32.totalorder %s534, %s537
    %p546 = scmp.eq.s32.totalorder %s36, 1
    %p547 = por %p545, %p546
    %p548 = scmp.ne.s32.totalorder %s537, %s538
    %p549 = scmp.eq.s32.totalorder %s36, 0
    %p550 = por %p548, %p549
    %p551 = scmp.ne.s32.totalorder %s537, %s538
    %p552 = scmp.eq.s32.totalorder %s37, 1
    %p553 = por %p551, %p552
    %p555 = scmp.ne.s32.totalorder %s538, %s554
    %p556 = scmp.eq.s32.totalorder %s37, 0
    %p557 = por %p555, %p556
    %s558 = ssub.s32 %s31, %s38
    %p559 = scmp.eq.s32.totalorder %s558, 0
    %s561 = sadd.s32 %s560, 1
    %s562 = scalar_select %p559, %s560, %s561
    %p565 = pneg %p559
    %p566 = scmp.eq.s32.totalorder %s31, 1
    %p567 = por %p565, %p566
    %p568 = scmp.ne.s32.totalorder %s560, %s563
    %p569 = scmp.eq.s32.totalorder %s31, 0
    %p570 = por %p568, %p569
    %p571 = scmp.ne.s32.totalorder %s560, %s563
    %p572 = scmp.eq.s32.totalorder %s36, 1
    %p573 = por %p571, %p572
    %p574 = scmp.ne.s32.totalorder %s563, %s564
    %p575 = scmp.eq.s32.totalorder %s36, 0
    %p576 = por %p574, %p575
    %p577 = scmp.ne.s32.totalorder %s563, %s564
    %p578 = scmp.eq.s32.totalorder %s37, 1
    %p579 = por %p577, %p578
    %p581 = scmp.ne.s32.totalorder %s564, %s580
    %p582 = scmp.eq.s32.totalorder %s37, 0
    %p583 = por %p581, %p582
    %p584 = scmp.le.s32.totalorder 1, %s31
    %p585 = scmp.lt.s32.totalorder %s31, 3
    %p586 = pnand %p584, %p585
    %p587 = pneg %p586
    // Predicated region
    $region9: #{sg2_student_half_forward.1} parent=5 // pred_check
      _
    $region10: #{sg2_student_half_forward.1} parent=5 // pred_check_branch
      %589 = sbr.rel (%p586) target = $region12
    $region11: #{sg2_student_half_forward.1} parent=5 // pred_region
      %s590 = ssub.s32 %s31, 1
      // Predicated region
      $region13: #{sg2_student_half_forward.1} parent=11 // pred_check
        %p591 = pneg %p104
      $region14: #{sg2_student_half_forward.1} parent=11 // pred_check_branch
        %593 = sbr.rel (%p591) target = $region16
      $region15: #{sg2_student_half_forward.1} parent=11 // pred_region
        _
      $region16: #{sg2_student_half_forward.1} parent=11 // pred_fallthru
        _
      // Predicated region
      $region17: #{sg2_student_half_forward.1} parent=11 // pred_check
        %p594 = pneg %p125
      $region18: #{sg2_student_half_forward.1} parent=11 // pred_check_branch
        %596 = sbr.rel (%p594) target = $region20
      $region19: #{sg2_student_half_forward.1} parent=11 // pred_region
        _
      $region20: #{sg2_student_half_forward.1} parent=11 // pred_fallthru
        _
      // Predicated region
      $region21: #{sg2_student_half_forward.1} parent=11 // pred_check
        %p597 = pneg %p146
      $region22: #{sg2_student_half_forward.1} parent=11 // pred_check_branch
        %599 = sbr.rel (%p597) target = $region24
      $region23: #{sg2_student_half_forward.1} parent=11 // pred_region
        _
      $region24: #{sg2_student_half_forward.1} parent=11 // pred_fallthru
        _
      // Predicated region
      $region25: #{sg2_student_half_forward.1} parent=11 // pred_check
        %p600 = pneg %p167
      $region26: #{sg2_student_half_forward.1} parent=11 // pred_check_branch
        %602 = sbr.rel (%p600) target = $region28
      $region27: #{sg2_student_half_forward.1} parent=11 // pred_region
        _
      $region28: #{sg2_student_half_forward.1} parent=11 // pred_fallthru
        _
      // Predicated region
      $region29: #{sg2_student_half_forward.1} parent=11 // pred_check
        %p603 = pneg %p188
      $region30: #{sg2_student_half_forward.1} parent=11 // pred_check_branch
        %605 = sbr.rel (%p603) target = $region32
      $region31: #{sg2_student_half_forward.1} parent=11 // pred_region
        _
      $region32: #{sg2_student_half_forward.1} parent=11 // pred_fallthru
        _
      // Predicated region
      $region33: #{sg2_student_half_forward.1} parent=11 // pred_check
        %p606 = pneg %p209
      $region34: #{sg2_student_half_forward.1} parent=11 // pred_check_branch
        %608 = sbr.rel (%p606) target = $region36
      $region35: #{sg2_student_half_forward.1} parent=11 // pred_region
        _
      $region36: #{sg2_student_half_forward.1} parent=11 // pred_fallthru
        _
      // Predicated region
      $region37: #{sg2_student_half_forward.1} parent=11 // pred_check
        %p609 = pneg %p230
      $region38: #{sg2_student_half_forward.1} parent=11 // pred_check_branch
        %611 = sbr.rel (%p609) target = $region40
      $region39: #{sg2_student_half_forward.1} parent=11 // pred_region
        _
      $region40: #{sg2_student_half_forward.1} parent=11 // pred_fallthru
        _
      // Predicated region
      $region41: #{sg2_student_half_forward.1} parent=11 // pred_check
        %p612 = pneg %p251
      $region42: #{sg2_student_half_forward.1} parent=11 // pred_check_branch
        %614 = sbr.rel (%p612) target = $region44
      $region43: #{sg2_student_half_forward.1} parent=11 // pred_region
        _
      $region44: #{sg2_student_half_forward.1} parent=11 // pred_fallthru
        _
      // Predicated region
      $region45: #{sg2_student_half_forward.1} parent=11 // pred_check
        %p615 = pneg %p272
      $region46: #{sg2_student_half_forward.1} parent=11 // pred_check_branch
        %617 = sbr.rel (%p615) target = $region48
      $region47: #{sg2_student_half_forward.1} parent=11 // pred_region
        _
      $region48: #{sg2_student_half_forward.1} parent=11 // pred_fallthru
        _
      // Predicated region
      $region49: #{sg2_student_half_forward.1} parent=11 // pred_check
        %p618 = pneg %p293
      $region50: #{sg2_student_half_forward.1} parent=11 // pred_check_branch
        %620 = sbr.rel (%p618) target = $region52
      $region51: #{sg2_student_half_forward.1} parent=11 // pred_region
        _
      $region52: #{sg2_student_half_forward.1} parent=11 // pred_fallthru
        _
      // Predicated region
      $region53: #{sg2_student_half_forward.1} parent=11 // pred_check
        %p621 = pneg %p314
      $region54: #{sg2_student_half_forward.1} parent=11 // pred_check_branch
        %623 = sbr.rel (%p621) target = $region56
      $region55: #{sg2_student_half_forward.1} parent=11 // pred_region
        _
      $region56: #{sg2_student_half_forward.1} parent=11 // pred_fallthru
        _
      // Predicated region
      $region57: #{sg2_student_half_forward.1} parent=11 // pred_check
        %p624 = pneg %p335
      $region58: #{sg2_student_half_forward.1} parent=11 // pred_check_branch
        %626 = sbr.rel (%p624) target = $region60
      $region59: #{sg2_student_half_forward.1} parent=11 // pred_region
        _
      $region60: #{sg2_student_half_forward.1} parent=11 // pred_fallthru
        _
      // Predicated region
      $region61: #{sg2_student_half_forward.1} parent=11 // pred_check
        %p627 = pneg %p356
      $region62: #{sg2_student_half_forward.1} parent=11 // pred_check_branch
        %629 = sbr.rel (%p627) target = $region64
      $region63: #{sg2_student_half_forward.1} parent=11 // pred_region
        _
      $region64: #{sg2_student_half_forward.1} parent=11 // pred_fallthru
        _
      // Predicated region
      $region65: #{sg2_student_half_forward.1} parent=11 // pred_check
        %p630 = pneg %p377
      $region66: #{sg2_student_half_forward.1} parent=11 // pred_check_branch
        %632 = sbr.rel (%p630) target = $region68
      $region67: #{sg2_student_half_forward.1} parent=11 // pred_region
        _
      $region68: #{sg2_student_half_forward.1} parent=11 // pred_fallthru
        _
      // Predicated region
      $region69: #{sg2_student_half_forward.1} parent=11 // pred_check
        %p633 = pneg %p398
      $region70: #{sg2_student_half_forward.1} parent=11 // pred_check_branch
        %635 = sbr.rel (%p633) target = $region72
      $region71: #{sg2_student_half_forward.1} parent=11 // pred_region
        _
      $region72: #{sg2_student_half_forward.1} parent=11 // pred_fallthru
        _
      // Predicated region
      $region73: #{sg2_student_half_forward.1} parent=11 // pred_check
        %p636 = pneg %p419
      $region74: #{sg2_student_half_forward.1} parent=11 // pred_check_branch
        %638 = sbr.rel (%p636) target = $region76
      $region75: #{sg2_student_half_forward.1} parent=11 // pred_region
        _
      $region76: #{sg2_student_half_forward.1} parent=11 // pred_fallthru
        _
      // Predicated region
      $region77: #{sg2_student_half_forward.1} parent=11 // pred_check
        %p639 = pneg %p440
      $region78: #{sg2_student_half_forward.1} parent=11 // pred_check_branch
        %641 = sbr.rel (%p639) target = $region80
      $region79: #{sg2_student_half_forward.1} parent=11 // pred_region
        _
      $region80: #{sg2_student_half_forward.1} parent=11 // pred_fallthru
        _
      // Predicated region
      $region81: #{sg2_student_half_forward.1} parent=11 // pred_check
        %p642 = pneg %p461
      $region82: #{sg2_student_half_forward.1} parent=11 // pred_check_branch
        %644 = sbr.rel (%p642) target = $region84
      $region83: #{sg2_student_half_forward.1} parent=11 // pred_region
        _
      $region84: #{sg2_student_half_forward.1} parent=11 // pred_fallthru
        _
      // Predicated region
      $region85: #{sg2_student_half_forward.1} parent=11 // pred_check
        %p645 = pneg %p482
      $region86: #{sg2_student_half_forward.1} parent=11 // pred_check_branch
        %647 = sbr.rel (%p645) target = $region88
      $region87: #{sg2_student_half_forward.1} parent=11 // pred_region
        _
      $region88: #{sg2_student_half_forward.1} parent=11 // pred_fallthru
        _
      // Predicated region
      $region89: #{sg2_student_half_forward.1} parent=11 // pred_check
        %p648 = pneg %p503
      $region90: #{sg2_student_half_forward.1} parent=11 // pred_check_branch
        %650 = sbr.rel (%p648) target = $region92
      $region91: #{sg2_student_half_forward.1} parent=11 // pred_region
        _
      $region92: #{sg2_student_half_forward.1} parent=11 // pred_fallthru
        _
      // Predicated region
      $region93: #{sg2_student_half_forward.1} parent=11 // pred_check
        %p651 = pneg %p524
      $region94: #{sg2_student_half_forward.1} parent=11 // pred_check_branch
        %653 = sbr.rel (%p651) target = $region96
      $region95: #{sg2_student_half_forward.1} parent=11 // pred_region
        _
      $region96: #{sg2_student_half_forward.1} parent=11 // pred_fallthru
        _
    $region12: #{sg2_student_half_forward.1} parent=5 // pred_fallthru
      _
    %p654 = scmp.lt.s32.totalorder %s31, 2
    // Predicated region
    $region97: #{sg2_student_half_forward.1} parent=5 // pred_check
      %p655 = pneg %p654
    $region98: #{sg2_student_half_forward.1} parent=5 // pred_check_branch
      %657 = sbr.rel (%p655) target = $region100
    $region99: #{sg2_student_half_forward.1} parent=5 // pred_region
      // Predicated region
      $region101: #{sg2_student_half_forward.1} parent=99 // pred_check
        %p658 = pneg %p51
      $region102: #{sg2_student_half_forward.1} parent=99 // pred_check_branch
        %660 = sbr.rel (%p658) target = $region104
      $region103: #{sg2_student_half_forward.1} parent=99 // pred_region
        %p661 = scmp.lt.s32.totalorder %s31, 1
        %s662 = scalar_select %p661, %s31, 1
        %s663 = smul.addr %s662, 32
        %s664 = smul.addr %s663, 8
        %s665 = scalar_lea.vmem %s0, %s664
      $region104: #{sg2_student_half_forward.1} parent=99 // pred_fallthru
        _
      // Predicated region
      $region105: #{sg2_student_half_forward.1} parent=99 // pred_check
        %p666 = pneg %p77
      $region106: #{sg2_student_half_forward.1} parent=99 // pred_check_branch
        %668 = sbr.rel (%p666) target = $region108
      $region107: #{sg2_student_half_forward.1} parent=99 // pred_region
        %p669 = scmp.lt.s32.totalorder %s31, 1
        %s670 = scalar_select %p669, %s31, 1
        %s671 = smul.addr %s670, 20
        %s672 = smul.addr %s671, 8
        %s673 = scalar_lea.vmem %s1, %s672
      $region108: #{sg2_student_half_forward.1} parent=99 // pred_fallthru
        _
    $region100: #{sg2_student_half_forward.1} parent=5 // pred_fallthru
      _
    %p674 = scmp.le.s32.totalorder 1, %s31
    %p675 = scmp.lt.s32.totalorder %s31, 3
    %p676 = pnand %p674, %p675
    %p677 = pneg %p676
    // Predicated region
    $region109: #{sg2_student_half_forward.1} parent=5 // pred_check
      _
    $region110: #{sg2_student_half_forward.1} parent=5 // pred_check_branch
      %679 = sbr.rel (%p676) target = $region112
    $region111: #{sg2_student_half_forward.1} parent=5 // pred_region
      %s680 = ssub.s32 %s31, 1
      %p681 = scmp.lt.s32.totalorder %s36, 1
      %s682 = scalar_select %p681, %s36, 1
      %s683 = smul.addr %s682, 32
      %s684 = smul.addr %s683, 8
      %s685 = scalar_lea.vmem %s0, %s684
      %p686 = pneg %p57
      %p687 = pneg %p54
      %p688 = scmp.lt.s32.totalorder %s36, 1
      %s689 = scalar_select %p688, %s36, 1
      %s690 = smul.addr %s689, 20
      %s691 = smul.addr %s690, 8
      %s692 = scalar_lea.vmem %s1, %s691
      %p693 = pneg %p83
      %p694 = pneg %p80
      %p695 = pneg %p104
      %p696 = pneg %p101
      %p697 = pneg %p125
      %p698 = pneg %p122
      %p699 = pneg %p146
      %p700 = pneg %p143
      %p701 = pneg %p167
      %p702 = pneg %p164
      %p703 = pneg %p188
      %p704 = pneg %p185
      %p705 = pneg %p209
      %p706 = pneg %p206
      %p707 = pneg %p230
      %p708 = pneg %p227
      %p709 = pneg %p251
      %p710 = pneg %p248
      %p711 = pneg %p272
      %p712 = pneg %p269
      %p713 = pneg %p293
      %p714 = pneg %p290
      %p715 = pneg %p314
      %p716 = pneg %p311
      %p717 = pneg %p335
      %p718 = pneg %p332
      %p719 = pneg %p356
      %p720 = pneg %p353
      %p721 = pneg %p377
      %p722 = pneg %p374
      %p723 = pneg %p398
      %p724 = pneg %p395
      %p725 = pneg %p419
      %p726 = pneg %p416
      %p727 = pneg %p440
      %p728 = pneg %p437
      %p729 = pneg %p461
      %p730 = pneg %p458
      %p731 = pneg %p482
      %p732 = pneg %p479
      %p733 = pneg %p503
      %p734 = pneg %p500
      %p735 = pneg %p524
      %p736 = pneg %p521
      %p737 = pneg %p550
      %p738 = pneg %p547
      %p739 = scmp.lt.s32.totalorder %s36, 1
      %s740 = scalar_select %p739, %s36, 1
      %s741 = smul.addr %s740, 8
      %s742 = smul.addr %s741, 8
      %s743 = scalar_lea.vmem %s23, %s742
      %p744 = pneg %p576
      %p745 = pneg %p573
      %p746 = scmp.lt.s32.totalorder %s36, 1
      %s747 = scalar_select %p746, %s36, 1
      %s748 = smul.addr %s747, 2
      %s749 = smul.addr %s748, 4
      %s750 = scalar_lea.vmem %s24, %s749
      %p751 = scmp.lt.s32.totalorder %s36, 1
      %s752 = scalar_select %p751, %s36, 1
      %s753 = smul.addr %s752, 32
      %s754 = smul.addr %s753, 8
      %s755 = scalar_lea.vmem %s0, %s754
      %p756 = scmp.lt.s32.totalorder %s36, 1
      %s757 = scalar_select %p756, %s36, 1
      %s758 = smul.addr %s757, 20
      %s759 = smul.addr %s758, 8
      %s760 = scalar_lea.vmem %s1, %s759
      %p761 = scmp.lt.s32.totalorder %s36, 1
      %s762 = scalar_select %p761, %s36, 1
      %s763 = smul.addr %s762, 8
      %s764 = smul.addr %s763, 8
      %s765 = scalar_lea.vmem %s23, %s764
      %p766 = scmp.lt.s32.totalorder %s36, 1
      %s767 = scalar_select %p766, %s36, 1
      %s768 = smul.addr %s767, 2
      %s769 = smul.addr %s768, 4
      %s770 = scalar_lea.vmem %s24, %s769
      %v772 = vld [vmem:[%s755] sm:$0xff]
      %v773 = vld [vmem:[%s755 + $0x8] sm:$0xff]
      %v774 = vld [vmem:[%s755 + $0x10] sm:$0xff]
      %v775 = vld [vmem:[%s755 + $0x18] sm:$0xff]
      %v776 = vld [vmem:[%s755 + $0x20] sm:$0xff]
      %v777 = vld [vmem:[%s755 + $0x28] sm:$0xff]
      %v778 = vld [vmem:[%s755 + $0x30] sm:$0xff]
      %v779 = vld [vmem:[%s755 + $0x38] sm:$0xff]
      %v780 = vld [vmem:[%s755 + $0x40] sm:$0xff]
      %v781 = vld [vmem:[%s755 + $0x48] sm:$0xff]
      %v782 = vld [vmem:[%s755 + $0x50] sm:$0xff]
      %v783 = vld [vmem:[%s755 + $0x58] sm:$0xff]
      %v784 = vld [vmem:[%s755 + $0x60] sm:$0xff]
      %v785 = vld [vmem:[%s755 + $0x68] sm:$0xff]
      %v786 = vld [vmem:[%s755 + $0x70] sm:$0xff]
      %v787 = vld [vmem:[%s755 + $0x78] sm:$0xff]
      %v788 = vld [vmem:[%s755 + $0x80] sm:$0xff]
      %v789 = vld [vmem:[%s755 + $0x88] sm:$0xff]
      %v790 = vld [vmem:[%s755 + $0x90] sm:$0xff]
      %v791 = vld [vmem:[%s755 + $0x98] sm:$0xff]
      %v792 = vld [vmem:[%s755 + $0xa0] sm:$0xff]
      %v793 = vld [vmem:[%s755 + $0xa8] sm:$0xff]
      %v794 = vld [vmem:[%s755 + $0xb0] sm:$0xff]
      %v795 = vld [vmem:[%s755 + $0xb8] sm:$0xff]
      %v796 = vld [vmem:[%s755 + $0xc0] sm:$0xff]
      %v797 = vld [vmem:[%s755 + $0xc8] sm:$0xff]
      %v798 = vld [vmem:[%s755 + $0xd0] sm:$0xff]
      %v799 = vld [vmem:[%s755 + $0xd8] sm:$0xff]
      %v800 = vld [vmem:[%s755 + $0xe0] sm:$0xff]
      %v801 = vld [vmem:[%s755 + $0xe8] sm:$0xff]
      %v802 = vld [vmem:[%s755 + $0xf0] sm:$0xff]
      %v803 = vld [vmem:[%s755 + $0xf8] sm:$0xff]
      %v804 = vld [vmem:[%s760] sm:$0xff]
      %v805 = vld [vmem:[%s760 + $0x8] sm:$0xff]
      %v806 = vld [vmem:[%s760 + $0x10] sm:$0xff]
      %v807 = vld [vmem:[%s760 + $0x18] sm:$0xff]
      %v808 = vld [vmem:[%s760 + $0x20] sm:$0xff]
      %v809 = vld [vmem:[%s760 + $0x28] sm:$0xff]
      %v810 = vld [vmem:[%s760 + $0x30] sm:$0xff]
      %v811 = vld [vmem:[%s760 + $0x38] sm:$0xff]
      %v812 = vld [vmem:[%s760 + $0x40] sm:$0xff]
      %v813 = vld [vmem:[%s760 + $0x48] sm:$0xff]
      %v814 = vld [vmem:[%s760 + $0x50] sm:$0xff]
      %v815 = vld [vmem:[%s760 + $0x58] sm:$0xff]
      %v816 = vld [vmem:[%s760 + $0x60] sm:$0xff]
      %v817 = vld [vmem:[%s760 + $0x68] sm:$0xff]
      %v818 = vld [vmem:[%s760 + $0x70] sm:$0xff]
      %v819 = vld [vmem:[%s760 + $0x78] sm:$0xff]
      %v820 = vld [vmem:[%s760 + $0x80] sm:$0xff]
      %v821 = vld [vmem:[%s760 + $0x88] sm:$0xff]
      %v822 = vld [vmem:[%s760 + $0x90] sm:$0xff]
      %v823 = vld [vmem:[%s760 + $0x98] sm:$0xff]
      %v824 = vld [vmem:[%s2] sm:$0xff]
      %v825 = vld [vmem:[%s2 + $0x8] sm:$0xff]
      %v826 = vld [vmem:[%s2 + $0x10] sm:$0xff]
      %v827 = vld [vmem:[%s2 + $0x18] sm:$0xff]
      %v828 = vld [vmem:[%s2 + $0x20] sm:$0xff]
      %v829 = vld [vmem:[%s2 + $0x28] sm:$0xff]
      %v830 = vld [vmem:[%s2 + $0x30] sm:$0xff]
      %v831 = vld [vmem:[%s2 + $0x38] sm:$0xff]
      %v832 = vld [vmem:[%s2 + $0x40] sm:$0xff]
      %v833 = vld [vmem:[%s2 + $0x48] sm:$0xff]
      %v834 = vld [vmem:[%s2 + $0x50] sm:$0xff]
      %v835 = vld [vmem:[%s2 + $0x58] sm:$0xff]
      %v836 = vld [vmem:[%s2 + $0x60] sm:$0xff]
      %v837 = vld [vmem:[%s2 + $0x68] sm:$0xff]
      %v838 = vld [vmem:[%s2 + $0x70] sm:$0xff]
      %v839 = vld [vmem:[%s2 + $0x78] sm:$0xff]
      %v840 = vld [vmem:[%s2 + $0x80] sm:$0xff]
      %v841 = vld [vmem:[%s2 + $0x88] sm:$0xff]
      %v842 = vld [vmem:[%s2 + $0x90] sm:$0xff]
      %v843 = vld [vmem:[%s2 + $0x98] sm:$0xff]
      %v844 = vld [vmem:[%s3] sm:$0xff]
      %v845 = vld [vmem:[%s3 + $0x8] sm:$0xff]
      %v846 = vld [vmem:[%s3 + $0x10] sm:$0xff]
      %v847 = vld [vmem:[%s3 + $0x18] sm:$0xff]
      %v848 = vld [vmem:[%s10] sm:$0x1]
      %v849 = vld [vmem:[%s9] sm:$0xff]
      %v850 = vld [vmem:[%s9 + $0x8] sm:$0xf]
      %v851 = vld [vmem:[%s9 + $0xc] sm:$0xff]
      %v852 = vld [vmem:[%s9 + $0x14] sm:$0xf]
      %v853 = vld [vmem:[%s9 + $0x18] sm:$0xff]
      %v854 = vld [vmem:[%s9 + $0x20] sm:$0xf]
      %v855 = vld [vmem:[%s9 + $0x24] sm:$0xff]
      %v856 = vld [vmem:[%s9 + $0x2c] sm:$0xf]
      %858 = vset.pattern.permute.xlu0 0
      %859 = vperm.xlu0 %858, %v772
      %v860 = vpop.permute.xlu0 %859
      %863 = vset.pattern.permute.xlu0 0
      %864 = vperm.xlu0 %863, %v773
      %v865 = vpop.permute.xlu0 %864
      %868 = vset.pattern.permute.xlu0 0
      %869 = vperm.xlu0 %868, %v774
      %v870 = vpop.permute.xlu0 %869
      %873 = vset.pattern.permute.xlu0 0
      %874 = vperm.xlu0 %873, %v775
      %v875 = vpop.permute.xlu0 %874
      %v877 = vmul.f32 %v844, %v860
      %v878 = vmul.f32 %v845, %v865
      %v879 = vmul.f32 %v846, %v870
      %v880 = vmul.f32 %v847, %v875
      %885 = vrot.lane.b32.xlu0 %v877, 5
      %v886 = vpop.permute.xlu0 %885
      %887 = vrot.lane.b32.xlu0 %v878, 5
      %v888 = vpop.permute.xlu0 %887
      %889 = vrot.lane.b32.xlu0 %v879, 5
      %v890 = vpop.permute.xlu0 %889
      %891 = vrot.lane.b32.xlu0 %v880, 5
      %v892 = vpop.permute.xlu0 %891
      %vm897 = vcmask 39936
      %v898 = vsel %vm897, 0.0, %v886
      %v899 = vsel %vm897, 0.0, %v888
      %v900 = vsel %vm897, 0.0, %v890
      %v901 = vsel %vm897, 0.0, %v892
      %v902 = vld [vmem:[%s4] sm:$0x1]
      %v903 = vperm.slane %v902, 0
      %v904 = vmul.f32 %v898, %v903
      %v905 = vmul.f32 %v899, %v903
      %v906 = vmul.f32 %v900, %v903
      %v907 = vmul.f32 %v901, %v903
      %908 = vrot.lane.b32.xlu0 %v877, 4
      %v909 = vpop.permute.xlu0 %908
      %910 = vrot.lane.b32.xlu0 %v878, 4
      %v911 = vpop.permute.xlu0 %910
      %912 = vrot.lane.b32.xlu0 %v879, 4
      %v913 = vpop.permute.xlu0 %912
      %914 = vrot.lane.b32.xlu0 %v880, 4
      %v915 = vpop.permute.xlu0 %914
      %vm920 = vcmask 31744
      %v921 = vsel %vm920, 0.0, %v909
      %v922 = vsel %vm920, 0.0, %v911
      %v923 = vsel %vm920, 0.0, %v913
      %v924 = vsel %vm920, 0.0, %v915
      %v925 = vld [vmem:[%s4 + $0x1] sm:$0x1]
      %v926 = vperm.slane %v925, 0
      %v927 = vmul.f32 %v921, %v926
      %v928 = vmul.f32 %v922, %v926
      %v929 = vmul.f32 %v923, %v926
      %v930 = vmul.f32 %v924, %v926
      %931 = vrot.lane.b32.xlu0 %v877, 3
      %v932 = vpop.permute.xlu0 %931
      %933 = vrot.lane.b32.xlu0 %v878, 3
      %v934 = vpop.permute.xlu0 %933
      %935 = vrot.lane.b32.xlu0 %v879, 3
      %v936 = vpop.permute.xlu0 %935
      %937 = vrot.lane.b32.xlu0 %v880, 3
      %v938 = vpop.permute.xlu0 %937
      %vm943 = vcmask 23552
      %v944 = vsel %vm943, 0.0, %v932
      %v945 = vsel %vm943, 0.0, %v934
      %v946 = vsel %vm943, 0.0, %v936
      %v947 = vsel %vm943, 0.0, %v938
      %v948 = vld [vmem:[%s4 + $0x2] sm:$0x1]
      %v949 = vperm.slane %v948, 0
      %v950 = vmul.f32 %v944, %v949
      %v951 = vmul.f32 %v945, %v949
      %v952 = vmul.f32 %v946, %v949
      %v953 = vmul.f32 %v947, %v949
      %954 = vrot.lane.b32.xlu0 %v877, 1
      %v955 = vpop.permute.xlu0 %954
      %956 = vrot.lane.b32.xlu0 %v878, 1
      %v957 = vpop.permute.xlu0 %956
      %958 = vrot.lane.b32.xlu0 %v879, 1
      %v959 = vpop.permute.xlu0 %958
      %960 = vrot.lane.b32.xlu0 %v880, 1
      %v961 = vpop.permute.xlu0 %960
      %vm966 = vcmask 7168
      %v967 = vsel %vm966, 0.0, %v955
      %v968 = vsel %vm966, 0.0, %v957
      %v969 = vsel %vm966, 0.0, %v959
      %v970 = vsel %vm966, 0.0, %v961
      %v971 = vld [vmem:[%s4 + $0x3] sm:$0x1]
      %v972 = vperm.slane %v971, 0
      %v973 = vmul.f32 %v967, %v972
      %v974 = vmul.f32 %v968, %v972
      %v975 = vmul.f32 %v969, %v972
      %v976 = vmul.f32 %v970, %v972
      %977 = vrot.lane.b32.xlu0 %v877, 127
      %v978 = vpop.permute.xlu0 %977
      %979 = vrot.lane.b32.xlu0 %v878, 127
      %v980 = vpop.permute.xlu0 %979
      %981 = vrot.lane.b32.xlu0 %v879, 127
      %v982 = vpop.permute.xlu0 %981
      %983 = vrot.lane.b32.xlu0 %v880, 127
      %v984 = vpop.permute.xlu0 %983
      %vm989 = vcmask 121856
      %v990 = vsel %vm989, %v978, 0.0
      %v991 = vsel %vm989, %v980, 0.0
      %v992 = vsel %vm989, %v982, 0.0
      %v993 = vsel %vm989, %v984, 0.0
      %v994 = vld [vmem:[%s4 + $0x5] sm:$0x1]
      %v995 = vperm.slane %v994, 0
      %v996 = vmul.f32 %v990, %v995
      %v997 = vmul.f32 %v991, %v995
      %v998 = vmul.f32 %v992, %v995
      %v999 = vmul.f32 %v993, %v995
      %1000 = vrot.lane.b32.xlu0 %v877, 125
      %v1001 = vpop.permute.xlu0 %1000
      %1002 = vrot.lane.b32.xlu0 %v878, 125
      %v1003 = vpop.permute.xlu0 %1002
      %1004 = vrot.lane.b32.xlu0 %v879, 125
      %v1005 = vpop.permute.xlu0 %1004
      %1006 = vrot.lane.b32.xlu0 %v880, 125
      %v1007 = vpop.permute.xlu0 %1006
      %vm1012 = vcmask 105472
      %v1013 = vsel %vm1012, %v1001, 0.0
      %v1014 = vsel %vm1012, %v1003, 0.0
      %v1015 = vsel %vm1012, %v1005, 0.0
      %v1016 = vsel %vm1012, %v1007, 0.0
      %v1017 = vld [vmem:[%s4 + $0x6] sm:$0x1]
      %v1018 = vperm.slane %v1017, 0
      %v1019 = vmul.f32 %v1013, %v1018
      %v1020 = vmul.f32 %v1014, %v1018
      %v1021 = vmul.f32 %v1015, %v1018
      %v1022 = vmul.f32 %v1016, %v1018
      %1023 = vrot.lane.b32.xlu0 %v877, 124
      %v1024 = vpop.permute.xlu0 %1023
      %1025 = vrot.lane.b32.xlu0 %v878, 124
      %v1026 = vpop.permute.xlu0 %1025
      %1027 = vrot.lane.b32.xlu0 %v879, 124
      %v1028 = vpop.permute.xlu0 %1027
      %1029 = vrot.lane.b32.xlu0 %v880, 124
      %v1030 = vpop.permute.xlu0 %1029
      %vm1035 = vcmask 97280
      %v1036 = vsel %vm1035, %v1024, 0.0
      %v1037 = vsel %vm1035, %v1026, 0.0
      %v1038 = vsel %vm1035, %v1028, 0.0
      %v1039 = vsel %vm1035, %v1030, 0.0
      %v1040 = vld [vmem:[%s4 + $0x7] sm:$0x1]
      %v1041 = vperm.slane %v1040, 0
      %v1042 = vmul.f32 %v1036, %v1041
      %v1043 = vmul.f32 %v1037, %v1041
      %v1044 = vmul.f32 %v1038, %v1041
      %v1045 = vmul.f32 %v1039, %v1041
      %1046 = vrot.lane.b32.xlu0 %v877, 123
      %v1047 = vpop.permute.xlu0 %1046
      %1048 = vrot.lane.b32.xlu0 %v878, 123
      %v1049 = vpop.permute.xlu0 %1048
      %1050 = vrot.lane.b32.xlu0 %v879, 123
      %v1051 = vpop.permute.xlu0 %1050
      %1052 = vrot.lane.b32.xlu0 %v880, 123
      %v1053 = vpop.permute.xlu0 %1052
      %vm1058 = vcmask 89088
      %v1059 = vsel %vm1058, %v1047, 0.0
      %v1060 = vsel %vm1058, %v1049, 0.0
      %v1061 = vsel %vm1058, %v1051, 0.0
      %v1062 = vsel %vm1058, %v1053, 0.0
      %v1063 = vld [vmem:[%s4 + $0x8] sm:$0x1]
      %v1064 = vperm.slane %v1063, 0
      %v1065 = vmul.f32 %v1059, %v1064
      %v1066 = vmul.f32 %v1060, %v1064
      %v1067 = vmul.f32 %v1061, %v1064
      %v1068 = vmul.f32 %v1062, %v1064
      %v1069 = vpack.c.bf16 %v905, %v904
      %v1070 = vpack.c.bf16 %v907, %v906
      %v1071 = vpack.c.bf16 %v928, %v927
      %v1072 = vpack.c.bf16 %v930, %v929
      %v1073 = vpack.c.bf16 %v951, %v950
      %v1074 = vpack.c.bf16 %v953, %v952
      %v1075 = vpack.c.bf16 %v974, %v973
      %v1076 = vpack.c.bf16 %v976, %v975
      %v1077 = vpack.c.bf16 %v878, %v877
      %v1078 = vpack.c.bf16 %v880, %v879
      %v1079 = vpack.c.bf16 %v997, %v996
      %v1080 = vpack.c.bf16 %v999, %v998
      %v1081 = vpack.c.bf16 %v1020, %v1019
      %v1082 = vpack.c.bf16 %v1022, %v1021
      %v1083 = vpack.c.bf16 %v1043, %v1042
      %v1084 = vpack.c.bf16 %v1045, %v1044
      %v1085 = vpack.c.bf16 %v1066, %v1065
      %v1086 = vpack.c.bf16 %v1068, %v1067
      %v1095 = vunpack.c.l.b16 %v849
      %v1096 = vunpack.c.h.b16 %v849
      %v1097 = vunpack.c.l.b16 %v850
      %v1098 = vunpack.c.l.b16 %v851
      %v1099 = vunpack.c.h.b16 %v851
      %v1100 = vunpack.c.l.b16 %v852
      %v1101 = vunpack.c.l.b16 %v853
      %v1102 = vunpack.c.h.b16 %v853
      %v1103 = vunpack.c.l.b16 %v854
      %v1104 = vunpack.c.l.b16 %v855
      %v1105 = vunpack.c.h.b16 %v855
      %v1106 = vunpack.c.l.b16 %v856
      %v1107 = vpack.c.b16 %v1098, %v1095
      %v1108 = vpack.c.b16 %v1099, %v1096
      %v1109 = vpack.c.b16 %v1100, %v1097
      %v1110 = vpack.c.b16 %v1104, %v1101
      %v1111 = vpack.c.b16 %v1105, %v1102
      %v1112 = vpack.c.b16 %v1106, %v1103
      %vm1117 = vcmask 261120
      %v1119 = vsel %vm1117, %v1109, 0
      %v1122 = vsel %vm1117, %v1112, 0
      %1124 = vmatpush.bf16.msra.mxu0 %v1076
      %1125 = vmatpush.bf16.msra.mxu0 %v1075
      %1126 = vmatpush.bf16.msra.mxu0 %v1074
      %1127 = vmatpush.bf16.msra.mxu0 %v1073
      %1128 = vmatpush.bf16.msra.mxu0 %v1072
      %1129 = vmatpush.bf16.msra.mxu0 %v1071
      %1130 = vmatpush.bf16.msra.mxu0 %v1070
      %1131 = vmatpush.bf16.msra.mxu0 %v1069
      %1132 = vmatmul.bf16.gmra.mxu0 %v1107
      %v1133 = vpop.f32.mrf.mxu0
      %v1134 = vadd.f32 0.0, %v1133
      %v1135 = vpop.f32.mrf.mxu0
      %v1136 = vadd.f32 0.0, %v1135
      %1137 = vmatmul.bf16.gmra.mxu0 %v1110
      %v1138 = vpop.f32.mrf.mxu0
      %v1139 = vadd.f32 0.0, %v1138
      %v1140 = vpop.f32.mrf.mxu0
      %v1141 = vadd.f32 0.0, %v1140
      %1142 = vdwg.mxu0
      %1143 = vmatpush.bf16.msra.mxu0 %v1084
      %1144 = vmatpush.bf16.msra.mxu0 %v1083
      %1145 = vmatpush.bf16.msra.mxu0 %v1082
      %1146 = vmatpush.bf16.msra.mxu0 %v1081
      %1147 = vmatpush.bf16.msra.mxu0 %v1080
      %1148 = vmatpush.bf16.msra.mxu0 %v1079
      %1149 = vmatpush.bf16.msra.mxu0 %v1078
      %1150 = vmatpush.bf16.msra.mxu0 %v1077
      %1151 = vmatmul.bf16.gmra.mxu0 %v1108
      %v1152 = vpop.f32.mrf.mxu0
      %v1153 = vadd.f32 %v1134, %v1152
      %v1154 = vpop.f32.mrf.mxu0
      %v1155 = vadd.f32 %v1136, %v1154
      %1156 = vmatmul.bf16.gmra.mxu0 %v1111
      %v1157 = vpop.f32.mrf.mxu0
      %v1158 = vadd.f32 %v1139, %v1157
      %v1159 = vpop.f32.mrf.mxu0
      %v1160 = vadd.f32 %v1141, %v1159
      %1161 = vdwg.mxu0
      %1162 = vmatpush.bf16.msra.mxu0 0
      %1163 = vmatpush.bf16.msra.mxu0 0
      %1164 = vmatpush.bf16.msra.mxu0 0
      %1165 = vmatpush.bf16.msra.mxu0 0
      %1166 = vmatpush.bf16.msra.mxu0 0
      %1167 = vmatpush.bf16.msra.mxu0 0
      %1168 = vmatpush.bf16.msra.mxu0 %v1086
      %1169 = vmatpush.bf16.msra.mxu0 %v1085
      %1170 = vmatmul.bf16.gmra.mxu0 %v1119
      %v1171 = vpop.f32.mrf.mxu0
      %v1172 = vadd.f32 %v1153, %v1171
      %v1173 = vpop.f32.mrf.mxu0
      %v1174 = vadd.f32 %v1155, %v1173
      %1175 = vmatmul.bf16.gmra.mxu0 %v1122
      %v1176 = vpop.f32.mrf.mxu0
      %v1177 = vadd.f32 %v1158, %v1176
      %v1178 = vpop.f32.mrf.mxu0
      %v1179 = vadd.f32 %v1160, %v1178
      %1180 = vdwg.mxu0
      %1182 = vset.pattern.permute.xlu0 0
      %1183 = vperm.xlu0 %1182, %v804
      %v1184 = vpop.permute.xlu0 %1183
      %1187 = vset.pattern.permute.xlu0 0
      %1188 = vperm.xlu0 %1187, %v805
      %v1189 = vpop.permute.xlu0 %1188
      %1192 = vset.pattern.permute.xlu0 0
      %1193 = vperm.xlu0 %1192, %v806
      %v1194 = vpop.permute.xlu0 %1193
      %1197 = vset.pattern.permute.xlu0 0
      %1198 = vperm.xlu0 %1197, %v807
      %v1199 = vpop.permute.xlu0 %1198
      %v1201 = vmul.f32 %v1172, %v1184
      %v1202 = vmul.f32 %v1174, %v1189
      %v1203 = vmul.f32 %v1177, %v1194
      %v1204 = vmul.f32 %v1179, %v1199
      %v1206 = vperm.slane %v848, 0
      %v1208 = vadd.f32 %v1201, %v1206
      %v1209 = vadd.f32 %v1202, %v1206
      %v1210 = vadd.f32 %v1203, %v1206
      %v1211 = vadd.f32 %v1204, %v1206
      %1213 = vset.pattern.permute.xlu0 0
      %1214 = vperm.xlu0 %1213, %v824
      %v1215 = vpop.permute.xlu0 %1214
      %1218 = vset.pattern.permute.xlu0 0
      %1219 = vperm.xlu0 %1218, %v825
      %v1220 = vpop.permute.xlu0 %1219
      %1223 = vset.pattern.permute.xlu0 0
      %1224 = vperm.xlu0 %1223, %v826
      %v1225 = vpop.permute.xlu0 %1224
      %1228 = vset.pattern.permute.xlu0 0
      %1229 = vperm.xlu0 %1228, %v827
      %v1230 = vpop.permute.xlu0 %1229
      %v1232 = vadd.f32 %v1208, %v1215
      %v1233 = vadd.f32 %v1209, %v1220
      %v1234 = vadd.f32 %v1210, %v1225
      %v1235 = vadd.f32 %v1211, %v1230
      %vm1236 = vcmp.lt.f32.partialorder %v1232, 0.0
      %vm1237 = vcmp.lt.f32.partialorder %v1233, 0.0
      %vm1238 = vcmp.lt.f32.partialorder %v1234, 0.0
      %vm1239 = vcmp.lt.f32.partialorder %v1235, 0.0
      %v1240 = vmul.f32 %v1232, 0.2
      %v1241 = vmul.f32 %v1233, 0.2
      %v1242 = vmul.f32 %v1234, 0.2
      %v1243 = vmul.f32 %v1235, 0.2
      %v1244 = vsel %vm1236, %v1240, %v1232
      %v1245 = vsel %vm1237, %v1241, %v1233
      %v1246 = vsel %vm1238, %v1242, %v1234
      %v1247 = vsel %vm1239, %v1243, %v1235
      %v1248 = vmul.f32 %v1244, 1.4142135
      %v1249 = vmul.f32 %v1245, 1.4142135
      %v1250 = vmul.f32 %v1246, 1.4142135
      %v1251 = vmul.f32 %v1247, 1.4142135
      %v1252 = vmax.f32 %v1248, -256.0
      %v1253 = vmax.f32 %v1249, -256.0
      %v1254 = vmax.f32 %v1250, -256.0
      %v1255 = vmax.f32 %v1251, -256.0
      %v1256 = vmin.f32 %v1252, 256.0
      %v1257 = vmin.f32 %v1253, 256.0
      %v1258 = vmin.f32 %v1254, 256.0
      %v1259 = vmin.f32 %v1255, 256.0
      %v1260 = vld [vmem:[%s11] sm:$0x3]
      %v1261 = vld [vmem:[%s12] sm:$0x7]
      %1263 = vset.pattern.permute.xlu0 0
      %1264 = vperm.xlu0 %1263, %v776
      %v1265 = vpop.permute.xlu0 %1264
      %1268 = vset.pattern.permute.xlu0 0
      %1269 = vperm.xlu0 %1268, %v777
      %v1270 = vpop.permute.xlu0 %1269
      %1273 = vset.pattern.permute.xlu0 0
      %1274 = vperm.xlu0 %1273, %v778
      %v1275 = vpop.permute.xlu0 %1274
      %1278 = vset.pattern.permute.xlu0 0
      %1279 = vperm.xlu0 %1278, %v779
      %v1280 = vpop.permute.xlu0 %1279
      %v1282 = vmul.f32 %v1256, %v1265
      %v1283 = vmul.f32 %v1257, %v1270
      %v1284 = vmul.f32 %v1258, %v1275
      %v1285 = vmul.f32 %v1259, %v1280
      %v1286 = vpack.c.bf16 %v1283, %v1282
      %v1287 = vpack.c.bf16 %v1285, %v1284
      %1289 = vset.pattern.permute.xlu0 0
      %1290 = vperm.xlu0 %1289, %v1261
      %v1291 = vpop.permute.xlu0 %1290
      %v1294 = vsel %vm1117, %v1260, 0
      %1296 = vmatpush.bf16.msra.mxu0 0
      %1297 = vmatpush.bf16.msra.mxu0 0
      %1298 = vmatpush.bf16.msra.mxu0 0
      %1299 = vmatpush.bf16.msra.mxu0 0
      %1300 = vmatpush.bf16.msra.mxu0 0
      %1301 = vmatpush.bf16.msra.mxu0 0
      %1302 = vmatpush.bf16.msra.mxu0 %v1287
      %1303 = vmatpush.bf16.msra.mxu0 %v1286
      %1304 = vmatmul.bf16.gmra.mxu0 %v1294
      %v1305 = vpop.f32.mrf.mxu0
      %v1306 = vadd.f32 %v1291, %v1305
      %v1307 = vpop.f32.mrf.mxu0
      %1308 = vdwg.mxu0
      %v1309 = vmax.f32 %v1306, -256.0
      %v1310 = vmin.f32 %v1309, 256.0
      %v1311 = vld [vmem:[%s13] sm:$0xff]
      %v1312 = vld [vmem:[%s13 + $0x8] sm:$0xf]
      %v1313 = vld [vmem:[%s13 + $0xc] sm:$0xff]
      %v1314 = vld [vmem:[%s13 + $0x14] sm:$0xf]
      %v1315 = vld [vmem:[%s13 + $0x18] sm:$0xff]
      %v1316 = vld [vmem:[%s13 + $0x20] sm:$0xf]
      %v1317 = vld [vmem:[%s13 + $0x24] sm:$0xff]
      %v1318 = vld [vmem:[%s13 + $0x2c] sm:$0xf]
      %v1319 = vld [vmem:[%s13 + $0x30] sm:$0xff]
      %v1320 = vld [vmem:[%s13 + $0x38] sm:$0xf]
      %v1321 = vld [vmem:[%s13 + $0x3c] sm:$0xff]
      %v1322 = vld [vmem:[%s13 + $0x44] sm:$0xf]
      %v1323 = vld [vmem:[%s13 + $0x48] sm:$0xff]
      %v1324 = vld [vmem:[%s13 + $0x50] sm:$0xf]
      %v1325 = vld [vmem:[%s13 + $0x54] sm:$0xff]
      %v1326 = vld [vmem:[%s13 + $0x5c] sm:$0xf]
      %v1327 = vld [vmem:[%s13 + $0x60] sm:$0xff]
      %v1328 = vld [vmem:[%s13 + $0x68] sm:$0xf]
      %v1329 = vld [vmem:[%s13 + $0x6c] sm:$0xff]
      %v1330 = vld [vmem:[%s13 + $0x74] sm:$0xf]
      %v1331 = vld [vmem:[%s13 + $0x78] sm:$0xff]
      %v1332 = vld [vmem:[%s13 + $0x80] sm:$0xf]
      %v1333 = vld [vmem:[%s13 + $0x84] sm:$0xff]
      %v1334 = vld [vmem:[%s13 + $0x8c] sm:$0xf]
      %v1335 = vld [vmem:[%s13 + $0x90] sm:$0xff]
      %v1336 = vld [vmem:[%s13 + $0x98] sm:$0xf]
      %v1337 = vld [vmem:[%s13 + $0x9c] sm:$0xff]
      %v1338 = vld [vmem:[%s13 + $0xa4] sm:$0xf]
      %v1339 = vld [vmem:[%s13 + $0xa8] sm:$0xff]
      %v1340 = vld [vmem:[%s13 + $0xb0] sm:$0xf]
      %v1341 = vld [vmem:[%s13 + $0xb4] sm:$0xff]
      %v1342 = vld [vmem:[%s13 + $0xbc] sm:$0xf]
      %v1343 = vld [vmem:[%s15] sm:$0x1]
      %1345 = vset.pattern.permute.xlu0 0
      %1346 = vperm.xlu0 %1345, %v780
      %v1347 = vpop.permute.xlu0 %1346
      %1350 = vset.pattern.permute.xlu0 0
      %1351 = vperm.xlu0 %1350, %v781
      %v1352 = vpop.permute.xlu0 %1351
      %1355 = vset.pattern.permute.xlu0 0
      %1356 = vperm.xlu0 %1355, %v782
      %v1357 = vpop.permute.xlu0 %1356
      %1360 = vset.pattern.permute.xlu0 0
      %1361 = vperm.xlu0 %1360, %v783
      %v1362 = vpop.permute.xlu0 %1361
      %v1364 = vmul.f32 %v1256, %v1347
      %v1365 = vmul.f32 %v1257, %v1352
      %v1366 = vmul.f32 %v1258, %v1357
      %v1367 = vmul.f32 %v1259, %v1362
      %1372 = vrot.lane.b32.xlu0 %v1364, 5
      %v1373 = vpop.permute.xlu0 %1372
      %1374 = vrot.lane.b32.xlu0 %v1365, 5
      %v1375 = vpop.permute.xlu0 %1374
      %1376 = vrot.lane.b32.xlu0 %v1366, 5
      %v1377 = vpop.permute.xlu0 %1376
      %1378 = vrot.lane.b32.xlu0 %v1367, 5
      %v1379 = vpop.permute.xlu0 %1378
      %v1384 = vsel %vm897, 0.0, %v1373
      %v1385 = vsel %vm897, 0.0, %v1375
      %v1386 = vsel %vm897, 0.0, %v1377
      %v1387 = vsel %vm897, 0.0, %v1379
      %v1388 = vmul.f32 %v1384, %v903
      %v1389 = vmul.f32 %v1385, %v903
      %v1390 = vmul.f32 %v1386, %v903
      %v1391 = vmul.f32 %v1387, %v903
      %1392 = vrot.lane.b32.xlu0 %v1364, 4
      %v1393 = vpop.permute.xlu0 %1392
      %1394 = vrot.lane.b32.xlu0 %v1365, 4
      %v1395 = vpop.permute.xlu0 %1394
      %1396 = vrot.lane.b32.xlu0 %v1366, 4
      %v1397 = vpop.permute.xlu0 %1396
      %1398 = vrot.lane.b32.xlu0 %v1367, 4
      %v1399 = vpop.permute.xlu0 %1398
      %v1404 = vsel %vm920, 0.0, %v1393
      %v1405 = vsel %vm920, 0.0, %v1395
      %v1406 = vsel %vm920, 0.0, %v1397
      %v1407 = vsel %vm920, 0.0, %v1399
      %v1408 = vmul.f32 %v1404, %v926
      %v1409 = vmul.f32 %v1405, %v926
      %v1410 = vmul.f32 %v1406, %v926
      %v1411 = vmul.f32 %v1407, %v926
      %1412 = vrot.lane.b32.xlu0 %v1364, 3
      %v1413 = vpop.permute.xlu0 %1412
      %1414 = vrot.lane.b32.xlu0 %v1365, 3
      %v1415 = vpop.permute.xlu0 %1414
      %1416 = vrot.lane.b32.xlu0 %v1366, 3
      %v1417 = vpop.permute.xlu0 %1416
      %1418 = vrot.lane.b32.xlu0 %v1367, 3
      %v1419 = vpop.permute.xlu0 %1418
      %v1424 = vsel %vm943, 0.0, %v1413
      %v1425 = vsel %vm943, 0.0, %v1415
      %v1426 = vsel %vm943, 0.0, %v1417
      %v1427 = vsel %vm943, 0.0, %v1419
      %v1428 = vmul.f32 %v1424, %v949
      %v1429 = vmul.f32 %v1425, %v949
      %v1430 = vmul.f32 %v1426, %v949
      %v1431 = vmul.f32 %v1427, %v949
      %1432 = vrot.lane.b32.xlu0 %v1364, 1
      %v1433 = vpop.permute.xlu0 %1432
      %1434 = vrot.lane.b32.xlu0 %v1365, 1
      %v1435 = vpop.permute.xlu0 %1434
      %1436 = vrot.lane.b32.xlu0 %v1366, 1
      %v1437 = vpop.permute.xlu0 %1436
      %1438 = vrot.lane.b32.xlu0 %v1367, 1
      %v1439 = vpop.permute.xlu0 %1438
      %v1444 = vsel %vm966, 0.0, %v1433
      %v1445 = vsel %vm966, 0.0, %v1435
      %v1446 = vsel %vm966, 0.0, %v1437
      %v1447 = vsel %vm966, 0.0, %v1439
      %v1448 = vmul.f32 %v1444, %v972
      %v1449 = vmul.f32 %v1445, %v972
      %v1450 = vmul.f32 %v1446, %v972
      %v1451 = vmul.f32 %v1447, %v972
      %1452 = vrot.lane.b32.xlu0 %v1364, 127
      %v1453 = vpop.permute.xlu0 %1452
      %1454 = vrot.lane.b32.xlu0 %v1365, 127
      %v1455 = vpop.permute.xlu0 %1454
      %1456 = vrot.lane.b32.xlu0 %v1366, 127
      %v1457 = vpop.permute.xlu0 %1456
      %1458 = vrot.lane.b32.xlu0 %v1367, 127
      %v1459 = vpop.permute.xlu0 %1458
      %v1464 = vsel %vm989, %v1453, 0.0
      %v1465 = vsel %vm989, %v1455, 0.0
      %v1466 = vsel %vm989, %v1457, 0.0
      %v1467 = vsel %vm989, %v1459, 0.0
      %v1468 = vmul.f32 %v1464, %v995
      %v1469 = vmul.f32 %v1465, %v995
      %v1470 = vmul.f32 %v1466, %v995
      %v1471 = vmul.f32 %v1467, %v995
      %1472 = vrot.lane.b32.xlu0 %v1364, 125
      %v1473 = vpop.permute.xlu0 %1472
      %1474 = vrot.lane.b32.xlu0 %v1365, 125
      %v1475 = vpop.permute.xlu0 %1474
      %1476 = vrot.lane.b32.xlu0 %v1366, 125
      %v1477 = vpop.permute.xlu0 %1476
      %1478 = vrot.lane.b32.xlu0 %v1367, 125
      %v1479 = vpop.permute.xlu0 %1478
      %v1484 = vsel %vm1012, %v1473, 0.0
      %v1485 = vsel %vm1012, %v1475, 0.0
      %v1486 = vsel %vm1012, %v1477, 0.0
      %v1487 = vsel %vm1012, %v1479, 0.0
      %v1488 = vmul.f32 %v1484, %v1018
      %v1489 = vmul.f32 %v1485, %v1018
      %v1490 = vmul.f32 %v1486, %v1018
      %v1491 = vmul.f32 %v1487, %v1018
      %1492 = vrot.lane.b32.xlu0 %v1364, 124
      %v1493 = vpop.permute.xlu0 %1492
      %1494 = vrot.lane.b32.xlu0 %v1365, 124
      %v1495 = vpop.permute.xlu0 %1494
      %1496 = vrot.lane.b32.xlu0 %v1366, 124
      %v1497 = vpop.permute.xlu0 %1496
      %1498 = vrot.lane.b32.xlu0 %v1367, 124
      %v1499 = vpop.permute.xlu0 %1498
      %v1504 = vsel %vm1035, %v1493, 0.0
      %v1505 = vsel %vm1035, %v1495, 0.0
      %v1506 = vsel %vm1035, %v1497, 0.0
      %v1507 = vsel %vm1035, %v1499, 0.0
      %v1508 = vmul.f32 %v1504, %v1041
      %v1509 = vmul.f32 %v1505, %v1041
      %v1510 = vmul.f32 %v1506, %v1041
      %v1511 = vmul.f32 %v1507, %v1041
      %1512 = vrot.lane.b32.xlu0 %v1364, 123
      %v1513 = vpop.permute.xlu0 %1512
      %1514 = vrot.lane.b32.xlu0 %v1365, 123
      %v1515 = vpop.permute.xlu0 %1514
      %1516 = vrot.lane.b32.xlu0 %v1366, 123
      %v1517 = vpop.permute.xlu0 %1516
      %1518 = vrot.lane.b32.xlu0 %v1367, 123
      %v1519 = vpop.permute.xlu0 %1518
      %v1524 = vsel %vm1058, %v1513, 0.0
      %v1525 = vsel %vm1058, %v1515, 0.0
      %v1526 = vsel %vm1058, %v1517, 0.0
      %v1527 = vsel %vm1058, %v1519, 0.0
      %v1528 = vmul.f32 %v1524, %v1064
      %v1529 = vmul.f32 %v1525, %v1064
      %v1530 = vmul.f32 %v1526, %v1064
      %v1531 = vmul.f32 %v1527, %v1064
      %v1532 = vpack.c.bf16 %v1389, %v1388
      %v1533 = vpack.c.bf16 %v1391, %v1390
      %v1534 = vpack.c.bf16 %v1409, %v1408
      %v1535 = vpack.c.bf16 %v1411, %v1410
      %v1536 = vpack.c.bf16 %v1429, %v1428
      %v1537 = vpack.c.bf16 %v1431, %v1430
      %v1538 = vpack.c.bf16 %v1449, %v1448
      %v1539 = vpack.c.bf16 %v1451, %v1450
      %v1540 = vpack.c.bf16 %v1365, %v1364
      %v1541 = vpack.c.bf16 %v1367, %v1366
      %v1542 = vpack.c.bf16 %v1469, %v1468
      %v1543 = vpack.c.bf16 %v1471, %v1470
      %v1544 = vpack.c.bf16 %v1489, %v1488
      %v1545 = vpack.c.bf16 %v1491, %v1490
      %v1546 = vpack.c.bf16 %v1509, %v1508
      %v1547 = vpack.c.bf16 %v1511, %v1510
      %v1548 = vpack.c.bf16 %v1529, %v1528
      %v1549 = vpack.c.bf16 %v1531, %v1530
      %v1582 = vunpack.c.l.b16 %v1311
      %v1583 = vunpack.c.h.b16 %v1311
      %v1584 = vunpack.c.l.b16 %v1312
      %v1585 = vunpack.c.l.b16 %v1313
      %v1586 = vunpack.c.h.b16 %v1313
      %v1587 = vunpack.c.l.b16 %v1314
      %v1588 = vunpack.c.l.b16 %v1315
      %v1589 = vunpack.c.h.b16 %v1315
      %v1590 = vunpack.c.l.b16 %v1316
      %v1591 = vunpack.c.l.b16 %v1317
      %v1592 = vunpack.c.h.b16 %v1317
      %v1593 = vunpack.c.l.b16 %v1318
      %v1594 = vunpack.c.l.b16 %v1319
      %v1595 = vunpack.c.h.b16 %v1319
      %v1596 = vunpack.c.l.b16 %v1320
      %v1597 = vunpack.c.l.b16 %v1321
      %v1598 = vunpack.c.h.b16 %v1321
      %v1599 = vunpack.c.l.b16 %v1322
      %v1600 = vunpack.c.l.b16 %v1323
      %v1601 = vunpack.c.h.b16 %v1323
      %v1602 = vunpack.c.l.b16 %v1324
      %v1603 = vunpack.c.l.b16 %v1325
      %v1604 = vunpack.c.h.b16 %v1325
      %v1605 = vunpack.c.l.b16 %v1326
      %v1606 = vunpack.c.l.b16 %v1327
      %v1607 = vunpack.c.h.b16 %v1327
      %v1608 = vunpack.c.l.b16 %v1328
      %v1609 = vunpack.c.l.b16 %v1329
      %v1610 = vunpack.c.h.b16 %v1329
      %v1611 = vunpack.c.l.b16 %v1330
      %v1612 = vunpack.c.l.b16 %v1331
      %v1613 = vunpack.c.h.b16 %v1331
      %v1614 = vunpack.c.l.b16 %v1332
      %v1615 = vunpack.c.l.b16 %v1333
      %v1616 = vunpack.c.h.b16 %v1333
      %v1617 = vunpack.c.l.b16 %v1334
      %v1618 = vunpack.c.l.b16 %v1335
      %v1619 = vunpack.c.h.b16 %v1335
      %v1620 = vunpack.c.l.b16 %v1336
      %v1621 = vunpack.c.l.b16 %v1337
      %v1622 = vunpack.c.h.b16 %v1337
      %v1623 = vunpack.c.l.b16 %v1338
      %v1624 = vunpack.c.l.b16 %v1339
      %v1625 = vunpack.c.h.b16 %v1339
      %v1626 = vunpack.c.l.b16 %v1340
      %v1627 = vunpack.c.l.b16 %v1341
      %v1628 = vunpack.c.h.b16 %v1341
      %v1629 = vunpack.c.l.b16 %v1342
      %v1630 = vpack.c.b16 %v1585, %v1582
      %v1631 = vpack.c.b16 %v1586, %v1583
      %v1632 = vpack.c.b16 %v1587, %v1584
      %v1633 = vpack.c.b16 %v1591, %v1588
      %v1634 = vpack.c.b16 %v1592, %v1589
      %v1635 = vpack.c.b16 %v1593, %v1590
      %v1636 = vpack.c.b16 %v1597, %v1594
      %v1637 = vpack.c.b16 %v1598, %v1595
      %v1638 = vpack.c.b16 %v1599, %v1596
      %v1639 = vpack.c.b16 %v1603, %v1600
      %v1640 = vpack.c.b16 %v1604, %v1601
      %v1641 = vpack.c.b16 %v1605, %v1602
      %v1642 = vpack.c.b16 %v1609, %v1606
      %v1643 = vpack.c.b16 %v1610, %v1607
      %v1644 = vpack.c.b16 %v1611, %v1608
      %v1645 = vpack.c.b16 %v1615, %v1612
      %v1646 = vpack.c.b16 %v1616, %v1613
      %v1647 = vpack.c.b16 %v1617, %v1614
      %v1648 = vpack.c.b16 %v1621, %v1618
      %v1649 = vpack.c.b16 %v1622, %v1619
      %v1650 = vpack.c.b16 %v1623, %v1620
      %v1651 = vpack.c.b16 %v1627, %v1624
      %v1652 = vpack.c.b16 %v1628, %v1625
      %v1653 = vpack.c.b16 %v1629, %v1626
      %v1671 = vsel %vm1117, %v1632, 0
      %v1674 = vsel %vm1117, %v1635, 0
      %v1677 = vsel %vm1117, %v1638, 0
      %v1680 = vsel %vm1117, %v1641, 0
      %v1683 = vsel %vm1117, %v1644, 0
      %v1686 = vsel %vm1117, %v1647, 0
      %v1689 = vsel %vm1117, %v1650, 0
      %v1692 = vsel %vm1117, %v1653, 0
      %1694 = vmatpush.bf16.msra.mxu0 %v1539
      %1695 = vmatpush.bf16.msra.mxu0 %v1538
      %1696 = vmatpush.bf16.msra.mxu0 %v1537
      %1697 = vmatpush.bf16.msra.mxu0 %v1536
      %1698 = vmatpush.bf16.msra.mxu0 %v1535
      %1699 = vmatpush.bf16.msra.mxu0 %v1534
      %1700 = vmatpush.bf16.msra.mxu0 %v1533
      %1701 = vmatpush.bf16.msra.mxu0 %v1532
      %1702 = vmatmul.bf16.gmra.mxu0 %v1630
      %v1703 = vpop.f32.mrf.mxu0
      %v1704 = vadd.f32 0.0, %v1703
      %v1705 = vpop.f32.mrf.mxu0
      %v1706 = vadd.f32 0.0, %v1705
      %1707 = vmatmul.bf16.gmra.mxu0 %v1633
      %v1708 = vpop.f32.mrf.mxu0
      %v1709 = vadd.f32 0.0, %v1708
      %v1710 = vpop.f32.mrf.mxu0
      %v1711 = vadd.f32 0.0, %v1710
      %1712 = vmatmul.bf16.gmra.mxu0 %v1636
      %v1713 = vpop.f32.mrf.mxu0
      %v1714 = vadd.f32 0.0, %v1713
      %v1715 = vpop.f32.mrf.mxu0
      %v1716 = vadd.f32 0.0, %v1715
      %1717 = vmatmul.bf16.gmra.mxu0 %v1639
      %v1718 = vpop.f32.mrf.mxu0
      %v1719 = vadd.f32 0.0, %v1718
      %v1720 = vpop.f32.mrf.mxu0
      %v1721 = vadd.f32 0.0, %v1720
      %1722 = vmatmul.bf16.gmra.mxu0 %v1642
      %v1723 = vpop.f32.mrf.mxu0
      %v1724 = vadd.f32 0.0, %v1723
      %v1725 = vpop.f32.mrf.mxu0
      %v1726 = vadd.f32 0.0, %v1725
      %1727 = vmatmul.bf16.gmra.mxu0 %v1645
      %v1728 = vpop.f32.mrf.mxu0
      %v1729 = vadd.f32 0.0, %v1728
      %v1730 = vpop.f32.mrf.mxu0
      %v1731 = vadd.f32 0.0, %v1730
      %1732 = vmatmul.bf16.gmra.mxu0 %v1648
      %v1733 = vpop.f32.mrf.mxu0
      %v1734 = vadd.f32 0.0, %v1733
      %v1735 = vpop.f32.mrf.mxu0
      %v1736 = vadd.f32 0.0, %v1735
      %1737 = vmatmul.bf16.gmra.mxu0 %v1651
      %v1738 = vpop.f32.mrf.mxu0
      %v1739 = vadd.f32 0.0, %v1738
      %v1740 = vpop.f32.mrf.mxu0
      %v1741 = vadd.f32 0.0, %v1740
      %1742 = vdwg.mxu0
      %1743 = vmatpush.bf16.msra.mxu0 %v1547
      %1744 = vmatpush.bf16.msra.mxu0 %v1546
      %1745 = vmatpush.bf16.msra.mxu0 %v1545
      %1746 = vmatpush.bf16.msra.mxu0 %v1544
      %1747 = vmatpush.bf16.msra.mxu0 %v1543
      %1748 = vmatpush.bf16.msra.mxu0 %v1542
      %1749 = vmatpush.bf16.msra.mxu0 %v1541
      %1750 = vmatpush.bf16.msra.mxu0 %v1540
      %1751 = vmatmul.bf16.gmra.mxu0 %v1631
      %v1752 = vpop.f32.mrf.mxu0
      %v1753 = vadd.f32 %v1704, %v1752
      %v1754 = vpop.f32.mrf.mxu0
      %v1755 = vadd.f32 %v1706, %v1754
      %1756 = vmatmul.bf16.gmra.mxu0 %v1634
      %v1757 = vpop.f32.mrf.mxu0
      %v1758 = vadd.f32 %v1709, %v1757
      %v1759 = vpop.f32.mrf.mxu0
      %v1760 = vadd.f32 %v1711, %v1759
      %1761 = vmatmul.bf16.gmra.mxu0 %v1637
      %v1762 = vpop.f32.mrf.mxu0
      %v1763 = vadd.f32 %v1714, %v1762
      %v1764 = vpop.f32.mrf.mxu0
      %v1765 = vadd.f32 %v1716, %v1764
      %1766 = vmatmul.bf16.gmra.mxu0 %v1640
      %v1767 = vpop.f32.mrf.mxu0
      %v1768 = vadd.f32 %v1719, %v1767
      %v1769 = vpop.f32.mrf.mxu0
      %v1770 = vadd.f32 %v1721, %v1769
      %1771 = vmatmul.bf16.gmra.mxu0 %v1643
      %v1772 = vpop.f32.mrf.mxu0
      %v1773 = vadd.f32 %v1724, %v1772
      %v1774 = vpop.f32.mrf.mxu0
      %v1775 = vadd.f32 %v1726, %v1774
      %1776 = vmatmul.bf16.gmra.mxu0 %v1646
      %v1777 = vpop.f32.mrf.mxu0
      %v1778 = vadd.f32 %v1729, %v1777
      %v1779 = vpop.f32.mrf.mxu0
      %v1780 = vadd.f32 %v1731, %v1779
      %1781 = vmatmul.bf16.gmra.mxu0 %v1649
      %v1782 = vpop.f32.mrf.mxu0
      %v1783 = vadd.f32 %v1734, %v1782
      %v1784 = vpop.f32.mrf.mxu0
      %v1785 = vadd.f32 %v1736, %v1784
      %1786 = vmatmul.bf16.gmra.mxu0 %v1652
      %v1787 = vpop.f32.mrf.mxu0
      %v1788 = vadd.f32 %v1739, %v1787
      %v1789 = vpop.f32.mrf.mxu0
      %v1790 = vadd.f32 %v1741, %v1789
      %1791 = vdwg.mxu0
      %1792 = vmatpush.bf16.msra.mxu0 0
      %1793 = vmatpush.bf16.msra.mxu0 0
      %1794 = vmatpush.bf16.msra.mxu0 0
      %1795 = vmatpush.bf16.msra.mxu0 0
      %1796 = vmatpush.bf16.msra.mxu0 0
      %1797 = vmatpush.bf16.msra.mxu0 0
      %1798 = vmatpush.bf16.msra.mxu0 %v1549
      %1799 = vmatpush.bf16.msra.mxu0 %v1548
      %1800 = vmatmul.bf16.gmra.mxu0 %v1671
      %v1801 = vpop.f32.mrf.mxu0
      %v1802 = vadd.f32 %v1753, %v1801
      %v1803 = vpop.f32.mrf.mxu0
      %v1804 = vadd.f32 %v1755, %v1803
      %1805 = vmatmul.bf16.gmra.mxu0 %v1674
      %v1806 = vpop.f32.mrf.mxu0
      %v1807 = vadd.f32 %v1758, %v1806
      %v1808 = vpop.f32.mrf.mxu0
      %v1809 = vadd.f32 %v1760, %v1808
      %1810 = vmatmul.bf16.gmra.mxu0 %v1677
      %v1811 = vpop.f32.mrf.mxu0
      %v1812 = vadd.f32 %v1763, %v1811
      %v1813 = vpop.f32.mrf.mxu0
      %v1814 = vadd.f32 %v1765, %v1813
      %1815 = vmatmul.bf16.gmra.mxu0 %v1680
      %v1816 = vpop.f32.mrf.mxu0
      %v1817 = vadd.f32 %v1768, %v1816
      %v1818 = vpop.f32.mrf.mxu0
      %v1819 = vadd.f32 %v1770, %v1818
      %1820 = vmatmul.bf16.gmra.mxu0 %v1683
      %v1821 = vpop.f32.mrf.mxu0
      %v1822 = vadd.f32 %v1773, %v1821
      %v1823 = vpop.f32.mrf.mxu0
      %v1824 = vadd.f32 %v1775, %v1823
      %1825 = vmatmul.bf16.gmra.mxu0 %v1686
      %v1826 = vpop.f32.mrf.mxu0
      %v1827 = vadd.f32 %v1778, %v1826
      %v1828 = vpop.f32.mrf.mxu0
      %v1829 = vadd.f32 %v1780, %v1828
      %1830 = vmatmul.bf16.gmra.mxu0 %v1689
      %v1831 = vpop.f32.mrf.mxu0
      %v1832 = vadd.f32 %v1783, %v1831
      %v1833 = vpop.f32.mrf.mxu0
      %v1834 = vadd.f32 %v1785, %v1833
      %1835 = vmatmul.bf16.gmra.mxu0 %v1692
      %v1836 = vpop.f32.mrf.mxu0
      %v1837 = vadd.f32 %v1788, %v1836
      %v1838 = vpop.f32.mrf.mxu0
      %v1839 = vadd.f32 %v1790, %v1838
      %1840 = vdwg.mxu0
      %1842 = vrot.lane.b32.xlu0 %v1310, 5
      %v1843 = vpop.permute.xlu0 %1842
      %v1845 = vsel %vm897, 0.0, %v1843
      %v1846 = vmul.f32 %v1845, %v903
      %v1847 = vmul.f32 %v1846, 0.0625
      %1848 = vrot.lane.b32.xlu0 %v1310, 4
      %v1849 = vpop.permute.xlu0 %1848
      %v1851 = vsel %vm920, 0.0, %v1849
      %v1852 = vmul.f32 %v1851, %v926
      %v1853 = vmul.f32 %v1852, 0.1875
      %v1854 = vadd.f32 %v1847, %v1853
      %1855 = vrot.lane.b32.xlu0 %v1310, 1
      %v1856 = vpop.permute.xlu0 %1855
      %v1858 = vsel %vm966, 0.0, %v1856
      %v1859 = vmul.f32 %v1858, %v972
      %v1860 = vmul.f32 %v1859, 0.1875
      %v1861 = vadd.f32 %v1854, %v1860
      %v1862 = vmul.f32 %v1310, 0.5625
      %v1863 = vadd.f32 %v1861, %v1862
      %1864 = vrot.lane.b32.xlu0 %v1310, 3
      %v1865 = vpop.permute.xlu0 %1864
      %v1867 = vsel %vm943, 0.0, %v1865
      %v1868 = vmul.f32 %v1867, %v949
      %v1869 = vmul.f32 %v1868, 0.0625
      %v1870 = vadd.f32 %v1853, %v1869
      %v1871 = vadd.f32 %v1870, %v1862
      %1872 = vrot.lane.b32.xlu0 %v1310, 127
      %v1873 = vpop.permute.xlu0 %1872
      %v1875 = vsel %vm989, %v1873, 0.0
      %v1876 = vmul.f32 %v1875, %v995
      %v1877 = vmul.f32 %v1876, 0.1875
      %v1878 = vadd.f32 %v1871, %v1877
      %v1879 = vadd.f32 %v1860, %v1862
      %1880 = vrot.lane.b32.xlu0 %v1310, 125
      %v1881 = vpop.permute.xlu0 %1880
      %v1883 = vsel %vm1012, %v1881, 0.0
      %v1884 = vmul.f32 %v1883, %v1018
      %v1885 = vmul.f32 %v1884, 0.0625
      %v1886 = vadd.f32 %v1879, %v1885
      %1887 = vrot.lane.b32.xlu0 %v1310, 124
      %v1888 = vpop.permute.xlu0 %1887
      %v1890 = vsel %vm1035, %v1888, 0.0
      %v1891 = vmul.f32 %v1890, %v1041
      %v1892 = vmul.f32 %v1891, 0.1875
      %v1893 = vadd.f32 %v1886, %v1892
      %v1894 = vadd.f32 %v1862, %v1877
      %v1895 = vadd.f32 %v1894, %v1892
      %1896 = vrot.lane.b32.xlu0 %v1310, 123
      %v1897 = vpop.permute.xlu0 %1896
      %v1899 = vsel %vm1058, %v1897, 0.0
      %v1900 = vmul.f32 %v1899, %v1064
      %v1901 = vmul.f32 %v1900, 0.0625
      %v1902 = vadd.f32 %v1895, %v1901
      %v1903 = vpack.c.bf16 %v1804, %v1802
      %v1904 = vpack.c.bf16 %v1809, %v1807
      %v1905 = vpack.c.bf16 %v1863, %v1863
      %v1906 = vld [vmem:[%s7] sm:$0xf]
      %v1907 = vld [vmem:[%s7 + $0x4] sm:$0xf]
      %v1908 = vpack.c.bf16 %v1814, %v1812
      %v1909 = vpack.c.bf16 %v1819, %v1817
      %v1910 = vpack.c.bf16 %v1878, %v1878
      %v1911 = vld [vmem:[%s7 + $0x8] sm:$0xf]
      %v1912 = vld [vmem:[%s7 + $0xc] sm:$0xf]
      %v1915 = vunpack.c.l.b16 %v1911
      %v1916 = vunpack.c.l.b16 %v1912
      %v1917 = vpack.c.b16 %v1916, %v1915
      %vm1919 = vcmask 130048
      %v1921 = vsel %vm1919, %v1908, 0
      %v1924 = vsel %vm1919, %v1909, 0
      %v1927 = vsel %vm1919, %v1910, 0
      %1929 = vmatpush.bf16.msra.mxu0 0
      %1930 = vmatpush.bf16.msra.mxu0 0
      %1931 = vmatpush.bf16.msra.mxu0 0
      %1932 = vmatpush.bf16.msra.mxu0 0
      %1933 = vmatpush.bf16.msra.mxu0 0
      %1934 = vmatpush.bf16.msra.mxu0 0
      %1935 = vmatpush.bf16.msra.mxu0 0
      %1936 = vmatpush.bf16.msra.mxu0 %v1917
      %1937 = vmatmul.bf16.gmra.mxu0 %v1921
      %v1938 = vpop.f32.mrf.mxu0
      %v1939 = vadd.f32 0.0, %v1938
      %v1940 = vpop.f32.mrf.mxu0
      %v1941 = vadd.f32 0.0, %v1940
      %1942 = vmatmul.bf16.gmra.mxu0 %v1924
      %v1943 = vpop.f32.mrf.mxu0
      %v1944 = vadd.f32 0.0, %v1943
      %v1945 = vpop.f32.mrf.mxu0
      %v1946 = vadd.f32 0.0, %v1945
      %1947 = vmatmul.bf16.gmra.mxu0 %v1927
      %v1948 = vpop.f32.mrf.mxu0
      %v1949 = vadd.f32 0.0, %v1948
      %v1950 = vpop.f32.mrf.mxu0
      %1951 = vdwg.mxu0
      %v1954 = vunpack.c.l.b16 %v1906
      %v1955 = vunpack.c.l.b16 %v1907
      %v1956 = vpack.c.b16 %v1955, %v1954
      %v1959 = vsel %vm1919, %v1903, 0
      %v1962 = vsel %vm1919, %v1904, 0
      %v1965 = vsel %vm1919, %v1905, 0
      %1967 = vmatpush.bf16.msra.mxu0 0
      %1968 = vmatpush.bf16.msra.mxu0 0
      %1969 = vmatpush.bf16.msra.mxu0 0
      %1970 = vmatpush.bf16.msra.mxu0 0
      %1971 = vmatpush.bf16.msra.mxu0 0
      %1972 = vmatpush.bf16.msra.mxu0 0
      %1973 = vmatpush.bf16.msra.mxu0 0
      %1974 = vmatpush.bf16.msra.mxu0 %v1956
      %1975 = vmatmul.bf16.gmra.mxu0 %v1959
      %v1976 = vpop.f32.mrf.mxu0
      %v1977 = vadd.f32 %v1939, %v1976
      %v1978 = vpop.f32.mrf.mxu0
      %v1979 = vadd.f32 %v1941, %v1978
      %1980 = vmatmul.bf16.gmra.mxu0 %v1962
      %v1981 = vpop.f32.mrf.mxu0
      %v1982 = vadd.f32 %v1944, %v1981
      %v1983 = vpop.f32.mrf.mxu0
      %v1984 = vadd.f32 %v1946, %v1983
      %1985 = vmatmul.bf16.gmra.mxu0 %v1965
      %v1986 = vpop.f32.mrf.mxu0
      %v1987 = vadd.f32 %v1949, %v1986
      %v1988 = vpop.f32.mrf.mxu0
      %1989 = vdwg.mxu0
      %v1990 = vpack.c.bf16 %v1824, %v1822
      %v1991 = vpack.c.bf16 %v1829, %v1827
      %v1992 = vpack.c.bf16 %v1893, %v1893
      %v1993 = vld [vmem:[%s7 + $0x10] sm:$0xf]
      %v1994 = vld [vmem:[%s7 + $0x14] sm:$0xf]
      %v1997 = vunpack.c.l.b16 %v1993
      %v1998 = vunpack.c.l.b16 %v1994
      %v1999 = vpack.c.b16 %v1998, %v1997
      %v2002 = vsel %vm1919, %v1990, 0
      %v2005 = vsel %vm1919, %v1991, 0
      %v2008 = vsel %vm1919, %v1992, 0
      %2010 = vmatpush.bf16.msra.mxu0 0
      %2011 = vmatpush.bf16.msra.mxu0 0
      %2012 = vmatpush.bf16.msra.mxu0 0
      %2013 = vmatpush.bf16.msra.mxu0 0
      %2014 = vmatpush.bf16.msra.mxu0 0
      %2015 = vmatpush.bf16.msra.mxu0 0
      %2016 = vmatpush.bf16.msra.mxu0 0
      %2017 = vmatpush.bf16.msra.mxu0 %v1999
      %2018 = vmatmul.bf16.gmra.mxu0 %v2002
      %v2019 = vpop.f32.mrf.mxu0
      %v2020 = vadd.f32 0.0, %v2019
      %v2021 = vpop.f32.mrf.mxu0
      %v2022 = vadd.f32 0.0, %v2021
      %2023 = vmatmul.bf16.gmra.mxu0 %v2005
      %v2024 = vpop.f32.mrf.mxu0
      %v2025 = vadd.f32 0.0, %v2024
      %v2026 = vpop.f32.mrf.mxu0
      %v2027 = vadd.f32 0.0, %v2026
      %2028 = vmatmul.bf16.gmra.mxu0 %v2008
      %v2029 = vpop.f32.mrf.mxu0
      %v2030 = vadd.f32 0.0, %v2029
      %v2031 = vpop.f32.mrf.mxu0
      %2032 = vdwg.mxu0
      %v2033 = vadd.f32 %v1977, %v2020
      %v2034 = vadd.f32 %v1979, %v2022
      %v2035 = vadd.f32 %v1982, %v2025
      %v2036 = vadd.f32 %v1984, %v2027
      %v2037 = vadd.f32 %v1987, %v2030
      %v2038 = vpack.c.bf16 %v1834, %v1832
      %v2039 = vpack.c.bf16 %v1839, %v1837
      %v2040 = vpack.c.bf16 %v1902, %v1902
      %v2041 = vld [vmem:[%s7 + $0x18] sm:$0xf]
      %v2042 = vld [vmem:[%s7 + $0x1c] sm:$0xf]
      %v2045 = vunpack.c.l.b16 %v2041
      %v2046 = vunpack.c.l.b16 %v2042
      %v2047 = vpack.c.b16 %v2046, %v2045
      %v2050 = vsel %vm1919, %v2038, 0
      %v2053 = vsel %vm1919, %v2039, 0
      %v2056 = vsel %vm1919, %v2040, 0
      %2058 = vmatpush.bf16.msra.mxu0 0
      %2059 = vmatpush.bf16.msra.mxu0 0
      %2060 = vmatpush.bf16.msra.mxu0 0
      %2061 = vmatpush.bf16.msra.mxu0 0
      %2062 = vmatpush.bf16.msra.mxu0 0
      %2063 = vmatpush.bf16.msra.mxu0 0
      %2064 = vmatpush.bf16.msra.mxu0 0
      %2065 = vmatpush.bf16.msra.mxu0 %v2047
      %2066 = vmatmul.bf16.gmra.mxu0 %v2050
      %v2067 = vpop.f32.mrf.mxu0
      %v2068 = vadd.f32 0.0, %v2067
      %v2069 = vpop.f32.mrf.mxu0
      %v2070 = vadd.f32 0.0, %v2069
      %2071 = vmatmul.bf16.gmra.mxu0 %v2053
      %v2072 = vpop.f32.mrf.mxu0
      %v2073 = vadd.f32 0.0, %v2072
      %v2074 = vpop.f32.mrf.mxu0
      %v2075 = vadd.f32 0.0, %v2074
      %2076 = vmatmul.bf16.gmra.mxu0 %v2056
      %v2077 = vpop.f32.mrf.mxu0
      %v2078 = vadd.f32 0.0, %v2077
      %v2079 = vpop.f32.mrf.mxu0
      %2080 = vdwg.mxu0
      %v2081 = vadd.f32 %v2033, %v2068
      %v2082 = vadd.f32 %v2034, %v2070
      %v2083 = vadd.f32 %v2035, %v2073
      %v2084 = vadd.f32 %v2036, %v2075
      %v2085 = vadd.f32 %v2037, %v2078
      %2087 = vset.pattern.permute.xlu0 0
      %2088 = vperm.xlu0 %2087, %v808
      %v2089 = vpop.permute.xlu0 %2088
      %2092 = vset.pattern.permute.xlu0 0
      %2093 = vperm.xlu0 %2092, %v809
      %v2094 = vpop.permute.xlu0 %2093
      %2097 = vset.pattern.permute.xlu0 0
      %2098 = vperm.xlu0 %2097, %v810
      %v2099 = vpop.permute.xlu0 %2098
      %2102 = vset.pattern.permute.xlu0 0
      %2103 = vperm.xlu0 %2102, %v811
      %v2104 = vpop.permute.xlu0 %2103
      %v2106 = vmul.f32 %v2081, %v2089
      %v2107 = vmul.f32 %v2082, %v2094
      %v2108 = vmul.f32 %v2083, %v2099
      %v2109 = vmul.f32 %v2084, %v2104
      %v2110 = vperm.slane %v1343, 0
      %v2111 = vadd.f32 %v2106, %v2110
      %v2112 = vadd.f32 %v2107, %v2110
      %v2113 = vadd.f32 %v2108, %v2110
      %v2114 = vadd.f32 %v2109, %v2110
      %2116 = vset.pattern.permute.xlu0 0
      %2117 = vperm.xlu0 %2116, %v828
      %v2118 = vpop.permute.xlu0 %2117
      %2121 = vset.pattern.permute.xlu0 0
      %2122 = vperm.xlu0 %2121, %v829
      %v2123 = vpop.permute.xlu0 %2122
      %2126 = vset.pattern.permute.xlu0 0
      %2127 = vperm.xlu0 %2126, %v830
      %v2128 = vpop.permute.xlu0 %2127
      %2131 = vset.pattern.permute.xlu0 0
      %2132 = vperm.xlu0 %2131, %v831
      %v2133 = vpop.permute.xlu0 %2132
      %v2135 = vadd.f32 %v2111, %v2118
      %v2136 = vadd.f32 %v2112, %v2123
      %v2137 = vadd.f32 %v2113, %v2128
      %v2138 = vadd.f32 %v2114, %v2133
      %vm2139 = vcmp.lt.f32.partialorder %v2135, 0.0
      %vm2140 = vcmp.lt.f32.partialorder %v2136, 0.0
      %vm2141 = vcmp.lt.f32.partialorder %v2137, 0.0
      %vm2142 = vcmp.lt.f32.partialorder %v2138, 0.0
      %v2143 = vmul.f32 %v2135, 0.2
      %v2144 = vmul.f32 %v2136, 0.2
      %v2145 = vmul.f32 %v2137, 0.2
      %v2146 = vmul.f32 %v2138, 0.2
      %v2147 = vsel %vm2139, %v2143, %v2135
      %v2148 = vsel %vm2140, %v2144, %v2136
      %v2149 = vsel %vm2141, %v2145, %v2137
      %v2150 = vsel %vm2142, %v2146, %v2138
      %v2151 = vmul.f32 %v2147, 1.4142135
      %v2152 = vmul.f32 %v2148, 1.4142135
      %v2153 = vmul.f32 %v2149, 1.4142135
      %v2154 = vmul.f32 %v2150, 1.4142135
      %v2155 = vmax.f32 %v2151, -256.0
      %v2156 = vmax.f32 %v2152, -256.0
      %v2157 = vmax.f32 %v2153, -256.0
      %v2158 = vmax.f32 %v2154, -256.0
      %v2159 = vmin.f32 %v2155, 256.0
      %v2160 = vmin.f32 %v2156, 256.0
      %v2161 = vmin.f32 %v2157, 256.0
      %v2162 = vmin.f32 %v2158, 256.0
      %v2163 = vld [vmem:[%s15 + $0x1] sm:$0x1]
      %v2164 = vld [vmem:[%s14] sm:$0xff]
      %v2165 = vld [vmem:[%s14 + $0x8] sm:$0xf]
      %v2166 = vld [vmem:[%s14 + $0xc] sm:$0xff]
      %v2167 = vld [vmem:[%s14 + $0x14] sm:$0xf]
      %v2168 = vld [vmem:[%s14 + $0x18] sm:$0xff]
      %v2169 = vld [vmem:[%s14 + $0x20] sm:$0xf]
      %v2170 = vld [vmem:[%s14 + $0x24] sm:$0xff]
      %v2171 = vld [vmem:[%s14 + $0x2c] sm:$0xf]
      %2173 = vset.pattern.permute.xlu0 0
      %2174 = vperm.xlu0 %2173, %v784
      %v2175 = vpop.permute.xlu0 %2174
      %2178 = vset.pattern.permute.xlu0 0
      %2179 = vperm.xlu0 %2178, %v785
      %v2180 = vpop.permute.xlu0 %2179
      %2183 = vset.pattern.permute.xlu0 0
      %2184 = vperm.xlu0 %2183, %v786
      %v2185 = vpop.permute.xlu0 %2184
      %2188 = vset.pattern.permute.xlu0 0
      %2189 = vperm.xlu0 %2188, %v787
      %v2190 = vpop.permute.xlu0 %2189
      %v2192 = vmul.f32 %v2159, %v2175
      %v2193 = vmul.f32 %v2160, %v2180
      %v2194 = vmul.f32 %v2161, %v2185
      %v2195 = vmul.f32 %v2162, %v2190
      %2200 = vrot.lane.b32.xlu0 %v2192, 9
      %v2201 = vpop.permute.xlu0 %2200
      %2202 = vrot.lane.b32.xlu0 %v2193, 9
      %v2203 = vpop.permute.xlu0 %2202
      %2204 = vrot.lane.b32.xlu0 %v2194, 9
      %v2205 = vpop.permute.xlu0 %2204
      %2206 = vrot.lane.b32.xlu0 %v2195, 9
      %v2207 = vpop.permute.xlu0 %2206
      %vm2212 = vcmask 72704
      %v2213 = vsel %vm2212, 0.0, %v2201
      %v2214 = vsel %vm2212, 0.0, %v2203
      %v2215 = vsel %vm2212, 0.0, %v2205
      %v2216 = vsel %vm2212, 0.0, %v2207
      %v2217 = vld [vmem:[%s5] sm:$0x1]
      %v2218 = vperm.slane %v2217, 0
      %v2219 = vmul.f32 %v2213, %v2218
      %v2220 = vmul.f32 %v2214, %v2218
      %v2221 = vmul.f32 %v2215, %v2218
      %v2222 = vmul.f32 %v2216, %v2218
      %2223 = vrot.lane.b32.xlu0 %v2192, 8
      %v2224 = vpop.permute.xlu0 %2223
      %2225 = vrot.lane.b32.xlu0 %v2193, 8
      %v2226 = vpop.permute.xlu0 %2225
      %2227 = vrot.lane.b32.xlu0 %v2194, 8
      %v2228 = vpop.permute.xlu0 %2227
      %2229 = vrot.lane.b32.xlu0 %v2195, 8
      %v2230 = vpop.permute.xlu0 %2229
      %vm2235 = vcmask 64512
      %v2236 = vsel %vm2235, 0.0, %v2224
      %v2237 = vsel %vm2235, 0.0, %v2226
      %v2238 = vsel %vm2235, 0.0, %v2228
      %v2239 = vsel %vm2235, 0.0, %v2230
      %v2240 = vld [vmem:[%s5 + $0x1] sm:$0x1]
      %v2241 = vperm.slane %v2240, 0
      %v2242 = vmul.f32 %v2236, %v2241
      %v2243 = vmul.f32 %v2237, %v2241
      %v2244 = vmul.f32 %v2238, %v2241
      %v2245 = vmul.f32 %v2239, %v2241
      %2246 = vrot.lane.b32.xlu0 %v2192, 7
      %v2247 = vpop.permute.xlu0 %2246
      %2248 = vrot.lane.b32.xlu0 %v2193, 7
      %v2249 = vpop.permute.xlu0 %2248
      %2250 = vrot.lane.b32.xlu0 %v2194, 7
      %v2251 = vpop.permute.xlu0 %2250
      %2252 = vrot.lane.b32.xlu0 %v2195, 7
      %v2253 = vpop.permute.xlu0 %2252
      %vm2258 = vcmask 56320
      %v2259 = vsel %vm2258, 0.0, %v2247
      %v2260 = vsel %vm2258, 0.0, %v2249
      %v2261 = vsel %vm2258, 0.0, %v2251
      %v2262 = vsel %vm2258, 0.0, %v2253
      %v2263 = vld [vmem:[%s5 + $0x2] sm:$0x1]
      %v2264 = vperm.slane %v2263, 0
      %v2265 = vmul.f32 %v2259, %v2264
      %v2266 = vmul.f32 %v2260, %v2264
      %v2267 = vmul.f32 %v2261, %v2264
      %v2268 = vmul.f32 %v2262, %v2264
      %2269 = vrot.lane.b32.xlu0 %v2192, 1
      %v2270 = vpop.permute.xlu0 %2269
      %2271 = vrot.lane.b32.xlu0 %v2193, 1
      %v2272 = vpop.permute.xlu0 %2271
      %2273 = vrot.lane.b32.xlu0 %v2194, 1
      %v2274 = vpop.permute.xlu0 %2273
      %2275 = vrot.lane.b32.xlu0 %v2195, 1
      %v2276 = vpop.permute.xlu0 %2275
      %v2281 = vsel %vm966, 0.0, %v2270
      %v2282 = vsel %vm966, 0.0, %v2272
      %v2283 = vsel %vm966, 0.0, %v2274
      %v2284 = vsel %vm966, 0.0, %v2276
      %v2285 = vld [vmem:[%s5 + $0x3] sm:$0x1]
      %v2286 = vperm.slane %v2285, 0
      %v2287 = vmul.f32 %v2281, %v2286
      %v2288 = vmul.f32 %v2282, %v2286
      %v2289 = vmul.f32 %v2283, %v2286
      %v2290 = vmul.f32 %v2284, %v2286
      %2291 = vrot.lane.b32.xlu0 %v2192, 127
      %v2292 = vpop.permute.xlu0 %2291
      %2293 = vrot.lane.b32.xlu0 %v2193, 127
      %v2294 = vpop.permute.xlu0 %2293
      %2295 = vrot.lane.b32.xlu0 %v2194, 127
      %v2296 = vpop.permute.xlu0 %2295
      %2297 = vrot.lane.b32.xlu0 %v2195, 127
      %v2298 = vpop.permute.xlu0 %2297
      %vm2303 = vcmask 515072
      %v2304 = vsel %vm2303, %v2292, 0.0
      %v2305 = vsel %vm2303, %v2294, 0.0
      %v2306 = vsel %vm2303, %v2296, 0.0
      %v2307 = vsel %vm2303, %v2298, 0.0
      %v2308 = vld [vmem:[%s5 + $0x5] sm:$0x1]
      %v2309 = vperm.slane %v2308, 0
      %v2310 = vmul.f32 %v2304, %v2309
      %v2311 = vmul.f32 %v2305, %v2309
      %v2312 = vmul.f32 %v2306, %v2309
      %v2313 = vmul.f32 %v2307, %v2309
      %2314 = vrot.lane.b32.xlu0 %v2192, 121
      %v2315 = vpop.permute.xlu0 %2314
      %2316 = vrot.lane.b32.xlu0 %v2193, 121
      %v2317 = vpop.permute.xlu0 %2316
      %2318 = vrot.lane.b32.xlu0 %v2194, 121
      %v2319 = vpop.permute.xlu0 %2318
      %2320 = vrot.lane.b32.xlu0 %v2195, 121
      %v2321 = vpop.permute.xlu0 %2320
      %vm2326 = vcmask 465920
      %v2327 = vsel %vm2326, %v2315, 0.0
      %v2328 = vsel %vm2326, %v2317, 0.0
      %v2329 = vsel %vm2326, %v2319, 0.0
      %v2330 = vsel %vm2326, %v2321, 0.0
      %v2331 = vld [vmem:[%s5 + $0x6] sm:$0x1]
      %v2332 = vperm.slane %v2331, 0
      %v2333 = vmul.f32 %v2327, %v2332
      %v2334 = vmul.f32 %v2328, %v2332
      %v2335 = vmul.f32 %v2329, %v2332
      %v2336 = vmul.f32 %v2330, %v2332
      %2337 = vrot.lane.b32.xlu0 %v2192, 120
      %v2338 = vpop.permute.xlu0 %2337
      %2339 = vrot.lane.b32.xlu0 %v2193, 120
      %v2340 = vpop.permute.xlu0 %2339
      %2341 = vrot.lane.b32.xlu0 %v2194, 120
      %v2342 = vpop.permute.xlu0 %2341
      %2343 = vrot.lane.b32.xlu0 %v2195, 120
      %v2344 = vpop.permute.xlu0 %2343
      %vm2349 = vcmask 457728
      %v2350 = vsel %vm2349, %v2338, 0.0
      %v2351 = vsel %vm2349, %v2340, 0.0
      %v2352 = vsel %vm2349, %v2342, 0.0
      %v2353 = vsel %vm2349, %v2344, 0.0
      %v2354 = vld [vmem:[%s5 + $0x7] sm:$0x1]
      %v2355 = vperm.slane %v2354, 0
      %v2356 = vmul.f32 %v2350, %v2355
      %v2357 = vmul.f32 %v2351, %v2355
      %v2358 = vmul.f32 %v2352, %v2355
      %v2359 = vmul.f32 %v2353, %v2355
      %2360 = vrot.lane.b32.xlu0 %v2192, 119
      %v2361 = vpop.permute.xlu0 %2360
      %2362 = vrot.lane.b32.xlu0 %v2193, 119
      %v2363 = vpop.permute.xlu0 %2362
      %2364 = vrot.lane.b32.xlu0 %v2194, 119
      %v2365 = vpop.permute.xlu0 %2364
      %2366 = vrot.lane.b32.xlu0 %v2195, 119
      %v2367 = vpop.permute.xlu0 %2366
      %vm2372 = vcmask 449536
      %v2373 = vsel %vm2372, %v2361, 0.0
      %v2374 = vsel %vm2372, %v2363, 0.0
      %v2375 = vsel %vm2372, %v2365, 0.0
      %v2376 = vsel %vm2372, %v2367, 0.0
      %v2377 = vld [vmem:[%s5 + $0x8] sm:$0x1]
      %v2378 = vperm.slane %v2377, 0
      %v2379 = vmul.f32 %v2373, %v2378
      %v2380 = vmul.f32 %v2374, %v2378
      %v2381 = vmul.f32 %v2375, %v2378
      %v2382 = vmul.f32 %v2376, %v2378
      %v2383 = vpack.c.bf16 %v2220, %v2219
      %v2384 = vpack.c.bf16 %v2222, %v2221
      %v2385 = vpack.c.bf16 %v2243, %v2242
      %v2386 = vpack.c.bf16 %v2245, %v2244
      %v2387 = vpack.c.bf16 %v2266, %v2265
      %v2388 = vpack.c.bf16 %v2268, %v2267
      %v2389 = vpack.c.bf16 %v2288, %v2287
      %v2390 = vpack.c.bf16 %v2290, %v2289
      %v2391 = vpack.c.bf16 %v2193, %v2192
      %v2392 = vpack.c.bf16 %v2195, %v2194
      %v2393 = vpack.c.bf16 %v2311, %v2310
      %v2394 = vpack.c.bf16 %v2313, %v2312
      %v2395 = vpack.c.bf16 %v2334, %v2333
      %v2396 = vpack.c.bf16 %v2336, %v2335
      %v2397 = vpack.c.bf16 %v2357, %v2356
      %v2398 = vpack.c.bf16 %v2359, %v2358
      %v2399 = vpack.c.bf16 %v2380, %v2379
      %v2400 = vpack.c.bf16 %v2382, %v2381
      %v2409 = vunpack.c.l.b16 %v2164
      %v2410 = vunpack.c.h.b16 %v2164
      %v2411 = vunpack.c.l.b16 %v2165
      %v2412 = vunpack.c.l.b16 %v2166
      %v2413 = vunpack.c.h.b16 %v2166
      %v2414 = vunpack.c.l.b16 %v2167
      %v2415 = vunpack.c.l.b16 %v2168
      %v2416 = vunpack.c.h.b16 %v2168
      %v2417 = vunpack.c.l.b16 %v2169
      %v2418 = vunpack.c.l.b16 %v2170
      %v2419 = vunpack.c.h.b16 %v2170
      %v2420 = vunpack.c.l.b16 %v2171
      %v2421 = vpack.c.b16 %v2412, %v2409
      %v2422 = vpack.c.b16 %v2413, %v2410
      %v2423 = vpack.c.b16 %v2414, %v2411
      %v2424 = vpack.c.b16 %v2418, %v2415
      %v2425 = vpack.c.b16 %v2419, %v2416
      %v2426 = vpack.c.b16 %v2420, %v2417
      %v2432 = vsel %vm1117, %v2423, 0
      %v2435 = vsel %vm1117, %v2426, 0
      %2437 = vmatpush.bf16.msra.mxu0 %v2390
      %2438 = vmatpush.bf16.msra.mxu0 %v2389
      %2439 = vmatpush.bf16.msra.mxu0 %v2388
      %2440 = vmatpush.bf16.msra.mxu0 %v2387
      %2441 = vmatpush.bf16.msra.mxu0 %v2386
      %2442 = vmatpush.bf16.msra.mxu0 %v2385
      %2443 = vmatpush.bf16.msra.mxu0 %v2384
      %2444 = vmatpush.bf16.msra.mxu0 %v2383
      %2445 = vmatmul.bf16.gmra.mxu0 %v2421
      %v2446 = vpop.f32.mrf.mxu0
      %v2447 = vadd.f32 0.0, %v2446
      %v2448 = vpop.f32.mrf.mxu0
      %v2449 = vadd.f32 0.0, %v2448
      %2450 = vmatmul.bf16.gmra.mxu0 %v2424
      %v2451 = vpop.f32.mrf.mxu0
      %v2452 = vadd.f32 0.0, %v2451
      %v2453 = vpop.f32.mrf.mxu0
      %v2454 = vadd.f32 0.0, %v2453
      %2455 = vdwg.mxu0
      %2456 = vmatpush.bf16.msra.mxu0 %v2398
      %2457 = vmatpush.bf16.msra.mxu0 %v2397
      %2458 = vmatpush.bf16.msra.mxu0 %v2396
      %2459 = vmatpush.bf16.msra.mxu0 %v2395
      %2460 = vmatpush.bf16.msra.mxu0 %v2394
      %2461 = vmatpush.bf16.msra.mxu0 %v2393
      %2462 = vmatpush.bf16.msra.mxu0 %v2392
      %2463 = vmatpush.bf16.msra.mxu0 %v2391
      %2464 = vmatmul.bf16.gmra.mxu0 %v2422
      %v2465 = vpop.f32.mrf.mxu0
      %v2466 = vadd.f32 %v2447, %v2465
      %v2467 = vpop.f32.mrf.mxu0
      %v2468 = vadd.f32 %v2449, %v2467
      %2469 = vmatmul.bf16.gmra.mxu0 %v2425
      %v2470 = vpop.f32.mrf.mxu0
      %v2471 = vadd.f32 %v2452, %v2470
      %v2472 = vpop.f32.mrf.mxu0
      %v2473 = vadd.f32 %v2454, %v2472
      %2474 = vdwg.mxu0
      %2475 = vmatpush.bf16.msra.mxu0 0
      %2476 = vmatpush.bf16.msra.mxu0 0
      %2477 = vmatpush.bf16.msra.mxu0 0
      %2478 = vmatpush.bf16.msra.mxu0 0
      %2479 = vmatpush.bf16.msra.mxu0 0
      %2480 = vmatpush.bf16.msra.mxu0 0
      %2481 = vmatpush.bf16.msra.mxu0 %v2400
      %2482 = vmatpush.bf16.msra.mxu0 %v2399
      %2483 = vmatmul.bf16.gmra.mxu0 %v2432
      %v2484 = vpop.f32.mrf.mxu0
      %v2485 = vadd.f32 %v2466, %v2484
      %v2486 = vpop.f32.mrf.mxu0
      %v2487 = vadd.f32 %v2468, %v2486
      %2488 = vmatmul.bf16.gmra.mxu0 %v2435
      %v2489 = vpop.f32.mrf.mxu0
      %v2490 = vadd.f32 %v2471, %v2489
      %v2491 = vpop.f32.mrf.mxu0
      %v2492 = vadd.f32 %v2473, %v2491
      %2493 = vdwg.mxu0
      %2495 = vset.pattern.permute.xlu0 0
      %2496 = vperm.xlu0 %2495, %v812
      %v2497 = vpop.permute.xlu0 %2496
      %2500 = vset.pattern.permute.xlu0 0
      %2501 = vperm.xlu0 %2500, %v813
      %v2502 = vpop.permute.xlu0 %2501
      %2505 = vset.pattern.permute.xlu0 0
      %2506 = vperm.xlu0 %2505, %v814
      %v2507 = vpop.permute.xlu0 %2506
      %2510 = vset.pattern.permute.xlu0 0
      %2511 = vperm.xlu0 %2510, %v815
      %v2512 = vpop.permute.xlu0 %2511
      %v2514 = vmul.f32 %v2485, %v2497
      %v2515 = vmul.f32 %v2487, %v2502
      %v2516 = vmul.f32 %v2490, %v2507
      %v2517 = vmul.f32 %v2492, %v2512
      %v2518 = vperm.slane %v2163, 0
      %v2519 = vadd.f32 %v2514, %v2518
      %v2520 = vadd.f32 %v2515, %v2518
      %v2521 = vadd.f32 %v2516, %v2518
      %v2522 = vadd.f32 %v2517, %v2518
      %2524 = vset.pattern.permute.xlu0 0
      %2525 = vperm.xlu0 %2524, %v832
      %v2526 = vpop.permute.xlu0 %2525
      %2529 = vset.pattern.permute.xlu0 0
      %2530 = vperm.xlu0 %2529, %v833
      %v2531 = vpop.permute.xlu0 %2530
      %2534 = vset.pattern.permute.xlu0 0
      %2535 = vperm.xlu0 %2534, %v834
      %v2536 = vpop.permute.xlu0 %2535
      %2539 = vset.pattern.permute.xlu0 0
      %2540 = vperm.xlu0 %2539, %v835
      %v2541 = vpop.permute.xlu0 %2540
      %v2543 = vadd.f32 %v2519, %v2526
      %v2544 = vadd.f32 %v2520, %v2531
      %v2545 = vadd.f32 %v2521, %v2536
      %v2546 = vadd.f32 %v2522, %v2541
      %vm2547 = vcmp.lt.f32.partialorder %v2543, 0.0
      %vm2548 = vcmp.lt.f32.partialorder %v2544, 0.0
      %vm2549 = vcmp.lt.f32.partialorder %v2545, 0.0
      %vm2550 = vcmp.lt.f32.partialorder %v2546, 0.0
      %v2551 = vmul.f32 %v2543, 0.2
      %v2552 = vmul.f32 %v2544, 0.2
      %v2553 = vmul.f32 %v2545, 0.2
      %v2554 = vmul.f32 %v2546, 0.2
      %v2555 = vsel %vm2547, %v2551, %v2543
      %v2556 = vsel %vm2548, %v2552, %v2544
      %v2557 = vsel %vm2549, %v2553, %v2545
      %v2558 = vsel %vm2550, %v2554, %v2546
      %v2559 = vmul.f32 %v2555, 1.4142135
      %v2560 = vmul.f32 %v2556, 1.4142135
      %v2561 = vmul.f32 %v2557, 1.4142135
      %v2562 = vmul.f32 %v2558, 1.4142135
      %v2563 = vmax.f32 %v2559, -256.0
      %v2564 = vmax.f32 %v2560, -256.0
      %v2565 = vmax.f32 %v2561, -256.0
      %v2566 = vmax.f32 %v2562, -256.0
      %v2567 = vmin.f32 %v2563, 256.0
      %v2568 = vmin.f32 %v2564, 256.0
      %v2569 = vmin.f32 %v2565, 256.0
      %v2570 = vmin.f32 %v2566, 256.0
      %v2571 = vld [vmem:[%s16] sm:$0x3]
      %v2572 = vld [vmem:[%s17] sm:$0x7]
      %2574 = vset.pattern.permute.xlu0 0
      %2575 = vperm.xlu0 %2574, %v788
      %v2576 = vpop.permute.xlu0 %2575
      %2579 = vset.pattern.permute.xlu0 0
      %2580 = vperm.xlu0 %2579, %v789
      %v2581 = vpop.permute.xlu0 %2580
      %2584 = vset.pattern.permute.xlu0 0
      %2585 = vperm.xlu0 %2584, %v790
      %v2586 = vpop.permute.xlu0 %2585
      %2589 = vset.pattern.permute.xlu0 0
      %2590 = vperm.xlu0 %2589, %v791
      %v2591 = vpop.permute.xlu0 %2590
      %v2593 = vmul.f32 %v2567, %v2576
      %v2594 = vmul.f32 %v2568, %v2581
      %v2595 = vmul.f32 %v2569, %v2586
      %v2596 = vmul.f32 %v2570, %v2591
      %v2597 = vpack.c.bf16 %v2594, %v2593
      %v2598 = vpack.c.bf16 %v2596, %v2595
      %2600 = vset.pattern.permute.xlu0 0
      %2601 = vperm.xlu0 %2600, %v2572
      %v2602 = vpop.permute.xlu0 %2601
      %v2605 = vsel %vm1117, %v2571, 0
      %2607 = vmatpush.bf16.msra.mxu0 0
      %2608 = vmatpush.bf16.msra.mxu0 0
      %2609 = vmatpush.bf16.msra.mxu0 0
      %2610 = vmatpush.bf16.msra.mxu0 0
      %2611 = vmatpush.bf16.msra.mxu0 0
      %2612 = vmatpush.bf16.msra.mxu0 0
      %2613 = vmatpush.bf16.msra.mxu0 %v2598
      %2614 = vmatpush.bf16.msra.mxu0 %v2597
      %2615 = vmatmul.bf16.gmra.mxu0 %v2605
      %v2616 = vpop.f32.mrf.mxu0
      %v2617 = vadd.f32 %v2602, %v2616
      %v2618 = vpop.f32.mrf.mxu0
      %2619 = vdwg.mxu0
      %v2620 = vmax.f32 %v2617, -256.0
      %v2621 = vmin.f32 %v2620, 256.0
      %v2622 = vadd.f32 %v2085, %v2621
      %v2623 = vld [vmem:[%s18] sm:$0xff]
      %v2624 = vld [vmem:[%s18 + $0x8] sm:$0xf]
      %v2625 = vld [vmem:[%s18 + $0xc] sm:$0xff]
      %v2626 = vld [vmem:[%s18 + $0x14] sm:$0xf]
      %v2627 = vld [vmem:[%s18 + $0x18] sm:$0xff]
      %v2628 = vld [vmem:[%s18 + $0x20] sm:$0xf]
      %v2629 = vld [vmem:[%s18 + $0x24] sm:$0xff]
      %v2630 = vld [vmem:[%s18 + $0x2c] sm:$0xf]
      %v2631 = vld [vmem:[%s18 + $0x30] sm:$0xff]
      %v2632 = vld [vmem:[%s18 + $0x38] sm:$0xf]
      %v2633 = vld [vmem:[%s18 + $0x3c] sm:$0xff]
      %v2634 = vld [vmem:[%s18 + $0x44] sm:$0xf]
      %v2635 = vld [vmem:[%s18 + $0x48] sm:$0xff]
      %v2636 = vld [vmem:[%s18 + $0x50] sm:$0xf]
      %v2637 = vld [vmem:[%s18 + $0x54] sm:$0xff]
      %v2638 = vld [vmem:[%s18 + $0x5c] sm:$0xf]
      %v2639 = vld [vmem:[%s18 + $0x60] sm:$0xff]
      %v2640 = vld [vmem:[%s18 + $0x68] sm:$0xf]
      %v2641 = vld [vmem:[%s18 + $0x6c] sm:$0xff]
      %v2642 = vld [vmem:[%s18 + $0x74] sm:$0xf]
      %v2643 = vld [vmem:[%s18 + $0x78] sm:$0xff]
      %v2644 = vld [vmem:[%s18 + $0x80] sm:$0xf]
      %v2645 = vld [vmem:[%s18 + $0x84] sm:$0xff]
      %v2646 = vld [vmem:[%s18 + $0x8c] sm:$0xf]
      %v2647 = vld [vmem:[%s18 + $0x90] sm:$0xff]
      %v2648 = vld [vmem:[%s18 + $0x98] sm:$0xf]
      %v2649 = vld [vmem:[%s18 + $0x9c] sm:$0xff]
      %v2650 = vld [vmem:[%s18 + $0xa4] sm:$0xf]
      %v2651 = vld [vmem:[%s18 + $0xa8] sm:$0xff]
      %v2652 = vld [vmem:[%s18 + $0xb0] sm:$0xf]
      %v2653 = vld [vmem:[%s18 + $0xb4] sm:$0xff]
      %v2654 = vld [vmem:[%s18 + $0xbc] sm:$0xf]
      %v2655 = vld [vmem:[%s20] ss:$2 sm:$0x3]
      %2657 = vset.pattern.permute.xlu0 0
      %2658 = vperm.xlu0 %2657, %v792
      %v2659 = vpop.permute.xlu0 %2658
      %2662 = vset.pattern.permute.xlu0 0
      %2663 = vperm.xlu0 %2662, %v793
      %v2664 = vpop.permute.xlu0 %2663
      %2667 = vset.pattern.permute.xlu0 0
      %2668 = vperm.xlu0 %2667, %v794
      %v2669 = vpop.permute.xlu0 %2668
      %2672 = vset.pattern.permute.xlu0 0
      %2673 = vperm.xlu0 %2672, %v795
      %v2674 = vpop.permute.xlu0 %2673
      %v2676 = vmul.f32 %v2567, %v2659
      %v2677 = vmul.f32 %v2568, %v2664
      %v2678 = vmul.f32 %v2569, %v2669
      %v2679 = vmul.f32 %v2570, %v2674
      %2684 = vrot.lane.b32.xlu0 %v2676, 9
      %v2685 = vpop.permute.xlu0 %2684
      %2686 = vrot.lane.b32.xlu0 %v2677, 9
      %v2687 = vpop.permute.xlu0 %2686
      %2688 = vrot.lane.b32.xlu0 %v2678, 9
      %v2689 = vpop.permute.xlu0 %2688
      %2690 = vrot.lane.b32.xlu0 %v2679, 9
      %v2691 = vpop.permute.xlu0 %2690
      %v2696 = vsel %vm2212, 0.0, %v2685
      %v2697 = vsel %vm2212, 0.0, %v2687
      %v2698 = vsel %vm2212, 0.0, %v2689
      %v2699 = vsel %vm2212, 0.0, %v2691
      %v2700 = vmul.f32 %v2696, %v2218
      %v2701 = vmul.f32 %v2697, %v2218
      %v2702 = vmul.f32 %v2698, %v2218
      %v2703 = vmul.f32 %v2699, %v2218
      %2704 = vrot.lane.b32.xlu0 %v2676, 8
      %v2705 = vpop.permute.xlu0 %2704
      %2706 = vrot.lane.b32.xlu0 %v2677, 8
      %v2707 = vpop.permute.xlu0 %2706
      %2708 = vrot.lane.b32.xlu0 %v2678, 8
      %v2709 = vpop.permute.xlu0 %2708
      %2710 = vrot.lane.b32.xlu0 %v2679, 8
      %v2711 = vpop.permute.xlu0 %2710
      %v2716 = vsel %vm2235, 0.0, %v2705
      %v2717 = vsel %vm2235, 0.0, %v2707
      %v2718 = vsel %vm2235, 0.0, %v2709
      %v2719 = vsel %vm2235, 0.0, %v2711
      %v2720 = vmul.f32 %v2716, %v2241
      %v2721 = vmul.f32 %v2717, %v2241
      %v2722 = vmul.f32 %v2718, %v2241
      %v2723 = vmul.f32 %v2719, %v2241
      %2724 = vrot.lane.b32.xlu0 %v2676, 7
      %v2725 = vpop.permute.xlu0 %2724
      %2726 = vrot.lane.b32.xlu0 %v2677, 7
      %v2727 = vpop.permute.xlu0 %2726
      %2728 = vrot.lane.b32.xlu0 %v2678, 7
      %v2729 = vpop.permute.xlu0 %2728
      %2730 = vrot.lane.b32.xlu0 %v2679, 7
      %v2731 = vpop.permute.xlu0 %2730
      %v2736 = vsel %vm2258, 0.0, %v2725
      %v2737 = vsel %vm2258, 0.0, %v2727
      %v2738 = vsel %vm2258, 0.0, %v2729
      %v2739 = vsel %vm2258, 0.0, %v2731
      %v2740 = vmul.f32 %v2736, %v2264
      %v2741 = vmul.f32 %v2737, %v2264
      %v2742 = vmul.f32 %v2738, %v2264
      %v2743 = vmul.f32 %v2739, %v2264
      %2744 = vrot.lane.b32.xlu0 %v2676, 1
      %v2745 = vpop.permute.xlu0 %2744
      %2746 = vrot.lane.b32.xlu0 %v2677, 1
      %v2747 = vpop.permute.xlu0 %2746
      %2748 = vrot.lane.b32.xlu0 %v2678, 1
      %v2749 = vpop.permute.xlu0 %2748
      %2750 = vrot.lane.b32.xlu0 %v2679, 1
      %v2751 = vpop.permute.xlu0 %2750
      %v2756 = vsel %vm966, 0.0, %v2745
      %v2757 = vsel %vm966, 0.0, %v2747
      %v2758 = vsel %vm966, 0.0, %v2749
      %v2759 = vsel %vm966, 0.0, %v2751
      %v2760 = vmul.f32 %v2756, %v2286
      %v2761 = vmul.f32 %v2757, %v2286
      %v2762 = vmul.f32 %v2758, %v2286
      %v2763 = vmul.f32 %v2759, %v2286
      %2764 = vrot.lane.b32.xlu0 %v2676, 127
      %v2765 = vpop.permute.xlu0 %2764
      %2766 = vrot.lane.b32.xlu0 %v2677, 127
      %v2767 = vpop.permute.xlu0 %2766
      %2768 = vrot.lane.b32.xlu0 %v2678, 127
      %v2769 = vpop.permute.xlu0 %2768
      %2770 = vrot.lane.b32.xlu0 %v2679, 127
      %v2771 = vpop.permute.xlu0 %2770
      %v2776 = vsel %vm2303, %v2765, 0.0
      %v2777 = vsel %vm2303, %v2767, 0.0
      %v2778 = vsel %vm2303, %v2769, 0.0
      %v2779 = vsel %vm2303, %v2771, 0.0
      %v2780 = vmul.f32 %v2776, %v2309
      %v2781 = vmul.f32 %v2777, %v2309
      %v2782 = vmul.f32 %v2778, %v2309
      %v2783 = vmul.f32 %v2779, %v2309
      %2784 = vrot.lane.b32.xlu0 %v2676, 121
      %v2785 = vpop.permute.xlu0 %2784
      %2786 = vrot.lane.b32.xlu0 %v2677, 121
      %v2787 = vpop.permute.xlu0 %2786
      %2788 = vrot.lane.b32.xlu0 %v2678, 121
      %v2789 = vpop.permute.xlu0 %2788
      %2790 = vrot.lane.b32.xlu0 %v2679, 121
      %v2791 = vpop.permute.xlu0 %2790
      %v2796 = vsel %vm2326, %v2785, 0.0
      %v2797 = vsel %vm2326, %v2787, 0.0
      %v2798 = vsel %vm2326, %v2789, 0.0
      %v2799 = vsel %vm2326, %v2791, 0.0
      %v2800 = vmul.f32 %v2796, %v2332
      %v2801 = vmul.f32 %v2797, %v2332
      %v2802 = vmul.f32 %v2798, %v2332
      %v2803 = vmul.f32 %v2799, %v2332
      %2804 = vrot.lane.b32.xlu0 %v2676, 120
      %v2805 = vpop.permute.xlu0 %2804
      %2806 = vrot.lane.b32.xlu0 %v2677, 120
      %v2807 = vpop.permute.xlu0 %2806
      %2808 = vrot.lane.b32.xlu0 %v2678, 120
      %v2809 = vpop.permute.xlu0 %2808
      %2810 = vrot.lane.b32.xlu0 %v2679, 120
      %v2811 = vpop.permute.xlu0 %2810
      %v2816 = vsel %vm2349, %v2805, 0.0
      %v2817 = vsel %vm2349, %v2807, 0.0
      %v2818 = vsel %vm2349, %v2809, 0.0
      %v2819 = vsel %vm2349, %v2811, 0.0
      %v2820 = vmul.f32 %v2816, %v2355
      %v2821 = vmul.f32 %v2817, %v2355
      %v2822 = vmul.f32 %v2818, %v2355
      %v2823 = vmul.f32 %v2819, %v2355
      %2824 = vrot.lane.b32.xlu0 %v2676, 119
      %v2825 = vpop.permute.xlu0 %2824
      %2826 = vrot.lane.b32.xlu0 %v2677, 119
      %v2827 = vpop.permute.xlu0 %2826
      %2828 = vrot.lane.b32.xlu0 %v2678, 119
      %v2829 = vpop.permute.xlu0 %2828
      %2830 = vrot.lane.b32.xlu0 %v2679, 119
      %v2831 = vpop.permute.xlu0 %2830
      %v2836 = vsel %vm2372, %v2825, 0.0
      %v2837 = vsel %vm2372, %v2827, 0.0
      %v2838 = vsel %vm2372, %v2829, 0.0
      %v2839 = vsel %vm2372, %v2831, 0.0
      %v2840 = vmul.f32 %v2836, %v2378
      %v2841 = vmul.f32 %v2837, %v2378
      %v2842 = vmul.f32 %v2838, %v2378
      %v2843 = vmul.f32 %v2839, %v2378
      %v2844 = vpack.c.bf16 %v2701, %v2700
      %v2845 = vpack.c.bf16 %v2703, %v2702
      %v2846 = vpack.c.bf16 %v2721, %v2720
      %v2847 = vpack.c.bf16 %v2723, %v2722
      %v2848 = vpack.c.bf16 %v2741, %v2740
      %v2849 = vpack.c.bf16 %v2743, %v2742
      %v2850 = vpack.c.bf16 %v2761, %v2760
      %v2851 = vpack.c.bf16 %v2763, %v2762
      %v2852 = vpack.c.bf16 %v2677, %v2676
      %v2853 = vpack.c.bf16 %v2679, %v2678
      %v2854 = vpack.c.bf16 %v2781, %v2780
      %v2855 = vpack.c.bf16 %v2783, %v2782
      %v2856 = vpack.c.bf16 %v2801, %v2800
      %v2857 = vpack.c.bf16 %v2803, %v2802
      %v2858 = vpack.c.bf16 %v2821, %v2820
      %v2859 = vpack.c.bf16 %v2823, %v2822
      %v2860 = vpack.c.bf16 %v2841, %v2840
      %v2861 = vpack.c.bf16 %v2843, %v2842
      %v2894 = vunpack.c.l.b16 %v2623
      %v2895 = vunpack.c.h.b16 %v2623
      %v2896 = vunpack.c.l.b16 %v2624
      %v2897 = vunpack.c.l.b16 %v2625
      %v2898 = vunpack.c.h.b16 %v2625
      %v2899 = vunpack.c.l.b16 %v2626
      %v2900 = vunpack.c.l.b16 %v2627
      %v2901 = vunpack.c.h.b16 %v2627
      %v2902 = vunpack.c.l.b16 %v2628
      %v2903 = vunpack.c.l.b16 %v2629
      %v2904 = vunpack.c.h.b16 %v2629
      %v2905 = vunpack.c.l.b16 %v2630
      %v2906 = vunpack.c.l.b16 %v2631
      %v2907 = vunpack.c.h.b16 %v2631
      %v2908 = vunpack.c.l.b16 %v2632
      %v2909 = vunpack.c.l.b16 %v2633
      %v2910 = vunpack.c.h.b16 %v2633
      %v2911 = vunpack.c.l.b16 %v2634
      %v2912 = vunpack.c.l.b16 %v2635
      %v2913 = vunpack.c.h.b16 %v2635
      %v2914 = vunpack.c.l.b16 %v2636
      %v2915 = vunpack.c.l.b16 %v2637
      %v2916 = vunpack.c.h.b16 %v2637
      %v2917 = vunpack.c.l.b16 %v2638
      %v2918 = vunpack.c.l.b16 %v2639
      %v2919 = vunpack.c.h.b16 %v2639
      %v2920 = vunpack.c.l.b16 %v2640
      %v2921 = vunpack.c.l.b16 %v2641
      %v2922 = vunpack.c.h.b16 %v2641
      %v2923 = vunpack.c.l.b16 %v2642
      %v2924 = vunpack.c.l.b16 %v2643
      %v2925 = vunpack.c.h.b16 %v2643
      %v2926 = vunpack.c.l.b16 %v2644
      %v2927 = vunpack.c.l.b16 %v2645
      %v2928 = vunpack.c.h.b16 %v2645
      %v2929 = vunpack.c.l.b16 %v2646
      %v2930 = vunpack.c.l.b16 %v2647
      %v2931 = vunpack.c.h.b16 %v2647
      %v2932 = vunpack.c.l.b16 %v2648
      %v2933 = vunpack.c.l.b16 %v2649
      %v2934 = vunpack.c.h.b16 %v2649
      %v2935 = vunpack.c.l.b16 %v2650
      %v2936 = vunpack.c.l.b16 %v2651
      %v2937 = vunpack.c.h.b16 %v2651
      %v2938 = vunpack.c.l.b16 %v2652
      %v2939 = vunpack.c.l.b16 %v2653
      %v2940 = vunpack.c.h.b16 %v2653
      %v2941 = vunpack.c.l.b16 %v2654
      %v2942 = vpack.c.b16 %v2897, %v2894
      %v2943 = vpack.c.b16 %v2898, %v2895
      %v2944 = vpack.c.b16 %v2899, %v2896
      %v2945 = vpack.c.b16 %v2903, %v2900
      %v2946 = vpack.c.b16 %v2904, %v2901
      %v2947 = vpack.c.b16 %v2905, %v2902
      %v2948 = vpack.c.b16 %v2909, %v2906
      %v2949 = vpack.c.b16 %v2910, %v2907
      %v2950 = vpack.c.b16 %v2911, %v2908
      %v2951 = vpack.c.b16 %v2915, %v2912
      %v2952 = vpack.c.b16 %v2916, %v2913
      %v2953 = vpack.c.b16 %v2917, %v2914
      %v2954 = vpack.c.b16 %v2921, %v2918
      %v2955 = vpack.c.b16 %v2922, %v2919
      %v2956 = vpack.c.b16 %v2923, %v2920
      %v2957 = vpack.c.b16 %v2927, %v2924
      %v2958 = vpack.c.b16 %v2928, %v2925
      %v2959 = vpack.c.b16 %v2929, %v2926
      %v2960 = vpack.c.b16 %v2933, %v2930
      %v2961 = vpack.c.b16 %v2934, %v2931
      %v2962 = vpack.c.b16 %v2935, %v2932
      %v2963 = vpack.c.b16 %v2939, %v2936
      %v2964 = vpack.c.b16 %v2940, %v2937
      %v2965 = vpack.c.b16 %v2941, %v2938
      %v2983 = vsel %vm1117, %v2944, 0
      %v2986 = vsel %vm1117, %v2947, 0
      %v2989 = vsel %vm1117, %v2950, 0
      %v2992 = vsel %vm1117, %v2953, 0
      %v2995 = vsel %vm1117, %v2956, 0
      %v2998 = vsel %vm1117, %v2959, 0
      %v3001 = vsel %vm1117, %v2962, 0
      %v3004 = vsel %vm1117, %v2965, 0
      %3006 = vmatpush.bf16.msra.mxu0 %v2851
      %3007 = vmatpush.bf16.msra.mxu0 %v2850
      %3008 = vmatpush.bf16.msra.mxu0 %v2849
      %3009 = vmatpush.bf16.msra.mxu0 %v2848
      %3010 = vmatpush.bf16.msra.mxu0 %v2847
      %3011 = vmatpush.bf16.msra.mxu0 %v2846
      %3012 = vmatpush.bf16.msra.mxu0 %v2845
      %3013 = vmatpush.bf16.msra.mxu0 %v2844
      %3014 = vmatmul.bf16.gmra.mxu0 %v2942
      %v3015 = vpop.f32.mrf.mxu0
      %v3016 = vadd.f32 0.0, %v3015
      %v3017 = vpop.f32.mrf.mxu0
      %v3018 = vadd.f32 0.0, %v3017
      %3019 = vmatmul.bf16.gmra.mxu0 %v2945
      %v3020 = vpop.f32.mrf.mxu0
      %v3021 = vadd.f32 0.0, %v3020
      %v3022 = vpop.f32.mrf.mxu0
      %v3023 = vadd.f32 0.0, %v3022
      %3024 = vmatmul.bf16.gmra.mxu0 %v2948
      %v3025 = vpop.f32.mrf.mxu0
      %v3026 = vadd.f32 0.0, %v3025
      %v3027 = vpop.f32.mrf.mxu0
      %v3028 = vadd.f32 0.0, %v3027
      %3029 = vmatmul.bf16.gmra.mxu0 %v2951
      %v3030 = vpop.f32.mrf.mxu0
      %v3031 = vadd.f32 0.0, %v3030
      %v3032 = vpop.f32.mrf.mxu0
      %v3033 = vadd.f32 0.0, %v3032
      %3034 = vmatmul.bf16.gmra.mxu0 %v2954
      %v3035 = vpop.f32.mrf.mxu0
      %v3036 = vadd.f32 0.0, %v3035
      %v3037 = vpop.f32.mrf.mxu0
      %v3038 = vadd.f32 0.0, %v3037
      %3039 = vmatmul.bf16.gmra.mxu0 %v2957
      %v3040 = vpop.f32.mrf.mxu0
      %v3041 = vadd.f32 0.0, %v3040
      %v3042 = vpop.f32.mrf.mxu0
      %v3043 = vadd.f32 0.0, %v3042
      %3044 = vmatmul.bf16.gmra.mxu0 %v2960
      %v3045 = vpop.f32.mrf.mxu0
      %v3046 = vadd.f32 0.0, %v3045
      %v3047 = vpop.f32.mrf.mxu0
      %v3048 = vadd.f32 0.0, %v3047
      %3049 = vmatmul.bf16.gmra.mxu0 %v2963
      %v3050 = vpop.f32.mrf.mxu0
      %v3051 = vadd.f32 0.0, %v3050
      %v3052 = vpop.f32.mrf.mxu0
      %v3053 = vadd.f32 0.0, %v3052
      %3054 = vdwg.mxu0
      %3055 = vmatpush.bf16.msra.mxu0 %v2859
      %3056 = vmatpush.bf16.msra.mxu0 %v2858
      %3057 = vmatpush.bf16.msra.mxu0 %v2857
      %3058 = vmatpush.bf16.msra.mxu0 %v2856
      %3059 = vmatpush.bf16.msra.mxu0 %v2855
      %3060 = vmatpush.bf16.msra.mxu0 %v2854
      %3061 = vmatpush.bf16.msra.mxu0 %v2853
      %3062 = vmatpush.bf16.msra.mxu0 %v2852
      %3063 = vmatmul.bf16.gmra.mxu0 %v2943
      %v3064 = vpop.f32.mrf.mxu0
      %v3065 = vadd.f32 %v3016, %v3064
      %v3066 = vpop.f32.mrf.mxu0
      %v3067 = vadd.f32 %v3018, %v3066
      %3068 = vmatmul.bf16.gmra.mxu0 %v2946
      %v3069 = vpop.f32.mrf.mxu0
      %v3070 = vadd.f32 %v3021, %v3069
      %v3071 = vpop.f32.mrf.mxu0
      %v3072 = vadd.f32 %v3023, %v3071
      %3073 = vmatmul.bf16.gmra.mxu0 %v2949
      %v3074 = vpop.f32.mrf.mxu0
      %v3075 = vadd.f32 %v3026, %v3074
      %v3076 = vpop.f32.mrf.mxu0
      %v3077 = vadd.f32 %v3028, %v3076
      %3078 = vmatmul.bf16.gmra.mxu0 %v2952
      %v3079 = vpop.f32.mrf.mxu0
      %v3080 = vadd.f32 %v3031, %v3079
      %v3081 = vpop.f32.mrf.mxu0
      %v3082 = vadd.f32 %v3033, %v3081
      %3083 = vmatmul.bf16.gmra.mxu0 %v2955
      %v3084 = vpop.f32.mrf.mxu0
      %v3085 = vadd.f32 %v3036, %v3084
      %v3086 = vpop.f32.mrf.mxu0
      %v3087 = vadd.f32 %v3038, %v3086
      %3088 = vmatmul.bf16.gmra.mxu0 %v2958
      %v3089 = vpop.f32.mrf.mxu0
      %v3090 = vadd.f32 %v3041, %v3089
      %v3091 = vpop.f32.mrf.mxu0
      %v3092 = vadd.f32 %v3043, %v3091
      %3093 = vmatmul.bf16.gmra.mxu0 %v2961
      %v3094 = vpop.f32.mrf.mxu0
      %v3095 = vadd.f32 %v3046, %v3094
      %v3096 = vpop.f32.mrf.mxu0
      %v3097 = vadd.f32 %v3048, %v3096
      %3098 = vmatmul.bf16.gmra.mxu0 %v2964
      %v3099 = vpop.f32.mrf.mxu0
      %v3100 = vadd.f32 %v3051, %v3099
      %v3101 = vpop.f32.mrf.mxu0
      %v3102 = vadd.f32 %v3053, %v3101
      %3103 = vdwg.mxu0
      %3104 = vmatpush.bf16.msra.mxu0 0
      %3105 = vmatpush.bf16.msra.mxu0 0
      %3106 = vmatpush.bf16.msra.mxu0 0
      %3107 = vmatpush.bf16.msra.mxu0 0
      %3108 = vmatpush.bf16.msra.mxu0 0
      %3109 = vmatpush.bf16.msra.mxu0 0
      %3110 = vmatpush.bf16.msra.mxu0 %v2861
      %3111 = vmatpush.bf16.msra.mxu0 %v2860
      %3112 = vmatmul.bf16.gmra.mxu0 %v2983
      %v3113 = vpop.f32.mrf.mxu0
      %v3114 = vadd.f32 %v3065, %v3113
      %v3115 = vpop.f32.mrf.mxu0
      %v3116 = vadd.f32 %v3067, %v3115
      %3117 = vmatmul.bf16.gmra.mxu0 %v2986
      %v3118 = vpop.f32.mrf.mxu0
      %v3119 = vadd.f32 %v3070, %v3118
      %v3120 = vpop.f32.mrf.mxu0
      %v3121 = vadd.f32 %v3072, %v3120
      %3122 = vmatmul.bf16.gmra.mxu0 %v2989
      %v3123 = vpop.f32.mrf.mxu0
      %v3124 = vadd.f32 %v3075, %v3123
      %v3125 = vpop.f32.mrf.mxu0
      %v3126 = vadd.f32 %v3077, %v3125
      %3127 = vmatmul.bf16.gmra.mxu0 %v2992
      %v3128 = vpop.f32.mrf.mxu0
      %v3129 = vadd.f32 %v3080, %v3128
      %v3130 = vpop.f32.mrf.mxu0
      %v3131 = vadd.f32 %v3082, %v3130
      %3132 = vmatmul.bf16.gmra.mxu0 %v2995
      %v3133 = vpop.f32.mrf.mxu0
      %v3134 = vadd.f32 %v3085, %v3133
      %v3135 = vpop.f32.mrf.mxu0
      %v3136 = vadd.f32 %v3087, %v3135
      %3137 = vmatmul.bf16.gmra.mxu0 %v2998
      %v3138 = vpop.f32.mrf.mxu0
      %v3139 = vadd.f32 %v3090, %v3138
      %v3140 = vpop.f32.mrf.mxu0
      %v3141 = vadd.f32 %v3092, %v3140
      %3142 = vmatmul.bf16.gmra.mxu0 %v3001
      %v3143 = vpop.f32.mrf.mxu0
      %v3144 = vadd.f32 %v3095, %v3143
      %v3145 = vpop.f32.mrf.mxu0
      %v3146 = vadd.f32 %v3097, %v3145
      %3147 = vmatmul.bf16.gmra.mxu0 %v3004
      %v3148 = vpop.f32.mrf.mxu0
      %v3149 = vadd.f32 %v3100, %v3148
      %v3150 = vpop.f32.mrf.mxu0
      %v3151 = vadd.f32 %v3102, %v3150
      %3152 = vdwg.mxu0
      %3154 = vrot.lane.b32.xlu0 %v2622, 9
      %v3155 = vpop.permute.xlu0 %3154
      %v3157 = vsel %vm2212, 0.0, %v3155
      %v3158 = vmul.f32 %v3157, %v2218
      %v3159 = vmul.f32 %v3158, 0.0625
      %3160 = vrot.lane.b32.xlu0 %v2622, 8
      %v3161 = vpop.permute.xlu0 %3160
      %v3163 = vsel %vm2235, 0.0, %v3161
      %v3164 = vmul.f32 %v3163, %v2241
      %v3165 = vmul.f32 %v3164, 0.1875
      %v3166 = vadd.f32 %v3159, %v3165
      %3167 = vrot.lane.b32.xlu0 %v2622, 1
      %v3168 = vpop.permute.xlu0 %3167
      %v3170 = vsel %vm966, 0.0, %v3168
      %v3171 = vmul.f32 %v3170, %v2286
      %v3172 = vmul.f32 %v3171, 0.1875
      %v3173 = vadd.f32 %v3166, %v3172
      %v3174 = vmul.f32 %v2622, 0.5625
      %v3175 = vadd.f32 %v3173, %v3174
      %3176 = vrot.lane.b32.xlu0 %v2622, 7
      %v3177 = vpop.permute.xlu0 %3176
      %v3179 = vsel %vm2258, 0.0, %v3177
      %v3180 = vmul.f32 %v3179, %v2264
      %v3181 = vmul.f32 %v3180, 0.0625
      %v3182 = vadd.f32 %v3165, %v3181
      %v3183 = vadd.f32 %v3182, %v3174
      %3184 = vrot.lane.b32.xlu0 %v2622, 127
      %v3185 = vpop.permute.xlu0 %3184
      %v3187 = vsel %vm2303, %v3185, 0.0
      %v3188 = vmul.f32 %v3187, %v2309
      %v3189 = vmul.f32 %v3188, 0.1875
      %v3190 = vadd.f32 %v3183, %v3189
      %v3191 = vadd.f32 %v3172, %v3174
      %3192 = vrot.lane.b32.xlu0 %v2622, 121
      %v3193 = vpop.permute.xlu0 %3192
      %v3195 = vsel %vm2326, %v3193, 0.0
      %v3196 = vmul.f32 %v3195, %v2332
      %v3197 = vmul.f32 %v3196, 0.0625
      %v3198 = vadd.f32 %v3191, %v3197
      %3199 = vrot.lane.b32.xlu0 %v2622, 120
      %v3200 = vpop.permute.xlu0 %3199
      %v3202 = vsel %vm2349, %v3200, 0.0
      %v3203 = vmul.f32 %v3202, %v2355
      %v3204 = vmul.f32 %v3203, 0.1875
      %v3205 = vadd.f32 %v3198, %v3204
      %v3206 = vadd.f32 %v3174, %v3189
      %v3207 = vadd.f32 %v3206, %v3204
      %3208 = vrot.lane.b32.xlu0 %v2622, 119
      %v3209 = vpop.permute.xlu0 %3208
      %v3211 = vsel %vm2372, %v3209, 0.0
      %v3212 = vmul.f32 %v3211, %v2378
      %v3213 = vmul.f32 %v3212, 0.0625
      %v3214 = vadd.f32 %v3207, %v3213
      %v3215 = vpack.c.bf16 %v3116, %v3114
      %v3216 = vpack.c.bf16 %v3121, %v3119
      %v3217 = vpack.c.bf16 %v3175, %v3175
      %v3218 = vld [vmem:[%s8] sm:$0xff]
      %v3219 = vld [vmem:[%s8 + $0x8] sm:$0xff]
      %v3220 = vld [vmem:[%s8 + $0x10] sm:$0xff]
      %v3221 = vld [vmem:[%s8 + $0x18] sm:$0xff]
      %v3222 = vld [vmem:[%s8 + $0x20] sm:$0xff]
      %v3223 = vld [vmem:[%s8 + $0x28] sm:$0xff]
      %v3224 = vld [vmem:[%s8 + $0x30] sm:$0xff]
      %v3225 = vld [vmem:[%s8 + $0x38] sm:$0xff]
      %v3226 = vpack.c.bf16 %v3126, %v3124
      %v3227 = vpack.c.bf16 %v3131, %v3129
      %v3228 = vpack.c.bf16 %v3190, %v3190
      %v3229 = vld [vmem:[%s8 + $0x40] sm:$0xff]
      %v3230 = vld [vmem:[%s8 + $0x48] sm:$0xff]
      %v3231 = vld [vmem:[%s8 + $0x50] sm:$0xff]
      %v3232 = vld [vmem:[%s8 + $0x58] sm:$0xff]
      %v3233 = vld [vmem:[%s8 + $0x60] sm:$0xff]
      %v3234 = vld [vmem:[%s8 + $0x68] sm:$0xff]
      %v3235 = vld [vmem:[%s8 + $0x70] sm:$0xff]
      %v3236 = vld [vmem:[%s8 + $0x78] sm:$0xff]
      %v3245 = vunpack.c.l.b16 %v3229
      %v3246 = vunpack.c.h.b16 %v3229
      %v3247 = vunpack.c.l.b16 %v3230
      %v3248 = vunpack.c.h.b16 %v3230
      %v3249 = vunpack.c.l.b16 %v3231
      %v3250 = vunpack.c.h.b16 %v3231
      %v3251 = vunpack.c.l.b16 %v3232
      %v3252 = vunpack.c.h.b16 %v3232
      %v3253 = vunpack.c.l.b16 %v3233
      %v3254 = vunpack.c.h.b16 %v3233
      %v3255 = vunpack.c.l.b16 %v3234
      %v3256 = vunpack.c.h.b16 %v3234
      %v3257 = vunpack.c.l.b16 %v3235
      %v3258 = vunpack.c.h.b16 %v3235
      %v3259 = vunpack.c.l.b16 %v3236
      %v3260 = vunpack.c.h.b16 %v3236
      %v3261 = vpack.c.b16 %v3247, %v3245
      %v3262 = vpack.c.b16 %v3248, %v3246
      %v3263 = vpack.c.b16 %v3251, %v3249
      %v3264 = vpack.c.b16 %v3252, %v3250
      %v3265 = vpack.c.b16 %v3255, %v3253
      %v3266 = vpack.c.b16 %v3256, %v3254
      %v3267 = vpack.c.b16 %v3259, %v3257
      %v3268 = vpack.c.b16 %v3260, %v3258
      %vm3277 = vcmask 523264
      %v3279 = vsel %vm3277, %v3226, 0
      %v3282 = vsel %vm3277, %v3227, 0
      %v3285 = vsel %vm3277, %v3228, 0
      %3287 = vmatpush.bf16.msra.mxu0 0
      %3288 = vmatpush.bf16.msra.mxu0 0
      %3289 = vmatpush.bf16.msra.mxu0 0
      %3290 = vmatpush.bf16.msra.mxu0 0
      %3291 = vmatpush.bf16.msra.mxu0 %v3267
      %3292 = vmatpush.bf16.msra.mxu0 %v3265
      %3293 = vmatpush.bf16.msra.mxu0 %v3263
      %3294 = vmatpush.bf16.msra.mxu0 %v3261
      %3295 = vmatmul.bf16.gmra.mxu0 %v3279
      %v3296 = vpop.f32.mrf.mxu0
      %v3297 = vadd.f32 0.0, %v3296
      %v3298 = vpop.f32.mrf.mxu0
      %v3299 = vadd.f32 0.0, %v3298
      %3300 = vmatmul.bf16.gmra.mxu0 %v3282
      %v3301 = vpop.f32.mrf.mxu0
      %v3302 = vadd.f32 0.0, %v3301
      %v3303 = vpop.f32.mrf.mxu0
      %v3304 = vadd.f32 0.0, %v3303
      %3305 = vmatmul.bf16.gmra.mxu0 %v3285
      %v3306 = vpop.f32.mrf.mxu0
      %v3307 = vadd.f32 0.0, %v3306
      %v3308 = vpop.f32.mrf.mxu0
      %3309 = vdwg.mxu0
      %3310 = vmatpush.bf16.msra.mxu0 0
      %3311 = vmatpush.bf16.msra.mxu0 0
      %3312 = vmatpush.bf16.msra.mxu0 0
      %3313 = vmatpush.bf16.msra.mxu0 0
      %3314 = vmatpush.bf16.msra.mxu0 %v3268
      %3315 = vmatpush.bf16.msra.mxu0 %v3266
      %3316 = vmatpush.bf16.msra.mxu0 %v3264
      %3317 = vmatpush.bf16.msra.mxu0 %v3262
      %3318 = vmatmul.bf16.gmra.mxu0 %v3279
      %v3319 = vpop.f32.mrf.mxu0
      %v3320 = vadd.f32 0.0, %v3319
      %v3321 = vpop.f32.mrf.mxu0
      %v3322 = vadd.f32 0.0, %v3321
      %3323 = vmatmul.bf16.gmra.mxu0 %v3282
      %v3324 = vpop.f32.mrf.mxu0
      %v3325 = vadd.f32 0.0, %v3324
      %v3326 = vpop.f32.mrf.mxu0
      %v3327 = vadd.f32 0.0, %v3326
      %3328 = vmatmul.bf16.gmra.mxu0 %v3285
      %v3329 = vpop.f32.mrf.mxu0
      %v3330 = vadd.f32 0.0, %v3329
      %v3331 = vpop.f32.mrf.mxu0
      %3332 = vdwg.mxu0
      %v3341 = vunpack.c.l.b16 %v3218
      %v3342 = vunpack.c.h.b16 %v3218
      %v3343 = vunpack.c.l.b16 %v3219
      %v3344 = vunpack.c.h.b16 %v3219
      %v3345 = vunpack.c.l.b16 %v3220
      %v3346 = vunpack.c.h.b16 %v3220
      %v3347 = vunpack.c.l.b16 %v3221
      %v3348 = vunpack.c.h.b16 %v3221
      %v3349 = vunpack.c.l.b16 %v3222
      %v3350 = vunpack.c.h.b16 %v3222
      %v3351 = vunpack.c.l.b16 %v3223
      %v3352 = vunpack.c.h.b16 %v3223
      %v3353 = vunpack.c.l.b16 %v3224
      %v3354 = vunpack.c.h.b16 %v3224
      %v3355 = vunpack.c.l.b16 %v3225
      %v3356 = vunpack.c.h.b16 %v3225
      %v3357 = vpack.c.b16 %v3343, %v3341
      %v3358 = vpack.c.b16 %v3344, %v3342
      %v3359 = vpack.c.b16 %v3347, %v3345
      %v3360 = vpack.c.b16 %v3348, %v3346
      %v3361 = vpack.c.b16 %v3351, %v3349
      %v3362 = vpack.c.b16 %v3352, %v3350
      %v3363 = vpack.c.b16 %v3355, %v3353
      %v3364 = vpack.c.b16 %v3356, %v3354
      %v3374 = vsel %vm3277, %v3215, 0
      %v3377 = vsel %vm3277, %v3216, 0
      %v3380 = vsel %vm3277, %v3217, 0
      %3382 = vmatpush.bf16.msra.mxu0 0
      %3383 = vmatpush.bf16.msra.mxu0 0
      %3384 = vmatpush.bf16.msra.mxu0 0
      %3385 = vmatpush.bf16.msra.mxu0 0
      %3386 = vmatpush.bf16.msra.mxu0 %v3363
      %3387 = vmatpush.bf16.msra.mxu0 %v3361
      %3388 = vmatpush.bf16.msra.mxu0 %v3359
      %3389 = vmatpush.bf16.msra.mxu0 %v3357
      %3390 = vmatmul.bf16.gmra.mxu0 %v3374
      %v3391 = vpop.f32.mrf.mxu0
      %v3392 = vadd.f32 %v3297, %v3391
      %v3393 = vpop.f32.mrf.mxu0
      %v3394 = vadd.f32 %v3299, %v3393
      %3395 = vmatmul.bf16.gmra.mxu0 %v3377
      %v3396 = vpop.f32.mrf.mxu0
      %v3397 = vadd.f32 %v3302, %v3396
      %v3398 = vpop.f32.mrf.mxu0
      %v3399 = vadd.f32 %v3304, %v3398
      %3400 = vmatmul.bf16.gmra.mxu0 %v3380
      %v3401 = vpop.f32.mrf.mxu0
      %v3402 = vadd.f32 %v3307, %v3401
      %v3403 = vpop.f32.mrf.mxu0
      %3404 = vdwg.mxu0
      %3405 = vmatpush.bf16.msra.mxu0 0
      %3406 = vmatpush.bf16.msra.mxu0 0
      %3407 = vmatpush.bf16.msra.mxu0 0
      %3408 = vmatpush.bf16.msra.mxu0 0
      %3409 = vmatpush.bf16.msra.mxu0 %v3364
      %3410 = vmatpush.bf16.msra.mxu0 %v3362
      %3411 = vmatpush.bf16.msra.mxu0 %v3360
      %3412 = vmatpush.bf16.msra.mxu0 %v3358
      %3413 = vmatmul.bf16.gmra.mxu0 %v3374
      %v3414 = vpop.f32.mrf.mxu0
      %v3415 = vadd.f32 %v3320, %v3414
      %v3416 = vpop.f32.mrf.mxu0
      %v3417 = vadd.f32 %v3322, %v3416
      %3418 = vmatmul.bf16.gmra.mxu0 %v3377
      %v3419 = vpop.f32.mrf.mxu0
      %v3420 = vadd.f32 %v3325, %v3419
      %v3421 = vpop.f32.mrf.mxu0
      %v3422 = vadd.f32 %v3327, %v3421
      %3423 = vmatmul.bf16.gmra.mxu0 %v3380
      %v3424 = vpop.f32.mrf.mxu0
      %v3425 = vadd.f32 %v3330, %v3424
      %v3426 = vpop.f32.mrf.mxu0
      %3427 = vdwg.mxu0
      %v3428 = vpack.c.bf16 %v3136, %v3134
      %v3429 = vpack.c.bf16 %v3141, %v3139
      %v3430 = vpack.c.bf16 %v3205, %v3205
      %v3431 = vld [vmem:[%s8 + $0x80] sm:$0xff]
      %v3432 = vld [vmem:[%s8 + $0x88] sm:$0xff]
      %v3433 = vld [vmem:[%s8 + $0x90] sm:$0xff]
      %v3434 = vld [vmem:[%s8 + $0x98] sm:$0xff]
      %v3435 = vld [vmem:[%s8 + $0xa0] sm:$0xff]
      %v3436 = vld [vmem:[%s8 + $0xa8] sm:$0xff]
      %v3437 = vld [vmem:[%s8 + $0xb0] sm:$0xff]
      %v3438 = vld [vmem:[%s8 + $0xb8] sm:$0xff]
      %v3447 = vunpack.c.l.b16 %v3431
      %v3448 = vunpack.c.h.b16 %v3431
      %v3449 = vunpack.c.l.b16 %v3432
      %v3450 = vunpack.c.h.b16 %v3432
      %v3451 = vunpack.c.l.b16 %v3433
      %v3452 = vunpack.c.h.b16 %v3433
      %v3453 = vunpack.c.l.b16 %v3434
      %v3454 = vunpack.c.h.b16 %v3434
      %v3455 = vunpack.c.l.b16 %v3435
      %v3456 = vunpack.c.h.b16 %v3435
      %v3457 = vunpack.c.l.b16 %v3436
      %v3458 = vunpack.c.h.b16 %v3436
      %v3459 = vunpack.c.l.b16 %v3437
      %v3460 = vunpack.c.h.b16 %v3437
      %v3461 = vunpack.c.l.b16 %v3438
      %v3462 = vunpack.c.h.b16 %v3438
      %v3463 = vpack.c.b16 %v3449, %v3447
      %v3464 = vpack.c.b16 %v3450, %v3448
      %v3465 = vpack.c.b16 %v3453, %v3451
      %v3466 = vpack.c.b16 %v3454, %v3452
      %v3467 = vpack.c.b16 %v3457, %v3455
      %v3468 = vpack.c.b16 %v3458, %v3456
      %v3469 = vpack.c.b16 %v3461, %v3459
      %v3470 = vpack.c.b16 %v3462, %v3460
      %v3480 = vsel %vm3277, %v3428, 0
      %v3483 = vsel %vm3277, %v3429, 0
      %v3486 = vsel %vm3277, %v3430, 0
      %3488 = vmatpush.bf16.msra.mxu0 0
      %3489 = vmatpush.bf16.msra.mxu0 0
      %3490 = vmatpush.bf16.msra.mxu0 0
      %3491 = vmatpush.bf16.msra.mxu0 0
      %3492 = vmatpush.bf16.msra.mxu0 %v3469
      %3493 = vmatpush.bf16.msra.mxu0 %v3467
      %3494 = vmatpush.bf16.msra.mxu0 %v3465
      %3495 = vmatpush.bf16.msra.mxu0 %v3463
      %3496 = vmatmul.bf16.gmra.mxu0 %v3480
      %v3497 = vpop.f32.mrf.mxu0
      %v3498 = vadd.f32 0.0, %v3497
      %v3499 = vpop.f32.mrf.mxu0
      %v3500 = vadd.f32 0.0, %v3499
      %3501 = vmatmul.bf16.gmra.mxu0 %v3483
      %v3502 = vpop.f32.mrf.mxu0
      %v3503 = vadd.f32 0.0, %v3502
      %v3504 = vpop.f32.mrf.mxu0
      %v3505 = vadd.f32 0.0, %v3504
      %3506 = vmatmul.bf16.gmra.mxu0 %v3486
      %v3507 = vpop.f32.mrf.mxu0
      %v3508 = vadd.f32 0.0, %v3507
      %v3509 = vpop.f32.mrf.mxu0
      %3510 = vdwg.mxu0
      %3511 = vmatpush.bf16.msra.mxu0 0
      %3512 = vmatpush.bf16.msra.mxu0 0
      %3513 = vmatpush.bf16.msra.mxu0 0
      %3514 = vmatpush.bf16.msra.mxu0 0
      %3515 = vmatpush.bf16.msra.mxu0 %v3470
      %3516 = vmatpush.bf16.msra.mxu0 %v3468
      %3517 = vmatpush.bf16.msra.mxu0 %v3466
      %3518 = vmatpush.bf16.msra.mxu0 %v3464
      %3519 = vmatmul.bf16.gmra.mxu0 %v3480
      %v3520 = vpop.f32.mrf.mxu0
      %v3521 = vadd.f32 0.0, %v3520
      %v3522 = vpop.f32.mrf.mxu0
      %v3523 = vadd.f32 0.0, %v3522
      %3524 = vmatmul.bf16.gmra.mxu0 %v3483
      %v3525 = vpop.f32.mrf.mxu0
      %v3526 = vadd.f32 0.0, %v3525
      %v3527 = vpop.f32.mrf.mxu0
      %v3528 = vadd.f32 0.0, %v3527
      %3529 = vmatmul.bf16.gmra.mxu0 %v3486
      %v3530 = vpop.f32.mrf.mxu0
      %v3531 = vadd.f32 0.0, %v3530
      %v3532 = vpop.f32.mrf.mxu0
      %3533 = vdwg.mxu0
      %v3534 = vadd.f32 %v3392, %v3498
      %v3535 = vadd.f32 %v3415, %v3521
      %v3536 = vadd.f32 %v3394, %v3500
      %v3537 = vadd.f32 %v3417, %v3523
      %v3538 = vadd.f32 %v3397, %v3503
      %v3539 = vadd.f32 %v3420, %v3526
      %v3540 = vadd.f32 %v3399, %v3505
      %v3541 = vadd.f32 %v3422, %v3528
      %v3542 = vadd.f32 %v3402, %v3508
      %v3543 = vadd.f32 %v3425, %v3531
      %v3544 = vpack.c.bf16 %v3146, %v3144
      %v3545 = vpack.c.bf16 %v3151, %v3149
      %v3546 = vpack.c.bf16 %v3214, %v3214
      %v3547 = vld [vmem:[%s8 + $0xc0] sm:$0xff]
      %v3548 = vld [vmem:[%s8 + $0xc8] sm:$0xff]
      %v3549 = vld [vmem:[%s8 + $0xd0] sm:$0xff]
      %v3550 = vld [vmem:[%s8 + $0xd8] sm:$0xff]
      %v3551 = vld [vmem:[%s8 + $0xe0] sm:$0xff]
      %v3552 = vld [vmem:[%s8 + $0xe8] sm:$0xff]
      %v3553 = vld [vmem:[%s8 + $0xf0] sm:$0xff]
      %v3554 = vld [vmem:[%s8 + $0xf8] sm:$0xff]
      %v3563 = vunpack.c.l.b16 %v3547
      %v3564 = vunpack.c.h.b16 %v3547
      %v3565 = vunpack.c.l.b16 %v3548
      %v3566 = vunpack.c.h.b16 %v3548
      %v3567 = vunpack.c.l.b16 %v3549
      %v3568 = vunpack.c.h.b16 %v3549
      %v3569 = vunpack.c.l.b16 %v3550
      %v3570 = vunpack.c.h.b16 %v3550
      %v3571 = vunpack.c.l.b16 %v3551
      %v3572 = vunpack.c.h.b16 %v3551
      %v3573 = vunpack.c.l.b16 %v3552
      %v3574 = vunpack.c.h.b16 %v3552
      %v3575 = vunpack.c.l.b16 %v3553
      %v3576 = vunpack.c.h.b16 %v3553
      %v3577 = vunpack.c.l.b16 %v3554
      %v3578 = vunpack.c.h.b16 %v3554
      %v3579 = vpack.c.b16 %v3565, %v3563
      %v3580 = vpack.c.b16 %v3566, %v3564
      %v3581 = vpack.c.b16 %v3569, %v3567
      %v3582 = vpack.c.b16 %v3570, %v3568
      %v3583 = vpack.c.b16 %v3573, %v3571
      %v3584 = vpack.c.b16 %v3574, %v3572
      %v3585 = vpack.c.b16 %v3577, %v3575
      %v3586 = vpack.c.b16 %v3578, %v3576
      %v3596 = vsel %vm3277, %v3544, 0
      %v3599 = vsel %vm3277, %v3545, 0
      %v3602 = vsel %vm3277, %v3546, 0
      %3604 = vmatpush.bf16.msra.mxu0 0
      %3605 = vmatpush.bf16.msra.mxu0 0
      %3606 = vmatpush.bf16.msra.mxu0 0
      %3607 = vmatpush.bf16.msra.mxu0 0
      %3608 = vmatpush.bf16.msra.mxu0 %v3585
      %3609 = vmatpush.bf16.msra.mxu0 %v3583
      %3610 = vmatpush.bf16.msra.mxu0 %v3581
      %3611 = vmatpush.bf16.msra.mxu0 %v3579
      %3612 = vmatmul.bf16.gmra.mxu0 %v3596
      %v3613 = vpop.f32.mrf.mxu0
      %v3614 = vadd.f32 0.0, %v3613
      %v3615 = vpop.f32.mrf.mxu0
      %v3616 = vadd.f32 0.0, %v3615
      %3617 = vmatmul.bf16.gmra.mxu0 %v3599
      %v3618 = vpop.f32.mrf.mxu0
      %v3619 = vadd.f32 0.0, %v3618
      %v3620 = vpop.f32.mrf.mxu0
      %v3621 = vadd.f32 0.0, %v3620
      %3622 = vmatmul.bf16.gmra.mxu0 %v3602
      %v3623 = vpop.f32.mrf.mxu0
      %v3624 = vadd.f32 0.0, %v3623
      %v3625 = vpop.f32.mrf.mxu0
      %3626 = vdwg.mxu0
      %3627 = vmatpush.bf16.msra.mxu0 0
      %3628 = vmatpush.bf16.msra.mxu0 0
      %3629 = vmatpush.bf16.msra.mxu0 0
      %3630 = vmatpush.bf16.msra.mxu0 0
      %3631 = vmatpush.bf16.msra.mxu0 %v3586
      %3632 = vmatpush.bf16.msra.mxu0 %v3584
      %3633 = vmatpush.bf16.msra.mxu0 %v3582
      %3634 = vmatpush.bf16.msra.mxu0 %v3580
      %3635 = vmatmul.bf16.gmra.mxu0 %v3596
      %v3636 = vpop.f32.mrf.mxu0
      %v3637 = vadd.f32 0.0, %v3636
      %v3638 = vpop.f32.mrf.mxu0
      %v3639 = vadd.f32 0.0, %v3638
      %3640 = vmatmul.bf16.gmra.mxu0 %v3599
      %v3641 = vpop.f32.mrf.mxu0
      %v3642 = vadd.f32 0.0, %v3641
      %v3643 = vpop.f32.mrf.mxu0
      %v3644 = vadd.f32 0.0, %v3643
      %3645 = vmatmul.bf16.gmra.mxu0 %v3602
      %v3646 = vpop.f32.mrf.mxu0
      %v3647 = vadd.f32 0.0, %v3646
      %v3648 = vpop.f32.mrf.mxu0
      %3649 = vdwg.mxu0
      %v3650 = vadd.f32 %v3534, %v3614
      %v3651 = vadd.f32 %v3535, %v3637
      %v3652 = vadd.f32 %v3536, %v3616
      %v3653 = vadd.f32 %v3537, %v3639
      %v3654 = vadd.f32 %v3538, %v3619
      %v3655 = vadd.f32 %v3539, %v3642
      %v3656 = vadd.f32 %v3540, %v3621
      %v3657 = vadd.f32 %v3541, %v3644
      %v3658 = vadd.f32 %v3542, %v3624
      %v3659 = vadd.f32 %v3543, %v3647
      %3661 = vset.pattern.permute.xlu0 0
      %3662 = vperm.xlu0 %3661, %v816
      %v3663 = vpop.permute.xlu0 %3662
      %3666 = vset.pattern.permute.xlu0 0
      %3667 = vperm.xlu0 %3666, %v817
      %v3668 = vpop.permute.xlu0 %3667
      %3671 = vset.pattern.permute.xlu0 0
      %3672 = vperm.xlu0 %3671, %v818
      %v3673 = vpop.permute.xlu0 %3672
      %3676 = vset.pattern.permute.xlu0 0
      %3677 = vperm.xlu0 %3676, %v819
      %v3678 = vpop.permute.xlu0 %3677
      %v3680 = vmul.f32 %v3650, %v3663
      %v3681 = vmul.f32 %v3651, %v3663
      %v3682 = vmul.f32 %v3652, %v3668
      %v3683 = vmul.f32 %v3653, %v3668
      %v3684 = vmul.f32 %v3654, %v3673
      %v3685 = vmul.f32 %v3655, %v3673
      %v3686 = vmul.f32 %v3656, %v3678
      %v3687 = vmul.f32 %v3657, %v3678
      %v3689 = vperm.slane %v2655, 0
      %v3690 = vperm.slane %v2655, 1
      %v3693 = vadd.f32 %v3680, %v3689
      %v3694 = vadd.f32 %v3681, %v3690
      %v3695 = vadd.f32 %v3682, %v3689
      %v3696 = vadd.f32 %v3683, %v3690
      %v3697 = vadd.f32 %v3684, %v3689
      %v3698 = vadd.f32 %v3685, %v3690
      %v3699 = vadd.f32 %v3686, %v3689
      %v3700 = vadd.f32 %v3687, %v3690
      %3702 = vset.pattern.permute.xlu0 0
      %3703 = vperm.xlu0 %3702, %v836
      %v3704 = vpop.permute.xlu0 %3703
      %3707 = vset.pattern.permute.xlu0 0
      %3708 = vperm.xlu0 %3707, %v837
      %v3709 = vpop.permute.xlu0 %3708
      %3712 = vset.pattern.permute.xlu0 0
      %3713 = vperm.xlu0 %3712, %v838
      %v3714 = vpop.permute.xlu0 %3713
      %3717 = vset.pattern.permute.xlu0 0
      %3718 = vperm.xlu0 %3717, %v839
      %v3719 = vpop.permute.xlu0 %3718
      %v3721 = vadd.f32 %v3693, %v3704
      %v3722 = vadd.f32 %v3694, %v3704
      %v3723 = vadd.f32 %v3695, %v3709
      %v3724 = vadd.f32 %v3696, %v3709
      %v3725 = vadd.f32 %v3697, %v3714
      %v3726 = vadd.f32 %v3698, %v3714
      %v3727 = vadd.f32 %v3699, %v3719
      %v3728 = vadd.f32 %v3700, %v3719
      %vm3729 = vcmp.lt.f32.partialorder %v3721, 0.0
      %vm3730 = vcmp.lt.f32.partialorder %v3722, 0.0
      %vm3731 = vcmp.lt.f32.partialorder %v3723, 0.0
      %vm3732 = vcmp.lt.f32.partialorder %v3724, 0.0
      %vm3733 = vcmp.lt.f32.partialorder %v3725, 0.0
      %vm3734 = vcmp.lt.f32.partialorder %v3726, 0.0
      %vm3735 = vcmp.lt.f32.partialorder %v3727, 0.0
      %vm3736 = vcmp.lt.f32.partialorder %v3728, 0.0
      %v3737 = vmul.f32 %v3721, 0.2
      %v3738 = vmul.f32 %v3722, 0.2
      %v3739 = vmul.f32 %v3723, 0.2
      %v3740 = vmul.f32 %v3724, 0.2
      %v3741 = vmul.f32 %v3725, 0.2
      %v3742 = vmul.f32 %v3726, 0.2
      %v3743 = vmul.f32 %v3727, 0.2
      %v3744 = vmul.f32 %v3728, 0.2
      %v3745 = vsel %vm3729, %v3737, %v3721
      %v3746 = vsel %vm3730, %v3738, %v3722
      %v3747 = vsel %vm3731, %v3739, %v3723
      %v3748 = vsel %vm3732, %v3740, %v3724
      %v3749 = vsel %vm3733, %v3741, %v3725
      %v3750 = vsel %vm3734, %v3742, %v3726
      %v3751 = vsel %vm3735, %v3743, %v3727
      %v3752 = vsel %vm3736, %v3744, %v3728
      %v3753 = vmul.f32 %v3745, 1.4142135
      %v3754 = vmul.f32 %v3746, 1.4142135
      %v3755 = vmul.f32 %v3747, 1.4142135
      %v3756 = vmul.f32 %v3748, 1.4142135
      %v3757 = vmul.f32 %v3749, 1.4142135
      %v3758 = vmul.f32 %v3750, 1.4142135
      %v3759 = vmul.f32 %v3751, 1.4142135
      %v3760 = vmul.f32 %v3752, 1.4142135
      %v3761 = vmax.f32 %v3753, -256.0
      %v3762 = vmax.f32 %v3754, -256.0
      %v3763 = vmax.f32 %v3755, -256.0
      %v3764 = vmax.f32 %v3756, -256.0
      %v3765 = vmax.f32 %v3757, -256.0
      %v3766 = vmax.f32 %v3758, -256.0
      %v3767 = vmax.f32 %v3759, -256.0
      %v3768 = vmax.f32 %v3760, -256.0
      %v3769 = vmin.f32 %v3761, 256.0
      %v3770 = vmin.f32 %v3762, 256.0
      %v3771 = vmin.f32 %v3763, 256.0
      %v3772 = vmin.f32 %v3764, 256.0
      %v3773 = vmin.f32 %v3765, 256.0
      %v3774 = vmin.f32 %v3766, 256.0
      %v3775 = vmin.f32 %v3767, 256.0
      %v3776 = vmin.f32 %v3768, 256.0
      %s3777 = scalar_lea.vmem %s20, 1
      %v3778 = vld [vmem:[%s3777] ss:$2 sm:$0x3]
      %v3779 = vld [vmem:[%s19] sm:$0xff]
      %v3780 = vld [vmem:[%s19 + $0x8] sm:$0xf]
      %v3781 = vld [vmem:[%s19 + $0xc] sm:$0xff]
      %v3782 = vld [vmem:[%s19 + $0x14] sm:$0xf]
      %v3783 = vld [vmem:[%s19 + $0x18] sm:$0xff]
      %v3784 = vld [vmem:[%s19 + $0x20] sm:$0xf]
      %v3785 = vld [vmem:[%s19 + $0x24] sm:$0xff]
      %v3786 = vld [vmem:[%s19 + $0x2c] sm:$0xf]
      %3788 = vset.pattern.permute.xlu0 0
      %3789 = vperm.xlu0 %3788, %v796
      %v3790 = vpop.permute.xlu0 %3789
      %3793 = vset.pattern.permute.xlu0 0
      %3794 = vperm.xlu0 %3793, %v797
      %v3795 = vpop.permute.xlu0 %3794
      %3798 = vset.pattern.permute.xlu0 0
      %3799 = vperm.xlu0 %3798, %v798
      %v3800 = vpop.permute.xlu0 %3799
      %3803 = vset.pattern.permute.xlu0 0
      %3804 = vperm.xlu0 %3803, %v799
      %v3805 = vpop.permute.xlu0 %3804
      %v3807 = vmul.f32 %v3769, %v3790
      %v3808 = vmul.f32 %v3770, %v3790
      %v3809 = vmul.f32 %v3771, %v3795
      %v3810 = vmul.f32 %v3772, %v3795
      %v3811 = vmul.f32 %v3773, %v3800
      %v3812 = vmul.f32 %v3774, %v3800
      %v3813 = vmul.f32 %v3775, %v3805
      %v3814 = vmul.f32 %v3776, %v3805
      %3823 = vrot.lane.b32.xlu0 %v3807, 17
      %v3824 = vpop.permute.xlu0 %3823
      %3825 = vrot.lane.b32.xlu0 %v3808, 17
      %v3826 = vpop.permute.xlu0 %3825
      %3827 = vrot.lane.b32.xlu0 %v3809, 17
      %v3828 = vpop.permute.xlu0 %3827
      %3829 = vrot.lane.b32.xlu0 %v3810, 17
      %v3830 = vpop.permute.xlu0 %3829
      %3831 = vrot.lane.b32.xlu0 %v3811, 17
      %v3832 = vpop.permute.xlu0 %3831
      %3833 = vrot.lane.b32.xlu0 %v3812, 17
      %v3834 = vpop.permute.xlu0 %3833
      %3835 = vrot.lane.b32.xlu0 %v3813, 17
      %v3836 = vpop.permute.xlu0 %3835
      %3837 = vrot.lane.b32.xlu0 %v3814, 17
      %v3838 = vpop.permute.xlu0 %3837
      %vm3839 = vcmask 138240
      %v3840 = vsel %vm3839, %v3824, %v3826
      %v3841 = vsel %vm3839, %v3828, %v3830
      %v3842 = vsel %vm3839, %v3832, %v3834
      %v3843 = vsel %vm3839, %v3836, %v3838
      %v3852 = vsel %vm3839, 0.0, %v3824
      %v3853 = vsel %vm3839, 0.0, %v3828
      %v3854 = vsel %vm3839, 0.0, %v3832
      %v3855 = vsel %vm3839, 0.0, %v3836
      %v3856 = vld [vmem:[%s6] ss:$8 sm:$0x3]
      %v3858 = vperm.slane %v3856, 0
      %v3859 = vperm.slane %v3856, 1
      %v3862 = vmul.f32 %v3852, %v3858
      %v3863 = vmul.f32 %v3840, %v3859
      %v3864 = vmul.f32 %v3853, %v3858
      %v3865 = vmul.f32 %v3841, %v3859
      %v3866 = vmul.f32 %v3854, %v3858
      %v3867 = vmul.f32 %v3842, %v3859
      %v3868 = vmul.f32 %v3855, %v3858
      %v3869 = vmul.f32 %v3843, %v3859
      %3870 = vrot.lane.b32.xlu0 %v3807, 16
      %v3871 = vpop.permute.xlu0 %3870
      %3872 = vrot.lane.b32.xlu0 %v3808, 16
      %v3873 = vpop.permute.xlu0 %3872
      %3874 = vrot.lane.b32.xlu0 %v3809, 16
      %v3875 = vpop.permute.xlu0 %3874
      %3876 = vrot.lane.b32.xlu0 %v3810, 16
      %v3877 = vpop.permute.xlu0 %3876
      %3878 = vrot.lane.b32.xlu0 %v3811, 16
      %v3879 = vpop.permute.xlu0 %3878
      %3880 = vrot.lane.b32.xlu0 %v3812, 16
      %v3881 = vpop.permute.xlu0 %3880
      %3882 = vrot.lane.b32.xlu0 %v3813, 16
      %v3883 = vpop.permute.xlu0 %3882
      %3884 = vrot.lane.b32.xlu0 %v3814, 16
      %v3885 = vpop.permute.xlu0 %3884
      %v3886 = vsel %vm1919, %v3871, %v3873
      %v3887 = vsel %vm1919, %v3875, %v3877
      %v3888 = vsel %vm1919, %v3879, %v3881
      %v3889 = vsel %vm1919, %v3883, %v3885
      %v3898 = vsel %vm1919, 0.0, %v3871
      %v3899 = vsel %vm1919, 0.0, %v3875
      %v3900 = vsel %vm1919, 0.0, %v3879
      %v3901 = vsel %vm1919, 0.0, %v3883
      %s3902 = scalar_lea.vmem %s6, 1
      %v3903 = vld [vmem:[%s3902] ss:$8 sm:$0x3]
      %v3905 = vperm.slane %v3903, 0
      %v3906 = vperm.slane %v3903, 1
      %v3909 = vmul.f32 %v3898, %v3905
      %v3910 = vmul.f32 %v3886, %v3906
      %v3911 = vmul.f32 %v3899, %v3905
      %v3912 = vmul.f32 %v3887, %v3906
      %v3913 = vmul.f32 %v3900, %v3905
      %v3914 = vmul.f32 %v3888, %v3906
      %v3915 = vmul.f32 %v3901, %v3905
      %v3916 = vmul.f32 %v3889, %v3906
      %3917 = vrot.lane.b32.xlu0 %v3807, 15
      %v3918 = vpop.permute.xlu0 %3917
      %3919 = vrot.lane.b32.xlu0 %v3808, 15
      %v3920 = vpop.permute.xlu0 %3919
      %3921 = vrot.lane.b32.xlu0 %v3809, 15
      %v3922 = vpop.permute.xlu0 %3921
      %3923 = vrot.lane.b32.xlu0 %v3810, 15
      %v3924 = vpop.permute.xlu0 %3923
      %3925 = vrot.lane.b32.xlu0 %v3811, 15
      %v3926 = vpop.permute.xlu0 %3925
      %3927 = vrot.lane.b32.xlu0 %v3812, 15
      %v3928 = vpop.permute.xlu0 %3927
      %3929 = vrot.lane.b32.xlu0 %v3813, 15
      %v3930 = vpop.permute.xlu0 %3929
      %3931 = vrot.lane.b32.xlu0 %v3814, 15
      %v3932 = vpop.permute.xlu0 %3931
      %v3933 = vsel %vm989, %v3918, %v3920
      %v3934 = vsel %vm989, %v3922, %v3924
      %v3935 = vsel %vm989, %v3926, %v3928
      %v3936 = vsel %vm989, %v3930, %v3932
      %v3945 = vsel %vm989, 0.0, %v3918
      %v3946 = vsel %vm989, 0.0, %v3922
      %v3947 = vsel %vm989, 0.0, %v3926
      %v3948 = vsel %vm989, 0.0, %v3930
      %s3949 = scalar_lea.vmem %s6, 2
      %v3950 = vld [vmem:[%s3949] ss:$8 sm:$0x3]
      %v3952 = vperm.slane %v3950, 0
      %v3953 = vperm.slane %v3950, 1
      %v3956 = vmul.f32 %v3945, %v3952
      %v3957 = vmul.f32 %v3933, %v3953
      %v3958 = vmul.f32 %v3946, %v3952
      %v3959 = vmul.f32 %v3934, %v3953
      %v3960 = vmul.f32 %v3947, %v3952
      %v3961 = vmul.f32 %v3935, %v3953
      %v3962 = vmul.f32 %v3948, %v3952
      %v3963 = vmul.f32 %v3936, %v3953
      %3964 = vrot.lane.b32.xlu0 %v3807, 1
      %v3965 = vpop.permute.xlu0 %3964
      %3966 = vrot.lane.b32.xlu0 %v3808, 1
      %v3967 = vpop.permute.xlu0 %3966
      %3968 = vrot.lane.b32.xlu0 %v3809, 1
      %v3969 = vpop.permute.xlu0 %3968
      %3970 = vrot.lane.b32.xlu0 %v3810, 1
      %v3971 = vpop.permute.xlu0 %3970
      %3972 = vrot.lane.b32.xlu0 %v3811, 1
      %v3973 = vpop.permute.xlu0 %3972
      %3974 = vrot.lane.b32.xlu0 %v3812, 1
      %v3975 = vpop.permute.xlu0 %3974
      %3976 = vrot.lane.b32.xlu0 %v3813, 1
      %v3977 = vpop.permute.xlu0 %3976
      %3978 = vrot.lane.b32.xlu0 %v3814, 1
      %v3979 = vpop.permute.xlu0 %3978
      %v3980 = vsel %vm966, %v3965, %v3967
      %v3981 = vsel %vm966, %v3969, %v3971
      %v3982 = vsel %vm966, %v3973, %v3975
      %v3983 = vsel %vm966, %v3977, %v3979
      %v3992 = vsel %vm966, 0.0, %v3965
      %v3993 = vsel %vm966, 0.0, %v3969
      %v3994 = vsel %vm966, 0.0, %v3973
      %v3995 = vsel %vm966, 0.0, %v3977
      %s3996 = scalar_lea.vmem %s6, 3
      %v3997 = vld [vmem:[%s3996] ss:$8 sm:$0x3]
      %v3999 = vperm.slane %v3997, 0
      %v4000 = vperm.slane %v3997, 1
      %v4003 = vmul.f32 %v3992, %v3999
      %v4004 = vmul.f32 %v3980, %v4000
      %v4005 = vmul.f32 %v3993, %v3999
      %v4006 = vmul.f32 %v3981, %v4000
      %v4007 = vmul.f32 %v3994, %v3999
      %v4008 = vmul.f32 %v3982, %v4000
      %v4009 = vmul.f32 %v3995, %v3999
      %v4010 = vmul.f32 %v3983, %v4000
      %4011 = vrot.lane.b32.xlu0 %v3807, 127
      %v4012 = vpop.permute.xlu0 %4011
      %4013 = vrot.lane.b32.xlu0 %v3808, 127
      %v4014 = vpop.permute.xlu0 %4013
      %4015 = vrot.lane.b32.xlu0 %v3809, 127
      %v4016 = vpop.permute.xlu0 %4015
      %4017 = vrot.lane.b32.xlu0 %v3810, 127
      %v4018 = vpop.permute.xlu0 %4017
      %4019 = vrot.lane.b32.xlu0 %v3811, 127
      %v4020 = vpop.permute.xlu0 %4019
      %4021 = vrot.lane.b32.xlu0 %v3812, 127
      %v4022 = vpop.permute.xlu0 %4021
      %4023 = vrot.lane.b32.xlu0 %v3813, 127
      %v4024 = vpop.permute.xlu0 %4023
      %4025 = vrot.lane.b32.xlu0 %v3814, 127
      %v4026 = vpop.permute.xlu0 %4025
      %vm4027 = vcmask 1039360
      %v4028 = vsel %vm4027, %v4012, %v4014
      %v4029 = vsel %vm4027, %v4016, %v4018
      %v4030 = vsel %vm4027, %v4020, %v4022
      %v4031 = vsel %vm4027, %v4024, %v4026
      %v4040 = vsel %vm4027, %v4014, 0.0
      %v4041 = vsel %vm4027, %v4018, 0.0
      %v4042 = vsel %vm4027, %v4022, 0.0
      %v4043 = vsel %vm4027, %v4026, 0.0
      %s4044 = scalar_lea.vmem %s6, 5
      %v4045 = vld [vmem:[%s4044] ss:$8 sm:$0x3]
      %v4047 = vperm.slane %v4045, 0
      %v4048 = vperm.slane %v4045, 1
      %v4051 = vmul.f32 %v4028, %v4047
      %v4052 = vmul.f32 %v4040, %v4048
      %v4053 = vmul.f32 %v4029, %v4047
      %v4054 = vmul.f32 %v4041, %v4048
      %v4055 = vmul.f32 %v4030, %v4047
      %v4056 = vmul.f32 %v4042, %v4048
      %v4057 = vmul.f32 %v4031, %v4047
      %v4058 = vmul.f32 %v4043, %v4048
      %4059 = vrot.lane.b32.xlu0 %v3807, 113
      %v4060 = vpop.permute.xlu0 %4059
      %4061 = vrot.lane.b32.xlu0 %v3808, 113
      %v4062 = vpop.permute.xlu0 %4061
      %4063 = vrot.lane.b32.xlu0 %v3809, 113
      %v4064 = vpop.permute.xlu0 %4063
      %4065 = vrot.lane.b32.xlu0 %v3810, 113
      %v4066 = vpop.permute.xlu0 %4065
      %4067 = vrot.lane.b32.xlu0 %v3811, 113
      %v4068 = vpop.permute.xlu0 %4067
      %4069 = vrot.lane.b32.xlu0 %v3812, 113
      %v4070 = vpop.permute.xlu0 %4069
      %4071 = vrot.lane.b32.xlu0 %v3813, 113
      %v4072 = vpop.permute.xlu0 %4071
      %4073 = vrot.lane.b32.xlu0 %v3814, 113
      %v4074 = vpop.permute.xlu0 %4073
      %vm4075 = vcmask 924672
      %v4076 = vsel %vm4075, %v4060, %v4062
      %v4077 = vsel %vm4075, %v4064, %v4066
      %v4078 = vsel %vm4075, %v4068, %v4070
      %v4079 = vsel %vm4075, %v4072, %v4074
      %v4088 = vsel %vm4075, %v4062, 0.0
      %v4089 = vsel %vm4075, %v4066, 0.0
      %v4090 = vsel %vm4075, %v4070, 0.0
      %v4091 = vsel %vm4075, %v4074, 0.0
      %s4092 = scalar_lea.vmem %s6, 6
      %v4093 = vld [vmem:[%s4092] ss:$8 sm:$0x3]
      %v4095 = vperm.slane %v4093, 0
      %v4096 = vperm.slane %v4093, 1
      %v4099 = vmul.f32 %v4076, %v4095
      %v4100 = vmul.f32 %v4088, %v4096
      %v4101 = vmul.f32 %v4077, %v4095
      %v4102 = vmul.f32 %v4089, %v4096
      %v4103 = vmul.f32 %v4078, %v4095
      %v4104 = vmul.f32 %v4090, %v4096
      %v4105 = vmul.f32 %v4079, %v4095
      %v4106 = vmul.f32 %v4091, %v4096
      %4107 = vrot.lane.b32.xlu0 %v3807, 112
      %v4108 = vpop.permute.xlu0 %4107
      %4109 = vrot.lane.b32.xlu0 %v3808, 112
      %v4110 = vpop.permute.xlu0 %4109
      %4111 = vrot.lane.b32.xlu0 %v3809, 112
      %v4112 = vpop.permute.xlu0 %4111
      %4113 = vrot.lane.b32.xlu0 %v3810, 112
      %v4114 = vpop.permute.xlu0 %4113
      %4115 = vrot.lane.b32.xlu0 %v3811, 112
      %v4116 = vpop.permute.xlu0 %4115
      %4117 = vrot.lane.b32.xlu0 %v3812, 112
      %v4118 = vpop.permute.xlu0 %4117
      %4119 = vrot.lane.b32.xlu0 %v3813, 112
      %v4120 = vpop.permute.xlu0 %4119
      %4121 = vrot.lane.b32.xlu0 %v3814, 112
      %v4122 = vpop.permute.xlu0 %4121
      %vm4123 = vcmask 916480
      %v4124 = vsel %vm4123, %v4108, %v4110
      %v4125 = vsel %vm4123, %v4112, %v4114
      %v4126 = vsel %vm4123, %v4116, %v4118
      %v4127 = vsel %vm4123, %v4120, %v4122
      %v4136 = vsel %vm4123, %v4110, 0.0
      %v4137 = vsel %vm4123, %v4114, 0.0
      %v4138 = vsel %vm4123, %v4118, 0.0
      %v4139 = vsel %vm4123, %v4122, 0.0
      %s4140 = scalar_lea.vmem %s6, 7
      %v4141 = vld [vmem:[%s4140] ss:$8 sm:$0x3]
      %v4143 = vperm.slane %v4141, 0
      %v4144 = vperm.slane %v4141, 1
      %v4147 = vmul.f32 %v4124, %v4143
      %v4148 = vmul.f32 %v4136, %v4144
      %v4149 = vmul.f32 %v4125, %v4143
      %v4150 = vmul.f32 %v4137, %v4144
      %v4151 = vmul.f32 %v4126, %v4143
      %v4152 = vmul.f32 %v4138, %v4144
      %v4153 = vmul.f32 %v4127, %v4143
      %v4154 = vmul.f32 %v4139, %v4144
      %4155 = vrot.lane.b32.xlu0 %v3807, 111
      %v4156 = vpop.permute.xlu0 %4155
      %4157 = vrot.lane.b32.xlu0 %v3808, 111
      %v4158 = vpop.permute.xlu0 %4157
      %4159 = vrot.lane.b32.xlu0 %v3809, 111
      %v4160 = vpop.permute.xlu0 %4159
      %4161 = vrot.lane.b32.xlu0 %v3810, 111
      %v4162 = vpop.permute.xlu0 %4161
      %4163 = vrot.lane.b32.xlu0 %v3811, 111
      %v4164 = vpop.permute.xlu0 %4163
      %4165 = vrot.lane.b32.xlu0 %v3812, 111
      %v4166 = vpop.permute.xlu0 %4165
      %4167 = vrot.lane.b32.xlu0 %v3813, 111
      %v4168 = vpop.permute.xlu0 %4167
      %4169 = vrot.lane.b32.xlu0 %v3814, 111
      %v4170 = vpop.permute.xlu0 %4169
      %vm4171 = vcmask 908288
      %v4172 = vsel %vm4171, %v4156, %v4158
      %v4173 = vsel %vm4171, %v4160, %v4162
      %v4174 = vsel %vm4171, %v4164, %v4166
      %v4175 = vsel %vm4171, %v4168, %v4170
      %v4184 = vsel %vm4171, %v4158, 0.0
      %v4185 = vsel %vm4171, %v4162, 0.0
      %v4186 = vsel %vm4171, %v4166, 0.0
      %v4187 = vsel %vm4171, %v4170, 0.0
      %s4188 = scalar_lea.vmem %s6, 16
      %v4189 = vld [vmem:[%s4188] ss:$8 sm:$0x3]
      %v4191 = vperm.slane %v4189, 0
      %v4192 = vperm.slane %v4189, 1
      %v4195 = vmul.f32 %v4172, %v4191
      %v4196 = vmul.f32 %v4184, %v4192
      %v4197 = vmul.f32 %v4173, %v4191
      %v4198 = vmul.f32 %v4185, %v4192
      %v4199 = vmul.f32 %v4174, %v4191
      %v4200 = vmul.f32 %v4186, %v4192
      %v4201 = vmul.f32 %v4175, %v4191
      %v4202 = vmul.f32 %v4187, %v4192
      %v4203 = vpack.c.bf16 %v3864, %v3862
      %v4204 = vpack.c.bf16 %v3865, %v3863
      %v4205 = vpack.c.bf16 %v3868, %v3866
      %v4206 = vpack.c.bf16 %v3869, %v3867
      %v4207 = vpack.c.bf16 %v3911, %v3909
      %v4208 = vpack.c.bf16 %v3912, %v3910
      %v4209 = vpack.c.bf16 %v3915, %v3913
      %v4210 = vpack.c.bf16 %v3916, %v3914
      %v4211 = vpack.c.bf16 %v3958, %v3956
      %v4212 = vpack.c.bf16 %v3959, %v3957
      %v4213 = vpack.c.bf16 %v3962, %v3960
      %v4214 = vpack.c.bf16 %v3963, %v3961
      %v4215 = vpack.c.bf16 %v4005, %v4003
      %v4216 = vpack.c.bf16 %v4006, %v4004
      %v4217 = vpack.c.bf16 %v4009, %v4007
      %v4218 = vpack.c.bf16 %v4010, %v4008
      %v4219 = vpack.c.bf16 %v3809, %v3807
      %v4220 = vpack.c.bf16 %v3810, %v3808
      %v4221 = vpack.c.bf16 %v3813, %v3811
      %v4222 = vpack.c.bf16 %v3814, %v3812
      %v4223 = vpack.c.bf16 %v4053, %v4051
      %v4224 = vpack.c.bf16 %v4054, %v4052
      %v4225 = vpack.c.bf16 %v4057, %v4055
      %v4226 = vpack.c.bf16 %v4058, %v4056
      %v4227 = vpack.c.bf16 %v4101, %v4099
      %v4228 = vpack.c.bf16 %v4102, %v4100
      %v4229 = vpack.c.bf16 %v4105, %v4103
      %v4230 = vpack.c.bf16 %v4106, %v4104
      %v4231 = vpack.c.bf16 %v4149, %v4147
      %v4232 = vpack.c.bf16 %v4150, %v4148
      %v4233 = vpack.c.bf16 %v4153, %v4151
      %v4234 = vpack.c.bf16 %v4154, %v4152
      %v4235 = vpack.c.bf16 %v4197, %v4195
      %v4236 = vpack.c.bf16 %v4198, %v4196
      %v4237 = vpack.c.bf16 %v4201, %v4199
      %v4238 = vpack.c.bf16 %v4202, %v4200
      %v4247 = vunpack.c.l.b16 %v3779
      %v4248 = vunpack.c.h.b16 %v3779
      %v4249 = vunpack.c.l.b16 %v3780
      %v4250 = vunpack.c.l.b16 %v3781
      %v4251 = vunpack.c.h.b16 %v3781
      %v4252 = vunpack.c.l.b16 %v3782
      %v4253 = vunpack.c.l.b16 %v3783
      %v4254 = vunpack.c.h.b16 %v3783
      %v4255 = vunpack.c.l.b16 %v3784
      %v4256 = vunpack.c.l.b16 %v3785
      %v4257 = vunpack.c.h.b16 %v3785
      %v4258 = vunpack.c.l.b16 %v3786
      %v4259 = vpack.c.b16 %v4250, %v4247
      %v4260 = vpack.c.b16 %v4251, %v4248
      %v4261 = vpack.c.b16 %v4252, %v4249
      %v4262 = vpack.c.b16 %v4256, %v4253
      %v4263 = vpack.c.b16 %v4257, %v4254
      %v4264 = vpack.c.b16 %v4258, %v4255
      %v4270 = vsel %vm1117, %v4261, 0
      %v4273 = vsel %vm1117, %v4264, 0
      %4275 = vmatpush.bf16.msra.mxu0 %v4217
      %4276 = vmatpush.bf16.msra.mxu0 %v4215
      %4277 = vmatpush.bf16.msra.mxu0 %v4213
      %4278 = vmatpush.bf16.msra.mxu0 %v4211
      %4279 = vmatpush.bf16.msra.mxu0 %v4209
      %4280 = vmatpush.bf16.msra.mxu0 %v4207
      %4281 = vmatpush.bf16.msra.mxu0 %v4205
      %4282 = vmatpush.bf16.msra.mxu0 %v4203
      %4283 = vmatmul.bf16.gmra.mxu0 %v4259
      %v4284 = vpop.f32.mrf.mxu0
      %v4285 = vadd.f32 0.0, %v4284
      %v4286 = vpop.f32.mrf.mxu0
      %v4287 = vadd.f32 0.0, %v4286
      %4288 = vmatmul.bf16.gmra.mxu0 %v4262
      %v4289 = vpop.f32.mrf.mxu0
      %v4290 = vadd.f32 0.0, %v4289
      %v4291 = vpop.f32.mrf.mxu0
      %v4292 = vadd.f32 0.0, %v4291
      %4293 = vdwg.mxu0
      %4294 = vmatpush.bf16.msra.mxu0 %v4233
      %4295 = vmatpush.bf16.msra.mxu0 %v4231
      %4296 = vmatpush.bf16.msra.mxu0 %v4229
      %4297 = vmatpush.bf16.msra.mxu0 %v4227
      %4298 = vmatpush.bf16.msra.mxu0 %v4225
      %4299 = vmatpush.bf16.msra.mxu0 %v4223
      %4300 = vmatpush.bf16.msra.mxu0 %v4221
      %4301 = vmatpush.bf16.msra.mxu0 %v4219
      %4302 = vmatmul.bf16.gmra.mxu0 %v4260
      %v4303 = vpop.f32.mrf.mxu0
      %v4304 = vadd.f32 %v4285, %v4303
      %v4305 = vpop.f32.mrf.mxu0
      %v4306 = vadd.f32 %v4287, %v4305
      %4307 = vmatmul.bf16.gmra.mxu0 %v4263
      %v4308 = vpop.f32.mrf.mxu0
      %v4309 = vadd.f32 %v4290, %v4308
      %v4310 = vpop.f32.mrf.mxu0
      %v4311 = vadd.f32 %v4292, %v4310
      %4312 = vdwg.mxu0
      %4313 = vmatpush.bf16.msra.mxu0 0
      %4314 = vmatpush.bf16.msra.mxu0 0
      %4315 = vmatpush.bf16.msra.mxu0 0
      %4316 = vmatpush.bf16.msra.mxu0 0
      %4317 = vmatpush.bf16.msra.mxu0 0
      %4318 = vmatpush.bf16.msra.mxu0 0
      %4319 = vmatpush.bf16.msra.mxu0 %v4237
      %4320 = vmatpush.bf16.msra.mxu0 %v4235
      %4321 = vmatmul.bf16.gmra.mxu0 %v4270
      %v4322 = vpop.f32.mrf.mxu0
      %v4323 = vadd.f32 %v4304, %v4322
      %v4324 = vpop.f32.mrf.mxu0
      %v4325 = vadd.f32 %v4306, %v4324
      %4326 = vmatmul.bf16.gmra.mxu0 %v4273
      %v4327 = vpop.f32.mrf.mxu0
      %v4328 = vadd.f32 %v4309, %v4327
      %v4329 = vpop.f32.mrf.mxu0
      %v4330 = vadd.f32 %v4311, %v4329
      %4331 = vdwg.mxu0
      %4332 = vmatpush.bf16.msra.mxu0 %v4218
      %4333 = vmatpush.bf16.msra.mxu0 %v4216
      %4334 = vmatpush.bf16.msra.mxu0 %v4214
      %4335 = vmatpush.bf16.msra.mxu0 %v4212
      %4336 = vmatpush.bf16.msra.mxu0 %v4210
      %4337 = vmatpush.bf16.msra.mxu0 %v4208
      %4338 = vmatpush.bf16.msra.mxu0 %v4206
      %4339 = vmatpush.bf16.msra.mxu0 %v4204
      %4340 = vmatmul.bf16.gmra.mxu0 %v4259
      %v4341 = vpop.f32.mrf.mxu0
      %v4342 = vadd.f32 0.0, %v4341
      %v4343 = vpop.f32.mrf.mxu0
      %v4344 = vadd.f32 0.0, %v4343
      %4345 = vmatmul.bf16.gmra.mxu0 %v4262
      %v4346 = vpop.f32.mrf.mxu0
      %v4347 = vadd.f32 0.0, %v4346
      %v4348 = vpop.f32.mrf.mxu0
      %v4349 = vadd.f32 0.0, %v4348
      %4350 = vdwg.mxu0
      %4351 = vmatpush.bf16.msra.mxu0 %v4234
      %4352 = vmatpush.bf16.msra.mxu0 %v4232
      %4353 = vmatpush.bf16.msra.mxu0 %v4230
      %4354 = vmatpush.bf16.msra.mxu0 %v4228
      %4355 = vmatpush.bf16.msra.mxu0 %v4226
      %4356 = vmatpush.bf16.msra.mxu0 %v4224
      %4357 = vmatpush.bf16.msra.mxu0 %v4222
      %4358 = vmatpush.bf16.msra.mxu0 %v4220
      %4359 = vmatmul.bf16.gmra.mxu0 %v4260
      %v4360 = vpop.f32.mrf.mxu0
      %v4361 = vadd.f32 %v4342, %v4360
      %v4362 = vpop.f32.mrf.mxu0
      %v4363 = vadd.f32 %v4344, %v4362
      %4364 = vmatmul.bf16.gmra.mxu0 %v4263
      %v4365 = vpop.f32.mrf.mxu0
      %v4366 = vadd.f32 %v4347, %v4365
      %v4367 = vpop.f32.mrf.mxu0
      %v4368 = vadd.f32 %v4349, %v4367
      %4369 = vdwg.mxu0
      %4370 = vmatpush.bf16.msra.mxu0 0
      %4371 = vmatpush.bf16.msra.mxu0 0
      %4372 = vmatpush.bf16.msra.mxu0 0
      %4373 = vmatpush.bf16.msra.mxu0 0
      %4374 = vmatpush.bf16.msra.mxu0 0
      %4375 = vmatpush.bf16.msra.mxu0 0
      %4376 = vmatpush.bf16.msra.mxu0 %v4238
      %4377 = vmatpush.bf16.msra.mxu0 %v4236
      %4378 = vmatmul.bf16.gmra.mxu0 %v4270
      %v4379 = vpop.f32.mrf.mxu0
      %v4380 = vadd.f32 %v4361, %v4379
      %v4381 = vpop.f32.mrf.mxu0
      %v4382 = vadd.f32 %v4363, %v4381
      %4383 = vmatmul.bf16.gmra.mxu0 %v4273
      %v4384 = vpop.f32.mrf.mxu0
      %v4385 = vadd.f32 %v4366, %v4384
      %v4386 = vpop.f32.mrf.mxu0
      %v4387 = vadd.f32 %v4368, %v4386
      %4388 = vdwg.mxu0
      %4390 = vset.pattern.permute.xlu0 0
      %4391 = vperm.xlu0 %4390, %v820
      %v4392 = vpop.permute.xlu0 %4391
      %4395 = vset.pattern.permute.xlu0 0
      %4396 = vperm.xlu0 %4395, %v821
      %v4397 = vpop.permute.xlu0 %4396
      %4400 = vset.pattern.permute.xlu0 0
      %4401 = vperm.xlu0 %4400, %v822
      %v4402 = vpop.permute.xlu0 %4401
      %4405 = vset.pattern.permute.xlu0 0
      %4406 = vperm.xlu0 %4405, %v823
      %v4407 = vpop.permute.xlu0 %4406
      %v4409 = vmul.f32 %v4323, %v4392
      %v4410 = vmul.f32 %v4380, %v4392
      %v4411 = vmul.f32 %v4325, %v4397
      %v4412 = vmul.f32 %v4382, %v4397
      %v4413 = vmul.f32 %v4328, %v4402
      %v4414 = vmul.f32 %v4385, %v4402
      %v4415 = vmul.f32 %v4330, %v4407
      %v4416 = vmul.f32 %v4387, %v4407
      %v4418 = vperm.slane %v3778, 0
      %v4419 = vperm.slane %v3778, 1
      %v4422 = vadd.f32 %v4409, %v4418
      %v4423 = vadd.f32 %v4410, %v4419
      %v4424 = vadd.f32 %v4411, %v4418
      %v4425 = vadd.f32 %v4412, %v4419
      %v4426 = vadd.f32 %v4413, %v4418
      %v4427 = vadd.f32 %v4414, %v4419
      %v4428 = vadd.f32 %v4415, %v4418
      %v4429 = vadd.f32 %v4416, %v4419
      %4431 = vset.pattern.permute.xlu0 0
      %4432 = vperm.xlu0 %4431, %v840
      %v4433 = vpop.permute.xlu0 %4432
      %4436 = vset.pattern.permute.xlu0 0
      %4437 = vperm.xlu0 %4436, %v841
      %v4438 = vpop.permute.xlu0 %4437
      %4441 = vset.pattern.permute.xlu0 0
      %4442 = vperm.xlu0 %4441, %v842
      %v4443 = vpop.permute.xlu0 %4442
      %4446 = vset.pattern.permute.xlu0 0
      %4447 = vperm.xlu0 %4446, %v843
      %v4448 = vpop.permute.xlu0 %4447
      %v4450 = vadd.f32 %v4422, %v4433
      %v4451 = vadd.f32 %v4423, %v4433
      %v4452 = vadd.f32 %v4424, %v4438
      %v4453 = vadd.f32 %v4425, %v4438
      %v4454 = vadd.f32 %v4426, %v4443
      %v4455 = vadd.f32 %v4427, %v4443
      %v4456 = vadd.f32 %v4428, %v4448
      %v4457 = vadd.f32 %v4429, %v4448
      %vm4458 = vcmp.lt.f32.partialorder %v4450, 0.0
      %vm4459 = vcmp.lt.f32.partialorder %v4451, 0.0
      %vm4460 = vcmp.lt.f32.partialorder %v4452, 0.0
      %vm4461 = vcmp.lt.f32.partialorder %v4453, 0.0
      %vm4462 = vcmp.lt.f32.partialorder %v4454, 0.0
      %vm4463 = vcmp.lt.f32.partialorder %v4455, 0.0
      %vm4464 = vcmp.lt.f32.partialorder %v4456, 0.0
      %vm4465 = vcmp.lt.f32.partialorder %v4457, 0.0
      %v4466 = vmul.f32 %v4450, 0.2
      %v4467 = vmul.f32 %v4451, 0.2
      %v4468 = vmul.f32 %v4452, 0.2
      %v4469 = vmul.f32 %v4453, 0.2
      %v4470 = vmul.f32 %v4454, 0.2
      %v4471 = vmul.f32 %v4455, 0.2
      %v4472 = vmul.f32 %v4456, 0.2
      %v4473 = vmul.f32 %v4457, 0.2
      %v4474 = vsel %vm4458, %v4466, %v4450
      %v4475 = vsel %vm4459, %v4467, %v4451
      %v4476 = vsel %vm4460, %v4468, %v4452
      %v4477 = vsel %vm4461, %v4469, %v4453
      %v4478 = vsel %vm4462, %v4470, %v4454
      %v4479 = vsel %vm4463, %v4471, %v4455
      %v4480 = vsel %vm4464, %v4472, %v4456
      %v4481 = vsel %vm4465, %v4473, %v4457
      %v4482 = vmul.f32 %v4474, 1.4142135
      %v4483 = vmul.f32 %v4475, 1.4142135
      %v4484 = vmul.f32 %v4476, 1.4142135
      %v4485 = vmul.f32 %v4477, 1.4142135
      %v4486 = vmul.f32 %v4478, 1.4142135
      %v4487 = vmul.f32 %v4479, 1.4142135
      %v4488 = vmul.f32 %v4480, 1.4142135
      %v4489 = vmul.f32 %v4481, 1.4142135
      %v4490 = vmax.f32 %v4482, -256.0
      %v4491 = vmax.f32 %v4483, -256.0
      %v4492 = vmax.f32 %v4484, -256.0
      %v4493 = vmax.f32 %v4485, -256.0
      %v4494 = vmax.f32 %v4486, -256.0
      %v4495 = vmax.f32 %v4487, -256.0
      %v4496 = vmax.f32 %v4488, -256.0
      %v4497 = vmax.f32 %v4489, -256.0
      %v4498 = vmin.f32 %v4490, 256.0
      %v4499 = vmin.f32 %v4491, 256.0
      %v4500 = vmin.f32 %v4492, 256.0
      %v4501 = vmin.f32 %v4493, 256.0
      %v4502 = vmin.f32 %v4494, 256.0
      %v4503 = vmin.f32 %v4495, 256.0
      %v4504 = vmin.f32 %v4496, 256.0
      %v4505 = vmin.f32 %v4497, 256.0
      %v4506 = vld [vmem:[%s21] sm:$0x3]
      %v4507 = vld [vmem:[%s22] sm:$0x7]
      %4509 = vset.pattern.permute.xlu0 0
      %4510 = vperm.xlu0 %4509, %v800
      %v4511 = vpop.permute.xlu0 %4510
      %4514 = vset.pattern.permute.xlu0 0
      %4515 = vperm.xlu0 %4514, %v801
      %v4516 = vpop.permute.xlu0 %4515
      %4519 = vset.pattern.permute.xlu0 0
      %4520 = vperm.xlu0 %4519, %v802
      %v4521 = vpop.permute.xlu0 %4520
      %4524 = vset.pattern.permute.xlu0 0
      %4525 = vperm.xlu0 %4524, %v803
      %v4526 = vpop.permute.xlu0 %4525
      %v4528 = vmul.f32 %v4498, %v4511
      %v4529 = vmul.f32 %v4499, %v4511
      %v4530 = vmul.f32 %v4500, %v4516
      %v4531 = vmul.f32 %v4501, %v4516
      %v4532 = vmul.f32 %v4502, %v4521
      %v4533 = vmul.f32 %v4503, %v4521
      %v4534 = vmul.f32 %v4504, %v4526
      %v4535 = vmul.f32 %v4505, %v4526
      %v4536 = vpack.c.bf16 %v4530, %v4528
      %v4537 = vpack.c.bf16 %v4531, %v4529
      %v4538 = vpack.c.bf16 %v4534, %v4532
      %v4539 = vpack.c.bf16 %v4535, %v4533
      %4541 = vset.pattern.permute.xlu0 0
      %4542 = vperm.xlu0 %4541, %v4507
      %v4543 = vpop.permute.xlu0 %4542
      %v4546 = vsel %vm1117, %v4506, 0
      %4548 = vmatpush.bf16.msra.mxu0 0
      %4549 = vmatpush.bf16.msra.mxu0 0
      %4550 = vmatpush.bf16.msra.mxu0 0
      %4551 = vmatpush.bf16.msra.mxu0 0
      %4552 = vmatpush.bf16.msra.mxu0 0
      %4553 = vmatpush.bf16.msra.mxu0 0
      %4554 = vmatpush.bf16.msra.mxu0 %v4538
      %4555 = vmatpush.bf16.msra.mxu0 %v4536
      %4556 = vmatmul.bf16.gmra.mxu0 %v4546
      %v4557 = vpop.f32.mrf.mxu0
      %v4558 = vadd.f32 %v4543, %v4557
      %v4559 = vpop.f32.mrf.mxu0
      %4560 = vdwg.mxu0
      %4561 = vmatpush.bf16.msra.mxu0 0
      %4562 = vmatpush.bf16.msra.mxu0 0
      %4563 = vmatpush.bf16.msra.mxu0 0
      %4564 = vmatpush.bf16.msra.mxu0 0
      %4565 = vmatpush.bf16.msra.mxu0 0
      %4566 = vmatpush.bf16.msra.mxu0 0
      %4567 = vmatpush.bf16.msra.mxu0 %v4539
      %4568 = vmatpush.bf16.msra.mxu0 %v4537
      %4569 = vmatmul.bf16.gmra.mxu0 %v4546
      %v4570 = vpop.f32.mrf.mxu0
      %v4571 = vadd.f32 %v4543, %v4570
      %v4572 = vpop.f32.mrf.mxu0
      %4573 = vdwg.mxu0
      %v4574 = vmax.f32 %v4558, -256.0
      %v4575 = vmax.f32 %v4571, -256.0
      %v4576 = vmin.f32 %v4574, 256.0
      %v4577 = vmin.f32 %v4575, 256.0
      %v4578 = vadd.f32 %v3658, %v4576
      %v4579 = vadd.f32 %v3659, %v4577
      %4580 = vst [vmem:[%s765] sm:$0xff] %v4498
      %4581 = vst [vmem:[%s765 + $0x8] sm:$0xff] %v4499
      %4582 = vst [vmem:[%s765 + $0x10] sm:$0xff] %v4500
      %4583 = vst [vmem:[%s765 + $0x18] sm:$0xff] %v4501
      %4584 = vst [vmem:[%s765 + $0x20] sm:$0xff] %v4502
      %4585 = vst [vmem:[%s765 + $0x28] sm:$0xff] %v4503
      %4586 = vst [vmem:[%s765 + $0x30] sm:$0xff] %v4504
      %4587 = vst [vmem:[%s765 + $0x38] sm:$0xff] %v4505
      %v4590 = vrot.slane %v4579, 4
      %vm4591 = vcmask 1043456
      %v4592 = vsel %vm4591, %v4578, %v4590
      %4594 = vst [vmem:[%s770] sm:$0x77] %v4592
      %p4595 = scmp.lt.s32.totalorder %s36, 1
      %s4596 = scalar_select %p4595, %s36, 1
      %s4597 = smul.addr %s4596, 8
      %s4598 = smul.addr %s4597, 8
      %s4599 = scalar_lea.vmem %s23, %s4598
      %p4600 = scmp.lt.s32.totalorder %s36, 1
      %s4601 = scalar_select %p4600, %s36, 1
      %s4602 = smul.addr %s4601, 2
      %s4603 = smul.addr %s4602, 4
      %s4604 = scalar_lea.vmem %s24, %s4603
      // Predicated region
      $region113: #{sg2_student_half_forward.1} parent=111 // pred_check
        %p4605 = pneg %p547
      $region114: #{sg2_student_half_forward.1} parent=111 // pred_check_branch
        %4607 = sbr.rel (%p4605) target = $region116
      $region115: #{sg2_student_half_forward.1} parent=111 // pred_region
        _
      $region116: #{sg2_student_half_forward.1} parent=111 // pred_fallthru
        _
      // Predicated region
      $region117: #{sg2_student_half_forward.1} parent=111 // pred_check
        %p4608 = pneg %p573
      $region118: #{sg2_student_half_forward.1} parent=111 // pred_check_branch
        %4610 = sbr.rel (%p4608) target = $region120
      $region119: #{sg2_student_half_forward.1} parent=111 // pred_region
        _
      $region120: #{sg2_student_half_forward.1} parent=111 // pred_fallthru
        _
    $region112: #{sg2_student_half_forward.1} parent=5 // pred_fallthru
      _
    %p4611 = scmp.le.s32.totalorder 2, %s31
    // Predicated region
    $region121: #{sg2_student_half_forward.1} parent=5 // pred_check
      %p4612 = pneg %p4611
    $region122: #{sg2_student_half_forward.1} parent=5 // pred_check_branch
      %4614 = sbr.rel (%p4612) target = $region124
    $region123: #{sg2_student_half_forward.1} parent=5 // pred_region
      %s4615 = ssub.s32 %s31, 2
      // Predicated region
      $region125: #{sg2_student_half_forward.1} parent=123 // pred_check
        %p4616 = pneg %p553
      $region126: #{sg2_student_half_forward.1} parent=123 // pred_check_branch
        %4618 = sbr.rel (%p4616) target = $region128
      $region127: #{sg2_student_half_forward.1} parent=123 // pred_region
        %p4619 = scmp.lt.s32.totalorder %s37, 1
        %s4620 = scalar_select %p4619, %s37, 1
        %s4621 = smul.addr %s4620, 8
        %s4622 = smul.addr %s4621, 8
        %s4623 = scalar_lea.vmem %s23, %s4622
      $region128: #{sg2_student_half_forward.1} parent=123 // pred_fallthru
        _
      // Predicated region
      $region129: #{sg2_student_half_forward.1} parent=123 // pred_check
        %p4624 = pneg %p579
      $region130: #{sg2_student_half_forward.1} parent=123 // pred_check_branch
        %4626 = sbr.rel (%p4624) target = $region132
      $region131: #{sg2_student_half_forward.1} parent=123 // pred_region
        %p4627 = scmp.lt.s32.totalorder %s37, 1
        %s4628 = scalar_select %p4627, %s37, 1
        %s4629 = smul.addr %s4628, 2
        %s4630 = smul.addr %s4629, 4
        %s4631 = scalar_lea.vmem %s24, %s4630
      $region132: #{sg2_student_half_forward.1} parent=123 // pred_fallthru
        _
    $region124: #{sg2_student_half_forward.1} parent=5 // pred_fallthru
      _
  $region6: #{sg2_student_half_forward.1} parent=0 // loop_footer
    %s35 = sadd.s32 1, %s31
  $region7: #{sg2_student_half_forward.1} parent=0 // loop_footer_branch
    %30 = sbr.rel target = $region3
  $region8: #{sg2_student_half_forward.1} parent=0 // loop_exit
    _

</llo_original>
